<compile_context>
chip_gen: v6e
topology: v6e:2x2x1
jax: 0.10.0
libtpu: 0.0.40
codegen_flags: <defaults>
</compile_context>

<pallas_src>
import functools

import jax
import jax.numpy as jnp
import numpy as np
from jax import lax
from jax.experimental import pallas as pl
from jax.experimental.pallas import tpu as pltpu


def _round_up(x, m):
    return (x + m - 1) // m * m


class _LayerCfg:
    """Static geometry of one conv layer inside the fused pipeline."""

    def __init__(self, h, w, cin, cout, k, s, p):
        self.h, self.w = h, w
        self.cin, self.cout = cin, cout
        self.kh = self.kw = k
        self.s, self.p = s, p
        self.hp, self.wp = h + 2 * p, w + 2 * p
        self.ho = (self.hp - k) // s + 1
        self.wo = (self.wp - k) // s + 1
        self.hq = -(-self.hp // s)          # ceil(hp / s): phase-image height
        self.wq = -(-self.wp // s)          # ceil(wp / s): phase-image width
        self.m = self.ho * self.wq          # matmul N dim (incl. garbage cols)
        self.l = self.hq * self.wq          # flattened phase-image length
        max_start = ((k - 1) // s) * self.wq + (k - 1) // s
        self.lpad = max(self.l, max_start + self.m)   # no OOB tap reads
        self.cinp = _round_up(cin, 8)       # sublane-aligned channel stride
        self.kdim = self.kh * self.kw * self.cinp
        self.phases = s * s


# ------------------------------ Pallas kernel --------------------------------

def _coarse_flow_kernel(x_ref,
                        w1_ref, b1_ref, w2_ref, b2_ref, w3_ref, b3_ref,
                        w4_ref, b4_ref, w5_ref, b5_ref,
                        s12_ref, s23_ref, s34_ref, s45_ref,
                        o_ref,
                        slab_ref, p2_ref, p3_ref, p4_ref, p5_ref, *, cfgs):
    c1, c2, c3, c4, c5 = cfgs

    def conv(read_piece, w_ref, b_ref, cfg, act):
        # Assemble the (K, M) im2col slab: one contiguous static lane-slice of
        # the flattened phase buffer per tap, stored at an 8-aligned sublane
        # offset of the scratch slab.  No concat / reshape ops in-kernel.
        m = cfg.m
        for di in range(cfg.kh):
            oi, pa = di // cfg.s, di % cfg.s
            for dj in range(cfg.kw):
                oj, pb = dj // cfg.s, dj % cfg.s
                ph = pa * cfg.s + pb
                start = ph * cfg.lpad + oi * cfg.wq + oj
                t = di * cfg.kw + dj
                slab_ref[t * cfg.cinp:(t + 1) * cfg.cinp, :m] = read_piece(start, m)
        # Single big-K matmul per image: (Cout, K) x (K, M) -> (Cout, M) f32.
        y = jnp.dot(w_ref[...], slab_ref[:cfg.kdim, :m],
                    preferred_element_type=jnp.float32)
        y = y + b_ref[...]                       # (Cout, 1) broadcasts over lanes
        return jnp.maximum(y, 0.0) if act == "relu" else jnp.tanh(y)

    def repad(pbuf_ref, y, sel_ref):
        # Zero-pad + polyphase re-index for the next layer as a 0/1 selection
        # matmul (garbage output columns hit all-zero rows, padding positions
        # hit all-zero columns).  Pure data movement on the MXU.
        pbuf_ref[...] = jnp.dot(y.astype(jnp.bfloat16), sel_ref[...],
                                preferred_element_type=jnp.float32
                                ).astype(pbuf_ref.dtype)

    y = conv(lambda st, mm: x_ref[0, :, st:st + mm], w1_ref, b1_ref, c1, "relu")
    repad(p2_ref, y, s12_ref)
    y = conv(lambda st, mm: p2_ref[:, st:st + mm], w2_ref, b2_ref, c2, "relu")
    repad(p3_ref, y, s23_ref)
    y = conv(lambda st, mm: p3_ref[:, st:st + mm], w3_ref, b3_ref, c3, "relu")
    repad(p4_ref, y, s34_ref)
    y = conv(lambda st, mm: p4_ref[:, st:st + mm], w4_ref, b4_ref, c4, "relu")
    repad(p5_ref, y, s45_ref)
    y = conv(lambda st, mm: p5_ref[:, st:st + mm], w5_ref, b5_ref, c5, "tanh")
    o_ref[0] = y.astype(o_ref.dtype)


# ---------------------------- host-side plumbing -----------------------------

def _prep_input(x_nchw, cfg):
    """Pad + polyphase split + flatten layer-1 input (pure layout, bf16)."""
    n = x_nchw.shape[0]
    x = jnp.pad(x_nchw, ((0, 0), (0, cfg.cinp - cfg.cin), (0, 0), (0, 0)))
    x = jnp.pad(x, ((0, 0), (0, 0),
                    (cfg.p, cfg.s * cfg.hq - cfg.hp + cfg.p),
                    (cfg.p, cfg.s * cfg.wq - cfg.wp + cfg.p)))
    x = x.reshape(n, cfg.cinp, cfg.hq, cfg.s, cfg.wq, cfg.s)
    x = x.transpose(0, 1, 3, 5, 2, 4)                       # (N, C, pa, pb, u, v)
    x = x.reshape(n, cfg.cinp, cfg.phases, cfg.l)
    x = jnp.pad(x, ((0, 0), (0, 0), (0, 0), (0, cfg.lpad - cfg.l)))
    return x.reshape(n, cfg.cinp, cfg.phases * cfg.lpad).astype(jnp.bfloat16)


def _prep_weight(w_oihw, cfg):
    """PyTorch (Cout, Cin, KH, KW) -> lane-dense 2-D slab (Cout, KH*KW*Cin_pad)."""
    cout = w_oihw.shape[0]
    w = jnp.pad(w_oihw, ((0, 0), (0, cfg.cinp - cfg.cin), (0, 0), (0, 0)))
    w = w.transpose(0, 2, 3, 1).reshape(cout, cfg.kdim)
    return w.astype(jnp.bfloat16)


def _build_selection(prev, nxt):
    """0/1 matrix: prev-layer output lanes -> next-layer padded phase lanes."""
    sel = np.zeros((prev.m, nxt.phases * nxt.lpad), np.float32)
    for pa in range(nxt.s):
        for pb in range(nxt.s):
            ph = pa * nxt.s + pb
            for u in range(nxt.hq):
                for v in range(nxt.wq):
                    r, c = nxt.s * u + pa, nxt.s * v + pb
                    if r >= nxt.hp or c >= nxt.wp:
                        continue                    # stride round-up region -> 0
                    ir, ic = r - nxt.p, c - nxt.p
                    if 0 <= ir < prev.ho and 0 <= ic < prev.wo:
                        sel[ir * prev.wq + ic, ph * nxt.lpad + u * nxt.wq + v] = 1.0
    return sel


def _vmem_block_bytes(shape, dtype):
    itemsize = np.dtype(dtype).itemsize
    sub = 8 * (4 // itemsize)
    dims = list(shape)
    dims[-1] = _round_up(dims[-1], 128)
    if len(dims) >= 2:
        dims[-2] = _round_up(dims[-2], sub)
    return int(np.prod(dims)) * itemsize


def pixel_shuffle_nchw(x, r):
    n, c, h, w = x.shape
    co = c // (r * r)
    x = x.reshape(n, co, r, r, h, w)
    x = jnp.transpose(x, (0, 1, 4, 2, 5, 3))
    return x.reshape(n, co, h * r, w * r)


def coarse_flow_forward(x_nchw, params, *, upscale=4):
    """Input: NCHW (N, 2*num_in_ch, H, W). Output: NCHW (N, 2, H*up/4*... )."""
    n, cin, h, w = x_nchw.shape
    nf = params["w1"].shape[0]
    cout5 = params["w5"].shape[0]

    c1 = _LayerCfg(h, w, cin, nf, 5, 2, 1)
    c2 = _LayerCfg(c1.ho, c1.wo, nf, nf, 3, 1, 2)
    c3 = _LayerCfg(c2.ho, c2.wo, nf, nf, 5, 2, 1)
    c4 = _LayerCfg(c3.ho, c3.wo, nf, nf, 3, 1, 2)
    c5 = _LayerCfg(c4.ho, c4.wo, nf, cout5, 3, 1, 0)
    cfgs = (c1, c2, c3, c4, c5)
    for cfg in cfgs[1:]:
        # In-kernel phase buffers are not channel-padded; keep slab stores
        # sublane-aligned.  TODO(synk): generalize to num_feat % 8 != 0.
        assert cfg.cinp == cfg.cin, "num_feat must be a multiple of 8"

    x0 = _prep_input(x_nchw, c1)
    ws = [_prep_weight(params[f"w{i}"], cfgs[i - 1]) for i in range(1, 6)]
    bs = [params[f"b{i}"].reshape(-1, 1).astype(jnp.float32) for i in range(1, 6)]
    sels = [jnp.asarray(_build_selection(cfgs[i], cfgs[i + 1]), jnp.bfloat16)
            for i in range(4)]

    const_ops = []
    for wi, bi in zip(ws, bs):
        const_ops += [wi, bi]
    const_ops += sels

    kmax = max(cfg.kdim for cfg in cfgs)
    mmax = max(cfg.m for cfg in cfgs)
    scratch_shapes = [pltpu.VMEM((kmax, mmax), jnp.bfloat16)]
    scratch_shapes += [pltpu.VMEM((cfg.cin, cfg.phases * cfg.lpad), jnp.bfloat16)
                       for cfg in cfgs[1:]]

    in_specs = [pl.BlockSpec((1, c1.cinp, c1.phases * c1.lpad),
                             lambda i: (i, 0, 0))]
    in_specs += [pl.BlockSpec(op.shape, lambda i: (0, 0)) for op in const_ops]
    out_spec = pl.BlockSpec((1, c5.cout, c5.m), lambda i: (i, 0, 0))
    out_shape = jax.ShapeDtypeStruct((n, c5.cout, c5.m), jnp.float32)

    # VMEM budget from the actual block bytes (x2 for double buffering) + scratch.
    vmem_bytes = 2 * _vmem_block_bytes((1, c1.cinp, c1.phases * c1.lpad), jnp.bfloat16)
    for op in const_ops:
        vmem_bytes += 2 * _vmem_block_bytes(op.shape, op.dtype)
    vmem_bytes += 2 * _vmem_block_bytes((1, c5.cout, c5.m), jnp.float32)
    vmem_bytes += _vmem_block_bytes((kmax, mmax), jnp.bfloat16)
    for cfg in cfgs[1:]:
        vmem_bytes += _vmem_block_bytes((cfg.cin, cfg.phases * cfg.lpad), jnp.bfloat16)
    vmem_limit = int(vmem_bytes) + 8 * 1024 * 1024      # headroom for f32 temps

    flops = 0
    for cfg in cfgs:
        flops += 2 * cfg.cout * cfg.kdim * cfg.m
    for prev, nxt in zip(cfgs[:-1], cfgs[1:]):
        flops += 2 * prev.cout * prev.m * nxt.phases * nxt.lpad
    flops *= n
    transcendentals = n * c5.cout * c5.m
    bytes_accessed = int(x0.size * np.dtype(x0.dtype).itemsize
                         + sum(op.size * np.dtype(op.dtype).itemsize
                               for op in const_ops)
                         + n * c5.cout * c5.m * 4)

    fused = pl.pallas_call(
        functools.partial(_coarse_flow_kernel, cfgs=cfgs),
        out_shape=out_shape,
        grid=(n,),
        in_specs=in_specs,
        out_specs=out_spec,
        scratch_shapes=scratch_shapes,
        compiler_params=pltpu.CompilerParams(
            dimension_semantics=("parallel",),
            vmem_limit_bytes=vmem_limit),
        cost_estimate=pl.CostEstimate(flops=flops,
                                      transcendentals=transcendentals,
                                      bytes_accessed=bytes_accessed),
    )

    y = fused(x0, *const_ops)                            # (N, Cout5, HO5*Wq5)
    y = y.reshape(n, c5.cout, c5.ho, c5.wq)[:, :, :, :c5.wo]
    return pixel_shuffle_nchw(y, upscale)                # (N, 2, H', W')


# --------------------------- pure-JAX reference ------------------------------

def _ref_forward(x, params):
    def conv(x, w, b, stride, pad):
        y = lax.conv_general_dilated(
            x, w, window_strides=(stride, stride),
            padding=[(pad, pad), (pad, pad)],
            dimension_numbers=("NCHW", "OIHW", "NCHW"),
            precision=lax.Precision.HIGHEST)
        return y + b.reshape(1, -1, 1, 1)

    x = jax.nn.relu(conv(x, params["w1"], params["b1"], 2, 1))
    x = jax.nn.relu(conv(x, params["w2"], params["b2"], 1, 2))
    x = jax.nn.relu(conv(x, params["w3"], params["b3"], 2, 1))
    x = jax.nn.relu(conv(x, params["w4"], params["b4"], 1, 2))
    x = jnp.tanh(conv(x, params["w5"], params["b5"], 1, 0))
    return pixel_shuffle_nchw(x, 4)


# ---------------------------------- main -------------------------------------

def _init_params(key, num_in_ch=3, num_feat=24):
    ks = jax.random.split(key, 10)
    s = 0.05
    return {
        "w1": s * jax.random.normal(ks[0], (num_feat, 2 * num_in_ch, 5, 5), jnp.float32),
        "b1": s * jax.random.normal(ks[1], (num_feat,), jnp.float32),
        "w2": s * jax.random.normal(ks[2], (num_feat, num_feat, 3, 3), jnp.float32),
        "b2": s * jax.random.normal(ks[3], (num_feat,), jnp.float32),
        "w3": s * jax.random.normal(ks[4], (num_feat, num_feat, 5, 5), jnp.float32),
        "b3": s * jax.random.normal(ks[5], (num_feat,), jnp.float32),
        "w4": s * jax.random.normal(ks[6], (num_feat, num_feat, 3, 3), jnp.float32),
        "b4": s * jax.random.normal(ks[7], (num_feat,), jnp.float32),
        "w5": s * jax.random.normal(ks[8], (32, num_feat, 3, 3), jnp.float32),
        "b5": s * jax.random.normal(ks[9], (32,), jnp.float32),
    }


if __name__ == "__main__":
    key = jax.random.PRNGKey(0)
    k_x, k_p = jax.random.split(key)

    # Two stacked RGB frames: (N, 2*3, H, W)
    x = jax.random.normal(k_x, (2, 6, 16, 16), jnp.float32)
    params = _init_params(k_p)

    fwd = jax.jit(coarse_flow_forward)
    out = jax.block_until_ready(fwd(x, params))
    ref = jax.block_until_ready(jax.jit(_ref_forward)(x, params))

    assert out.shape == (2, 2, 16, 16), out.shape
    # Matmul operands are bf16 (f32 accumulation), so the tolerance vs. the
    # HIGHEST-precision f32 reference is relaxed accordingly.
    err = float(jnp.max(jnp.abs(out - ref)))
    assert err < 4e-2, err

    print("KERNEL_OK")
</pallas_src>

<mosaic_0001>
module attributes {stable_mosaic.version = 11 : i64} {
  func.func @_coarse_flow_kernel(%arg0: i32, %arg1: memref<1x8x332xbf16, #tpu.memory_space<vmem>>, %arg2: memref<24x200xbf16, #tpu.memory_space<vmem>>, %arg3: memref<24x1xf32, #tpu.memory_space<vmem>>, %arg4: memref<24x216xbf16, #tpu.memory_space<vmem>>, %arg5: memref<24x1xf32, #tpu.memory_space<vmem>>, %arg6: memref<24x600xbf16, #tpu.memory_space<vmem>>, %arg7: memref<24x1xf32, #tpu.memory_space<vmem>>, %arg8: memref<24x216xbf16, #tpu.memory_space<vmem>>, %arg9: memref<24x1xf32, #tpu.memory_space<vmem>>, %arg10: memref<32x216xbf16, #tpu.memory_space<vmem>>, %arg11: memref<32x1xf32, #tpu.memory_space<vmem>>, %arg12: memref<63x123xbf16, #tpu.memory_space<vmem>>, %arg13: memref<99x152xbf16, #tpu.memory_space<vmem>>, %arg14: memref<24x66xbf16, #tpu.memory_space<vmem>>, %arg15: memref<48x38xbf16, #tpu.memory_space<vmem>>, %arg16: memref<1x32x24xf32, #tpu.memory_space<vmem>>, %arg17: memref<600x99xbf16, #tpu.memory_space<vmem>>, %arg18: memref<24x123xbf16, #tpu.memory_space<vmem>>, %arg19: memref<24x152xbf16, #tpu.memory_space<vmem>>, %arg20: memref<24x66xbf16, #tpu.memory_space<vmem>>, %arg21: memref<24x38xbf16, #tpu.memory_space<vmem>>) attributes {dimension_semantics = [#tpu.dimension_semantics<parallel>], iteration_bounds = array<i64: 2>, scalar_prefetch = 0 : i64, scratch_operands = 5 : i64, tpu.core_type = #tpu.core_type<tc>, window_params = [{transform_indices = @transform_0, window_bounds = array<i64: 1, 8, 332>}, {pipeline_mode = #tpu.pipeline_mode<synchronous>, transform_indices = @transform_1, window_bounds = array<i64: 24, 200>}, {pipeline_mode = #tpu.pipeline_mode<synchronous>, transform_indices = @transform_2, window_bounds = array<i64: 24, 1>}, {pipeline_mode = #tpu.pipeline_mode<synchronous>, transform_indices = @transform_3, window_bounds = array<i64: 24, 216>}, {pipeline_mode = #tpu.pipeline_mode<synchronous>, transform_indices = @transform_4, window_bounds = array<i64: 24, 1>}, {pipeline_mode = #tpu.pipeline_mode<synchronous>, transform_indices = @transform_5, window_bounds = array<i64: 24, 600>}, {pipeline_mode = #tpu.pipeline_mode<synchronous>, transform_indices = @transform_6, window_bounds = array<i64: 24, 1>}, {pipeline_mode = #tpu.pipeline_mode<synchronous>, transform_indices = @transform_7, window_bounds = array<i64: 24, 216>}, {pipeline_mode = #tpu.pipeline_mode<synchronous>, transform_indices = @transform_8, window_bounds = array<i64: 24, 1>}, {pipeline_mode = #tpu.pipeline_mode<synchronous>, transform_indices = @transform_9, window_bounds = array<i64: 32, 216>}, {pipeline_mode = #tpu.pipeline_mode<synchronous>, transform_indices = @transform_10, window_bounds = array<i64: 32, 1>}, {pipeline_mode = #tpu.pipeline_mode<synchronous>, transform_indices = @transform_11, window_bounds = array<i64: 63, 123>}, {pipeline_mode = #tpu.pipeline_mode<synchronous>, transform_indices = @transform_12, window_bounds = array<i64: 99, 152>}, {pipeline_mode = #tpu.pipeline_mode<synchronous>, transform_indices = @transform_13, window_bounds = array<i64: 24, 66>}, {pipeline_mode = #tpu.pipeline_mode<synchronous>, transform_indices = @transform_14, window_bounds = array<i64: 48, 38>}, {transform_indices = @transform_15, window_bounds = array<i64: 1, 32, 24>}]} {
    %c0 = arith.constant 0 : index
    %c0_0 = arith.constant 0 : index
    %c0_1 = arith.constant 0 : index
    %0 = vector.load %arg1[%c0, %c0_0, %c0_1] : memref<1x8x332xbf16, #tpu.memory_space<vmem>>, vector<1x8x63xbf16>
    %1 = vector.shape_cast %0 : vector<1x8x63xbf16> to vector<8x63xbf16>
    %c0_2 = arith.constant 0 : index
    %c0_3 = arith.constant 0 : index
    %2 = vector.load %arg17[%c0_2, %c0_3] : memref<600x99xbf16, #tpu.memory_space<vmem>>, vector<8x63xbf16>
    tpu.vector_store %arg17[%c0_2, %c0_3], %1 {strides = array<i32>} : memref<600x99xbf16, #tpu.memory_space<vmem>>, vector<8x63xbf16>,
    %c0_4 = arith.constant 0 : index
    %c0_5 = arith.constant 0 : index
    %c83 = arith.constant 83 : index
    %3 = vector.load %arg1[%c0_4, %c0_5, %c83] : memref<1x8x332xbf16, #tpu.memory_space<vmem>>, vector<1x8x63xbf16>
    %4 = vector.shape_cast %3 : vector<1x8x63xbf16> to vector<8x63xbf16>
    %c8 = arith.constant 8 : index
    %c0_6 = arith.constant 0 : index
    %5 = vector.load %arg17[%c8, %c0_6] : memref<600x99xbf16, #tpu.memory_space<vmem>>, vector<8x63xbf16>
    tpu.vector_store %arg17[%c8, %c0_6], %4 {strides = array<i32>} : memref<600x99xbf16, #tpu.memory_space<vmem>>, vector<8x63xbf16>,
    %c0_7 = arith.constant 0 : index
    %c0_8 = arith.constant 0 : index
    %c1 = arith.constant 1 : index
    %6 = vector.load %arg1[%c0_7, %c0_8, %c1] : memref<1x8x332xbf16, #tpu.memory_space<vmem>>, vector<1x8x63xbf16>
    %7 = vector.shape_cast %6 : vector<1x8x63xbf16> to vector<8x63xbf16>
    %c16 = arith.constant 16 : index
    %c0_9 = arith.constant 0 : index
    %8 = vector.load %arg17[%c16, %c0_9] : memref<600x99xbf16, #tpu.memory_space<vmem>>, vector<8x63xbf16>
    tpu.vector_store %arg17[%c16, %c0_9], %7 {strides = array<i32>} : memref<600x99xbf16, #tpu.memory_space<vmem>>, vector<8x63xbf16>,
    %c0_10 = arith.constant 0 : index
    %c0_11 = arith.constant 0 : index
    %c84 = arith.constant 84 : index
    %9 = vector.load %arg1[%c0_10, %c0_11, %c84] : memref<1x8x332xbf16, #tpu.memory_space<vmem>>, vector<1x8x63xbf16>
    %10 = vector.shape_cast %9 : vector<1x8x63xbf16> to vector<8x63xbf16>
    %c24 = arith.constant 24 : index
    %c0_12 = arith.constant 0 : index
    %11 = vector.load %arg17[%c24, %c0_12] : memref<600x99xbf16, #tpu.memory_space<vmem>>, vector<8x63xbf16>
    tpu.vector_store %arg17[%c24, %c0_12], %10 {strides = array<i32>} : memref<600x99xbf16, #tpu.memory_space<vmem>>, vector<8x63xbf16>,
    %c0_13 = arith.constant 0 : index
    %c0_14 = arith.constant 0 : index
    %c2 = arith.constant 2 : index
    %12 = vector.load %arg1[%c0_13, %c0_14, %c2] : memref<1x8x332xbf16, #tpu.memory_space<vmem>>, vector<1x8x63xbf16>
    %13 = vector.shape_cast %12 : vector<1x8x63xbf16> to vector<8x63xbf16>
    %c32 = arith.constant 32 : index
    %c0_15 = arith.constant 0 : index
    %14 = vector.load %arg17[%c32, %c0_15] : memref<600x99xbf16, #tpu.memory_space<vmem>>, vector<8x63xbf16>
    tpu.vector_store %arg17[%c32, %c0_15], %13 {strides = array<i32>} : memref<600x99xbf16, #tpu.memory_space<vmem>>, vector<8x63xbf16>,
    %c0_16 = arith.constant 0 : index
    %c0_17 = arith.constant 0 : index
    %c166 = arith.constant 166 : index
    %15 = vector.load %arg1[%c0_16, %c0_17, %c166] : memref<1x8x332xbf16, #tpu.memory_space<vmem>>, vector<1x8x63xbf16>
    %16 = vector.shape_cast %15 : vector<1x8x63xbf16> to vector<8x63xbf16>
    %c40 = arith.constant 40 : index
    %c0_18 = arith.constant 0 : index
    %17 = vector.load %arg17[%c40, %c0_18] : memref<600x99xbf16, #tpu.memory_space<vmem>>, vector<8x63xbf16>
    tpu.vector_store %arg17[%c40, %c0_18], %16 {strides = array<i32>} : memref<600x99xbf16, #tpu.memory_space<vmem>>, vector<8x63xbf16>,
    %c0_19 = arith.constant 0 : index
    %c0_20 = arith.constant 0 : index
    %c249 = arith.constant 249 : index
    %18 = vector.load %arg1[%c0_19, %c0_20, %c249] : memref<1x8x332xbf16, #tpu.memory_space<vmem>>, vector<1x8x63xbf16>
    %19 = vector.shape_cast %18 : vector<1x8x63xbf16> to vector<8x63xbf16>
    %c48 = arith.constant 48 : index
    %c0_21 = arith.constant 0 : index
    %20 = vector.load %arg17[%c48, %c0_21] : memref<600x99xbf16, #tpu.memory_space<vmem>>, vector<8x63xbf16>
    tpu.vector_store %arg17[%c48, %c0_21], %19 {strides = array<i32>} : memref<600x99xbf16, #tpu.memory_space<vmem>>, vector<8x63xbf16>,
    %c0_22 = arith.constant 0 : index
    %c0_23 = arith.constant 0 : index
    %c167 = arith.constant 167 : index
    %21 = vector.load %arg1[%c0_22, %c0_23, %c167] : memref<1x8x332xbf16, #tpu.memory_space<vmem>>, vector<1x8x63xbf16>
    %22 = vector.shape_cast %21 : vector<1x8x63xbf16> to vector<8x63xbf16>
    %c56 = arith.constant 56 : index
    %c0_24 = arith.constant 0 : index
    %23 = vector.load %arg17[%c56, %c0_24] : memref<600x99xbf16, #tpu.memory_space<vmem>>, vector<8x63xbf16>
    tpu.vector_store %arg17[%c56, %c0_24], %22 {strides = array<i32>} : memref<600x99xbf16, #tpu.memory_space<vmem>>, vector<8x63xbf16>,
    %c0_25 = arith.constant 0 : index
    %c0_26 = arith.constant 0 : index
    %c250 = arith.constant 250 : index
    %24 = vector.load %arg1[%c0_25, %c0_26, %c250] : memref<1x8x332xbf16, #tpu.memory_space<vmem>>, vector<1x8x63xbf16>
    %25 = vector.shape_cast %24 : vector<1x8x63xbf16> to vector<8x63xbf16>
    %c64 = arith.constant 64 : index
    %c0_27 = arith.constant 0 : index
    %26 = vector.load %arg17[%c64, %c0_27] : memref<600x99xbf16, #tpu.memory_space<vmem>>, vector<8x63xbf16>
    tpu.vector_store %arg17[%c64, %c0_27], %25 {strides = array<i32>} : memref<600x99xbf16, #tpu.memory_space<vmem>>, vector<8x63xbf16>,
    %c0_28 = arith.constant 0 : index
    %c0_29 = arith.constant 0 : index
    %c168 = arith.constant 168 : index
    %27 = vector.load %arg1[%c0_28, %c0_29, %c168] : memref<1x8x332xbf16, #tpu.memory_space<vmem>>, vector<1x8x63xbf16>
    %28 = vector.shape_cast %27 : vector<1x8x63xbf16> to vector<8x63xbf16>
    %c72 = arith.constant 72 : index
    %c0_30 = arith.constant 0 : index
    %29 = vector.load %arg17[%c72, %c0_30] : memref<600x99xbf16, #tpu.memory_space<vmem>>, vector<8x63xbf16>
    tpu.vector_store %arg17[%c72, %c0_30], %28 {strides = array<i32>} : memref<600x99xbf16, #tpu.memory_space<vmem>>, vector<8x63xbf16>,
    %c0_31 = arith.constant 0 : index
    %c0_32 = arith.constant 0 : index
    %c9 = arith.constant 9 : index
    %30 = vector.load %arg1[%c0_31, %c0_32, %c9] : memref<1x8x332xbf16, #tpu.memory_space<vmem>>, vector<1x8x63xbf16>
    %31 = vector.shape_cast %30 : vector<1x8x63xbf16> to vector<8x63xbf16>
    %c80 = arith.constant 80 : index
    %c0_33 = arith.constant 0 : index
    %32 = vector.load %arg17[%c80, %c0_33] : memref<600x99xbf16, #tpu.memory_space<vmem>>, vector<8x63xbf16>
    tpu.vector_store %arg17[%c80, %c0_33], %31 {strides = array<i32>} : memref<600x99xbf16, #tpu.memory_space<vmem>>, vector<8x63xbf16>,
    %c0_34 = arith.constant 0 : index
    %c0_35 = arith.constant 0 : index
    %c92 = arith.constant 92 : index
    %33 = vector.load %arg1[%c0_34, %c0_35, %c92] : memref<1x8x332xbf16, #tpu.memory_space<vmem>>, vector<1x8x63xbf16>
    %34 = vector.shape_cast %33 : vector<1x8x63xbf16> to vector<8x63xbf16>
    %c88 = arith.constant 88 : index
    %c0_36 = arith.constant 0 : index
    %35 = vector.load %arg17[%c88, %c0_36] : memref<600x99xbf16, #tpu.memory_space<vmem>>, vector<8x63xbf16>
    tpu.vector_store %arg17[%c88, %c0_36], %34 {strides = array<i32>} : memref<600x99xbf16, #tpu.memory_space<vmem>>, vector<8x63xbf16>,
    %c0_37 = arith.constant 0 : index
    %c0_38 = arith.constant 0 : index
    %c10 = arith.constant 10 : index
    %36 = vector.load %arg1[%c0_37, %c0_38, %c10] : memref<1x8x332xbf16, #tpu.memory_space<vmem>>, vector<1x8x63xbf16>
    %37 = vector.shape_cast %36 : vector<1x8x63xbf16> to vector<8x63xbf16>
    %c96 = arith.constant 96 : index
    %c0_39 = arith.constant 0 : index
    %38 = vector.load %arg17[%c96, %c0_39] : memref<600x99xbf16, #tpu.memory_space<vmem>>, vector<8x63xbf16>
    tpu.vector_store %arg17[%c96, %c0_39], %37 {strides = array<i32>} : memref<600x99xbf16, #tpu.memory_space<vmem>>, vector<8x63xbf16>,
    %c0_40 = arith.constant 0 : index
    %c0_41 = arith.constant 0 : index
    %c93 = arith.constant 93 : index
    %39 = vector.load %arg1[%c0_40, %c0_41, %c93] : memref<1x8x332xbf16, #tpu.memory_space<vmem>>, vector<1x8x63xbf16>
    %40 = vector.shape_cast %39 : vector<1x8x63xbf16> to vector<8x63xbf16>
    %c104 = arith.constant 104 : index
    %c0_42 = arith.constant 0 : index
    %41 = vector.load %arg17[%c104, %c0_42] : memref<600x99xbf16, #tpu.memory_space<vmem>>, vector<8x63xbf16>
    tpu.vector_store %arg17[%c104, %c0_42], %40 {strides = array<i32>} : memref<600x99xbf16, #tpu.memory_space<vmem>>, vector<8x63xbf16>,
    %c0_43 = arith.constant 0 : index
    %c0_44 = arith.constant 0 : index
    %c11 = arith.constant 11 : index
    %42 = vector.load %arg1[%c0_43, %c0_44, %c11] : memref<1x8x332xbf16, #tpu.memory_space<vmem>>, vector<1x8x63xbf16>
    %43 = vector.shape_cast %42 : vector<1x8x63xbf16> to vector<8x63xbf16>
    %c112 = arith.constant 112 : index
    %c0_45 = arith.constant 0 : index
    %44 = vector.load %arg17[%c112, %c0_45] : memref<600x99xbf16, #tpu.memory_space<vmem>>, vector<8x63xbf16>
    tpu.vector_store %arg17[%c112, %c0_45], %43 {strides = array<i32>} : memref<600x99xbf16, #tpu.memory_space<vmem>>, vector<8x63xbf16>,
    %c0_46 = arith.constant 0 : index
    %c0_47 = arith.constant 0 : index
    %c175 = arith.constant 175 : index
    %45 = vector.load %arg1[%c0_46, %c0_47, %c175] : memref<1x8x332xbf16, #tpu.memory_space<vmem>>, vector<1x8x63xbf16>
    %46 = vector.shape_cast %45 : vector<1x8x63xbf16> to vector<8x63xbf16>
    %c120 = arith.constant 120 : index
    %c0_48 = arith.constant 0 : index
    %47 = vector.load %arg17[%c120, %c0_48] : memref<600x99xbf16, #tpu.memory_space<vmem>>, vector<8x63xbf16>
    tpu.vector_store %arg17[%c120, %c0_48], %46 {strides = array<i32>} : memref<600x99xbf16, #tpu.memory_space<vmem>>, vector<8x63xbf16>,
    %c0_49 = arith.constant 0 : index
    %c0_50 = arith.constant 0 : index
    %c258 = arith.constant 258 : index
    %48 = vector.load %arg1[%c0_49, %c0_50, %c258] : memref<1x8x332xbf16, #tpu.memory_space<vmem>>, vector<1x8x63xbf16>
    %49 = vector.shape_cast %48 : vector<1x8x63xbf16> to vector<8x63xbf16>
    %c128 = arith.constant 128 : index
    %c0_51 = arith.constant 0 : index
    %50 = vector.load %arg17[%c128, %c0_51] : memref<600x99xbf16, #tpu.memory_space<vmem>>, vector<8x63xbf16>
    tpu.vector_store %arg17[%c128, %c0_51], %49 {strides = array<i32>} : memref<600x99xbf16, #tpu.memory_space<vmem>>, vector<8x63xbf16>,
    %c0_52 = arith.constant 0 : index
    %c0_53 = arith.constant 0 : index
    %c176 = arith.constant 176 : index
    %51 = vector.load %arg1[%c0_52, %c0_53, %c176] : memref<1x8x332xbf16, #tpu.memory_space<vmem>>, vector<1x8x63xbf16>
    %52 = vector.shape_cast %51 : vector<1x8x63xbf16> to vector<8x63xbf16>
    %c136 = arith.constant 136 : index
    %c0_54 = arith.constant 0 : index
    %53 = vector.load %arg17[%c136, %c0_54] : memref<600x99xbf16, #tpu.memory_space<vmem>>, vector<8x63xbf16>
    tpu.vector_store %arg17[%c136, %c0_54], %52 {strides = array<i32>} : memref<600x99xbf16, #tpu.memory_space<vmem>>, vector<8x63xbf16>,
    %c0_55 = arith.constant 0 : index
    %c0_56 = arith.constant 0 : index
    %c259 = arith.constant 259 : index
    %54 = vector.load %arg1[%c0_55, %c0_56, %c259] : memref<1x8x332xbf16, #tpu.memory_space<vmem>>, vector<1x8x63xbf16>
    %55 = vector.shape_cast %54 : vector<1x8x63xbf16> to vector<8x63xbf16>
    %c144 = arith.constant 144 : index
    %c0_57 = arith.constant 0 : index
    %56 = vector.load %arg17[%c144, %c0_57] : memref<600x99xbf16, #tpu.memory_space<vmem>>, vector<8x63xbf16>
    tpu.vector_store %arg17[%c144, %c0_57], %55 {strides = array<i32>} : memref<600x99xbf16, #tpu.memory_space<vmem>>, vector<8x63xbf16>,
    %c0_58 = arith.constant 0 : index
    %c0_59 = arith.constant 0 : index
    %c177 = arith.constant 177 : index
    %57 = vector.load %arg1[%c0_58, %c0_59, %c177] : memref<1x8x332xbf16, #tpu.memory_space<vmem>>, vector<1x8x63xbf16>
    %58 = vector.shape_cast %57 : vector<1x8x63xbf16> to vector<8x63xbf16>
    %c152 = arith.constant 152 : index
    %c0_60 = arith.constant 0 : index
    %59 = vector.load %arg17[%c152, %c0_60] : memref<600x99xbf16, #tpu.memory_space<vmem>>, vector<8x63xbf16>
    tpu.vector_store %arg17[%c152, %c0_60], %58 {strides = array<i32>} : memref<600x99xbf16, #tpu.memory_space<vmem>>, vector<8x63xbf16>,
    %c0_61 = arith.constant 0 : index
    %c0_62 = arith.constant 0 : index
    %c18 = arith.constant 18 : index
    %60 = vector.load %arg1[%c0_61, %c0_62, %c18] : memref<1x8x332xbf16, #tpu.memory_space<vmem>>, vector<1x8x63xbf16>
    %61 = vector.shape_cast %60 : vector<1x8x63xbf16> to vector<8x63xbf16>
    %c160 = arith.constant 160 : index
    %c0_63 = arith.constant 0 : index
    %62 = vector.load %arg17[%c160, %c0_63] : memref<600x99xbf16, #tpu.memory_space<vmem>>, vector<8x63xbf16>
    tpu.vector_store %arg17[%c160, %c0_63], %61 {strides = array<i32>} : memref<600x99xbf16, #tpu.memory_space<vmem>>, vector<8x63xbf16>,
    %c0_64 = arith.constant 0 : index
    %c0_65 = arith.constant 0 : index
    %c101 = arith.constant 101 : index
    %63 = vector.load %arg1[%c0_64, %c0_65, %c101] : memref<1x8x332xbf16, #tpu.memory_space<vmem>>, vector<1x8x63xbf16>
    %64 = vector.shape_cast %63 : vector<1x8x63xbf16> to vector<8x63xbf16>
    %c168_66 = arith.constant 168 : index
    %c0_67 = arith.constant 0 : index
    %65 = vector.load %arg17[%c168_66, %c0_67] : memref<600x99xbf16, #tpu.memory_space<vmem>>, vector<8x63xbf16>
    tpu.vector_store %arg17[%c168_66, %c0_67], %64 {strides = array<i32>} : memref<600x99xbf16, #tpu.memory_space<vmem>>, vector<8x63xbf16>,
    %c0_68 = arith.constant 0 : index
    %c0_69 = arith.constant 0 : index
    %c19 = arith.constant 19 : index
    %66 = vector.load %arg1[%c0_68, %c0_69, %c19] : memref<1x8x332xbf16, #tpu.memory_space<vmem>>, vector<1x8x63xbf16>
    %67 = vector.shape_cast %66 : vector<1x8x63xbf16> to vector<8x63xbf16>
    %c176_70 = arith.constant 176 : index
    %c0_71 = arith.constant 0 : index
    %68 = vector.load %arg17[%c176_70, %c0_71] : memref<600x99xbf16, #tpu.memory_space<vmem>>, vector<8x63xbf16>
    tpu.vector_store %arg17[%c176_70, %c0_71], %67 {strides = array<i32>} : memref<600x99xbf16, #tpu.memory_space<vmem>>, vector<8x63xbf16>,
    %c0_72 = arith.constant 0 : index
    %c0_73 = arith.constant 0 : index
    %c102 = arith.constant 102 : index
    %69 = vector.load %arg1[%c0_72, %c0_73, %c102] : memref<1x8x332xbf16, #tpu.memory_space<vmem>>, vector<1x8x63xbf16>
    %70 = vector.shape_cast %69 : vector<1x8x63xbf16> to vector<8x63xbf16>
    %c184 = arith.constant 184 : index
    %c0_74 = arith.constant 0 : index
    %71 = vector.load %arg17[%c184, %c0_74] : memref<600x99xbf16, #tpu.memory_space<vmem>>, vector<8x63xbf16>
    tpu.vector_store %arg17[%c184, %c0_74], %70 {strides = array<i32>} : memref<600x99xbf16, #tpu.memory_space<vmem>>, vector<8x63xbf16>,
    %c0_75 = arith.constant 0 : index
    %c0_76 = arith.constant 0 : index
    %c20 = arith.constant 20 : index
    %72 = vector.load %arg1[%c0_75, %c0_76, %c20] : memref<1x8x332xbf16, #tpu.memory_space<vmem>>, vector<1x8x63xbf16>
    %73 = vector.shape_cast %72 : vector<1x8x63xbf16> to vector<8x63xbf16>
    %c192 = arith.constant 192 : index
    %c0_77 = arith.constant 0 : index
    %74 = vector.load %arg17[%c192, %c0_77] : memref<600x99xbf16, #tpu.memory_space<vmem>>, vector<8x63xbf16>
    tpu.vector_store %arg17[%c192, %c0_77], %73 {strides = array<i32>} : memref<600x99xbf16, #tpu.memory_space<vmem>>, vector<8x63xbf16>,
    %c0_78 = arith.constant 0 : index
    %c0_79 = arith.constant 0 : index
    %75 = vector.load %arg2[%c0_78, %c0_79] : memref<24x200xbf16, #tpu.memory_space<vmem>>, vector<24x200xbf16>
    %c0_80 = arith.constant 0 : index
    %c0_81 = arith.constant 0 : index
    %76 = vector.load %arg17[%c0_80, %c0_81] : memref<600x99xbf16, #tpu.memory_space<vmem>>, vector<200x63xbf16>
    %cst = arith.constant dense<0.000000e+00> : vector<24x63xf32>
    %77 = tpu.matmul %75, %76, %cst {dimension_numbers = #tpu.dot_dimension_numbers<[1], [0], [0], [1], [0, 0, 1, 1], [], []>} : vector<24x200xbf16>, vector<200x63xbf16>, vector<24x63xf32> -> vector<24x63xf32>
    %c0_82 = arith.constant 0 : index
    %c0_83 = arith.constant 0 : index
    %78 = vector.load %arg3[%c0_82, %c0_83] : memref<24x1xf32, #tpu.memory_space<vmem>>, vector<24x1xf32>
    %79 = vector.broadcast %78 : vector<24x1xf32> to vector<24x63xf32>
    %80 = arith.addf %77, %79 : vector<24x63xf32>
    %cst_84 = arith.constant 0.000000e+00 : f32
    %81 = vector.broadcast %cst_84 : f32 to vector<24x63xf32>
    %82 = arith.maximumf %80, %81 : vector<24x63xf32>
    %83 = arith.truncf %82 : vector<24x63xf32> to vector<24x63xbf16>
    %c0_85 = arith.constant 0 : index
    %c0_86 = arith.constant 0 : index
    %84 = vector.load %arg12[%c0_85, %c0_86] : memref<63x123xbf16, #tpu.memory_space<vmem>>, vector<63x123xbf16>
    %cst_87 = arith.constant dense<0.000000e+00> : vector<24x123xf32>
    %85 = tpu.matmul %83, %84, %cst_87 {dimension_numbers = #tpu.dot_dimension_numbers<[1], [0], [0], [1], [0, 0, 1, 1], [], []>} : vector<24x63xbf16>, vector<63x123xbf16>, vector<24x123xf32> -> vector<24x123xf32>
    %86 = arith.truncf %85 : vector<24x123xf32> to vector<24x123xbf16>
    %c0_88 = arith.constant 0 : index
    %c0_89 = arith.constant 0 : index
    %87 = vector.load %arg18[%c0_88, %c0_89] : memref<24x123xbf16, #tpu.memory_space<vmem>>, vector<24x123xbf16>
    tpu.vector_store %arg18[%c0_88, %c0_89], %86 {strides = array<i32>} : memref<24x123xbf16, #tpu.memory_space<vmem>>, vector<24x123xbf16>,
    %c0_90 = arith.constant 0 : index
    %c0_91 = arith.constant 0 : index
    %88 = vector.load %arg18[%c0_90, %c0_91] : memref<24x123xbf16, #tpu.memory_space<vmem>>, vector<24x99xbf16>
    %c0_92 = arith.constant 0 : index
    %c0_93 = arith.constant 0 : index
    %89 = vector.load %arg17[%c0_92, %c0_93] : memref<600x99xbf16, #tpu.memory_space<vmem>>, vector<24x99xbf16>
    tpu.vector_store %arg17[%c0_92, %c0_93], %88 {strides = array<i32>} : memref<600x99xbf16, #tpu.memory_space<vmem>>, vector<24x99xbf16>,
    %c0_94 = arith.constant 0 : index
    %c1_95 = arith.constant 1 : index
    %90 = vector.load %arg18[%c0_94, %c1_95] : memref<24x123xbf16, #tpu.memory_space<vmem>>, vector<24x99xbf16>
    %c24_96 = arith.constant 24 : index
    %c0_97 = arith.constant 0 : index
    %91 = vector.load %arg17[%c24_96, %c0_97] : memref<600x99xbf16, #tpu.memory_space<vmem>>, vector<24x99xbf16>
    tpu.vector_store %arg17[%c24_96, %c0_97], %90 {strides = array<i32>} : memref<600x99xbf16, #tpu.memory_space<vmem>>, vector<24x99xbf16>,
    %c0_98 = arith.constant 0 : index
    %c2_99 = arith.constant 2 : index
    %92 = vector.load %arg18[%c0_98, %c2_99] : memref<24x123xbf16, #tpu.memory_space<vmem>>, vector<24x99xbf16>
    %c48_100 = arith.constant 48 : index
    %c0_101 = arith.constant 0 : index
    %93 = vector.load %arg17[%c48_100, %c0_101] : memref<600x99xbf16, #tpu.memory_space<vmem>>, vector<24x99xbf16>
    tpu.vector_store %arg17[%c48_100, %c0_101], %92 {strides = array<i32>} : memref<600x99xbf16, #tpu.memory_space<vmem>>, vector<24x99xbf16>,
    %c0_102 = arith.constant 0 : index
    %c11_103 = arith.constant 11 : index
    %94 = vector.load %arg18[%c0_102, %c11_103] : memref<24x123xbf16, #tpu.memory_space<vmem>>, vector<24x99xbf16>
    %c72_104 = arith.constant 72 : index
    %c0_105 = arith.constant 0 : index
    %95 = vector.load %arg17[%c72_104, %c0_105] : memref<600x99xbf16, #tpu.memory_space<vmem>>, vector<24x99xbf16>
    tpu.vector_store %arg17[%c72_104, %c0_105], %94 {strides = array<i32>} : memref<600x99xbf16, #tpu.memory_space<vmem>>, vector<24x99xbf16>,
    %c0_106 = arith.constant 0 : index
    %c12 = arith.constant 12 : index
    %96 = vector.load %arg18[%c0_106, %c12] : memref<24x123xbf16, #tpu.memory_space<vmem>>, vector<24x99xbf16>
    %c96_107 = arith.constant 96 : index
    %c0_108 = arith.constant 0 : index
    %97 = vector.load %arg17[%c96_107, %c0_108] : memref<600x99xbf16, #tpu.memory_space<vmem>>, vector<24x99xbf16>
    tpu.vector_store %arg17[%c96_107, %c0_108], %96 {strides = array<i32>} : memref<600x99xbf16, #tpu.memory_space<vmem>>, vector<24x99xbf16>,
    %c0_109 = arith.constant 0 : index
    %c13 = arith.constant 13 : index
    %98 = vector.load %arg18[%c0_109, %c13] : memref<24x123xbf16, #tpu.memory_space<vmem>>, vector<24x99xbf16>
    %c120_110 = arith.constant 120 : index
    %c0_111 = arith.constant 0 : index
    %99 = vector.load %arg17[%c120_110, %c0_111] : memref<600x99xbf16, #tpu.memory_space<vmem>>, vector<24x99xbf16>
    tpu.vector_store %arg17[%c120_110, %c0_111], %98 {strides = array<i32>} : memref<600x99xbf16, #tpu.memory_space<vmem>>, vector<24x99xbf16>,
    %c0_112 = arith.constant 0 : index
    %c22 = arith.constant 22 : index
    %100 = vector.load %arg18[%c0_112, %c22] : memref<24x123xbf16, #tpu.memory_space<vmem>>, vector<24x99xbf16>
    %c144_113 = arith.constant 144 : index
    %c0_114 = arith.constant 0 : index
    %101 = vector.load %arg17[%c144_113, %c0_114] : memref<600x99xbf16, #tpu.memory_space<vmem>>, vector<24x99xbf16>
    tpu.vector_store %arg17[%c144_113, %c0_114], %100 {strides = array<i32>} : memref<600x99xbf16, #tpu.memory_space<vmem>>, vector<24x99xbf16>,
    %c0_115 = arith.constant 0 : index
    %c23 = arith.constant 23 : index
    %102 = vector.load %arg18[%c0_115, %c23] : memref<24x123xbf16, #tpu.memory_space<vmem>>, vector<24x99xbf16>
    %c168_116 = arith.constant 168 : index
    %c0_117 = arith.constant 0 : index
    %103 = vector.load %arg17[%c168_116, %c0_117] : memref<600x99xbf16, #tpu.memory_space<vmem>>, vector<24x99xbf16>
    tpu.vector_store %arg17[%c168_116, %c0_117], %102 {strides = array<i32>} : memref<600x99xbf16, #tpu.memory_space<vmem>>, vector<24x99xbf16>,
    %c0_118 = arith.constant 0 : index
    %c24_119 = arith.constant 24 : index
    %104 = vector.load %arg18[%c0_118, %c24_119] : memref<24x123xbf16, #tpu.memory_space<vmem>>, vector<24x99xbf16>
    %c192_120 = arith.constant 192 : index
    %c0_121 = arith.constant 0 : index
    %105 = vector.load %arg17[%c192_120, %c0_121] : memref<600x99xbf16, #tpu.memory_space<vmem>>, vector<24x99xbf16>
    tpu.vector_store %arg17[%c192_120, %c0_121], %104 {strides = array<i32>} : memref<600x99xbf16, #tpu.memory_space<vmem>>, vector<24x99xbf16>,
    %c0_122 = arith.constant 0 : index
    %c0_123 = arith.constant 0 : index
    %106 = vector.load %arg4[%c0_122, %c0_123] : memref<24x216xbf16, #tpu.memory_space<vmem>>, vector<24x216xbf16>
    %c0_124 = arith.constant 0 : index
    %c0_125 = arith.constant 0 : index
    %107 = vector.load %arg17[%c0_124, %c0_125] : memref<600x99xbf16, #tpu.memory_space<vmem>>, vector<216x99xbf16>
    %cst_126 = arith.constant dense<0.000000e+00> : vector<24x99xf32>
    %108 = tpu.matmul %106, %107, %cst_126 {dimension_numbers = #tpu.dot_dimension_numbers<[1], [0], [0], [1], [0, 0, 1, 1], [], []>} : vector<24x216xbf16>, vector<216x99xbf16>, vector<24x99xf32> -> vector<24x99xf32>
    %c0_127 = arith.constant 0 : index
    %c0_128 = arith.constant 0 : index
    %109 = vector.load %arg5[%c0_127, %c0_128] : memref<24x1xf32, #tpu.memory_space<vmem>>, vector<24x1xf32>
    %110 = vector.broadcast %109 : vector<24x1xf32> to vector<24x99xf32>
    %111 = arith.addf %108, %110 : vector<24x99xf32>
    %cst_129 = arith.constant 0.000000e+00 : f32
    %112 = vector.broadcast %cst_129 : f32 to vector<24x99xf32>
    %113 = arith.maximumf %111, %112 : vector<24x99xf32>
    %114 = arith.truncf %113 : vector<24x99xf32> to vector<24x99xbf16>
    %c0_130 = arith.constant 0 : index
    %c0_131 = arith.constant 0 : index
    %115 = vector.load %arg13[%c0_130, %c0_131] : memref<99x152xbf16, #tpu.memory_space<vmem>>, vector<99x152xbf16>
    %cst_132 = arith.constant dense<0.000000e+00> : vector<24x152xf32>
    %116 = tpu.matmul %114, %115, %cst_132 {dimension_numbers = #tpu.dot_dimension_numbers<[1], [0], [0], [1], [0, 0, 1, 1], [], []>} : vector<24x99xbf16>, vector<99x152xbf16>, vector<24x152xf32> -> vector<24x152xf32>
    %117 = arith.truncf %116 : vector<24x152xf32> to vector<24x152xbf16>
    %c0_133 = arith.constant 0 : index
    %c0_134 = arith.constant 0 : index
    %118 = vector.load %arg19[%c0_133, %c0_134] : memref<24x152xbf16, #tpu.memory_space<vmem>>, vector<24x152xbf16>
    tpu.vector_store %arg19[%c0_133, %c0_134], %117 {strides = array<i32>} : memref<24x152xbf16, #tpu.memory_space<vmem>>, vector<24x152xbf16>,
    %c0_135 = arith.constant 0 : index
    %c0_136 = arith.constant 0 : index
    %119 = vector.load %arg19[%c0_135, %c0_136] : memref<24x152xbf16, #tpu.memory_space<vmem>>, vector<24x24xbf16>
    %c0_137 = arith.constant 0 : index
    %c0_138 = arith.constant 0 : index
    %120 = vector.load %arg17[%c0_137, %c0_138] : memref<600x99xbf16, #tpu.memory_space<vmem>>, vector<24x24xbf16>
    tpu.vector_store %arg17[%c0_137, %c0_138], %119 {strides = array<i32>} : memref<600x99xbf16, #tpu.memory_space<vmem>>, vector<24x24xbf16>,
    %c0_139 = arith.constant 0 : index
    %c38 = arith.constant 38 : index
    %121 = vector.load %arg19[%c0_139, %c38] : memref<24x152xbf16, #tpu.memory_space<vmem>>, vector<24x24xbf16>
    %c24_140 = arith.constant 24 : index
    %c0_141 = arith.constant 0 : index
    %122 = vector.load %arg17[%c24_140, %c0_141] : memref<600x99xbf16, #tpu.memory_space<vmem>>, vector<24x24xbf16>
    tpu.vector_store %arg17[%c24_140, %c0_141], %121 {strides = array<i32>} : memref<600x99xbf16, #tpu.memory_space<vmem>>, vector<24x24xbf16>,
    %c0_142 = arith.constant 0 : index
    %c1_143 = arith.constant 1 : index
    %123 = vector.load %arg19[%c0_142, %c1_143] : memref<24x152xbf16, #tpu.memory_space<vmem>>, vector<24x24xbf16>
    %c48_144 = arith.constant 48 : index
    %c0_145 = arith.constant 0 : index
    %124 = vector.load %arg17[%c48_144, %c0_145] : memref<600x99xbf16, #tpu.memory_space<vmem>>, vector<24x24xbf16>
    tpu.vector_store %arg17[%c48_144, %c0_145], %123 {strides = array<i32>} : memref<600x99xbf16, #tpu.memory_space<vmem>>, vector<24x24xbf16>,
    %c0_146 = arith.constant 0 : index
    %c39 = arith.constant 39 : index
    %125 = vector.load %arg19[%c0_146, %c39] : memref<24x152xbf16, #tpu.memory_space<vmem>>, vector<24x24xbf16>
    %c72_147 = arith.constant 72 : index
    %c0_148 = arith.constant 0 : index
    %126 = vector.load %arg17[%c72_147, %c0_148] : memref<600x99xbf16, #tpu.memory_space<vmem>>, vector<24x24xbf16>
    tpu.vector_store %arg17[%c72_147, %c0_148], %125 {strides = array<i32>} : memref<600x99xbf16, #tpu.memory_space<vmem>>, vector<24x24xbf16>,
    %c0_149 = arith.constant 0 : index
    %c2_150 = arith.constant 2 : index
    %127 = vector.load %arg19[%c0_149, %c2_150] : memref<24x152xbf16, #tpu.memory_space<vmem>>, vector<24x24xbf16>
    %c96_151 = arith.constant 96 : index
    %c0_152 = arith.constant 0 : index
    %128 = vector.load %arg17[%c96_151, %c0_152] : memref<600x99xbf16, #tpu.memory_space<vmem>>, vector<24x24xbf16>
    tpu.vector_store %arg17[%c96_151, %c0_152], %127 {strides = array<i32>} : memref<600x99xbf16, #tpu.memory_space<vmem>>, vector<24x24xbf16>,
    %c0_153 = arith.constant 0 : index
    %c76 = arith.constant 76 : index
    %129 = vector.load %arg19[%c0_153, %c76] : memref<24x152xbf16, #tpu.memory_space<vmem>>, vector<24x24xbf16>
    %c120_154 = arith.constant 120 : index
    %c0_155 = arith.constant 0 : index
    %130 = vector.load %arg17[%c120_154, %c0_155] : memref<600x99xbf16, #tpu.memory_space<vmem>>, vector<24x24xbf16>
    tpu.vector_store %arg17[%c120_154, %c0_155], %129 {strides = array<i32>} : memref<600x99xbf16, #tpu.memory_space<vmem>>, vector<24x24xbf16>,
    %c0_156 = arith.constant 0 : index
    %c114 = arith.constant 114 : index
    %131 = vector.load %arg19[%c0_156, %c114] : memref<24x152xbf16, #tpu.memory_space<vmem>>, vector<24x24xbf16>
    %c144_157 = arith.constant 144 : index
    %c0_158 = arith.constant 0 : index
    %132 = vector.load %arg17[%c144_157, %c0_158] : memref<600x99xbf16, #tpu.memory_space<vmem>>, vector<24x24xbf16>
    tpu.vector_store %arg17[%c144_157, %c0_158], %131 {strides = array<i32>} : memref<600x99xbf16, #tpu.memory_space<vmem>>, vector<24x24xbf16>,
    %c0_159 = arith.constant 0 : index
    %c77 = arith.constant 77 : index
    %133 = vector.load %arg19[%c0_159, %c77] : memref<24x152xbf16, #tpu.memory_space<vmem>>, vector<24x24xbf16>
    %c168_160 = arith.constant 168 : index
    %c0_161 = arith.constant 0 : index
    %134 = vector.load %arg17[%c168_160, %c0_161] : memref<600x99xbf16, #tpu.memory_space<vmem>>, vector<24x24xbf16>
    tpu.vector_store %arg17[%c168_160, %c0_161], %133 {strides = array<i32>} : memref<600x99xbf16, #tpu.memory_space<vmem>>, vector<24x24xbf16>,
    %c0_162 = arith.constant 0 : index
    %c115 = arith.constant 115 : index
    %135 = vector.load %arg19[%c0_162, %c115] : memref<24x152xbf16, #tpu.memory_space<vmem>>, vector<24x24xbf16>
    %c192_163 = arith.constant 192 : index
    %c0_164 = arith.constant 0 : index
    %136 = vector.load %arg17[%c192_163, %c0_164] : memref<600x99xbf16, #tpu.memory_space<vmem>>, vector<24x24xbf16>
    tpu.vector_store %arg17[%c192_163, %c0_164], %135 {strides = array<i32>} : memref<600x99xbf16, #tpu.memory_space<vmem>>, vector<24x24xbf16>,
    %c0_165 = arith.constant 0 : index
    %c78 = arith.constant 78 : index
    %137 = vector.load %arg19[%c0_165, %c78] : memref<24x152xbf16, #tpu.memory_space<vmem>>, vector<24x24xbf16>
    %c216 = arith.constant 216 : index
    %c0_166 = arith.constant 0 : index
    %138 = vector.load %arg17[%c216, %c0_166] : memref<600x99xbf16, #tpu.memory_space<vmem>>, vector<24x24xbf16>
    tpu.vector_store %arg17[%c216, %c0_166], %137 {strides = array<i32>} : memref<600x99xbf16, #tpu.memory_space<vmem>>, vector<24x24xbf16>,
    %c0_167 = arith.constant 0 : index
    %c6 = arith.constant 6 : index
    %139 = vector.load %arg19[%c0_167, %c6] : memref<24x152xbf16, #tpu.memory_space<vmem>>, vector<24x24xbf16>
    %c240 = arith.constant 240 : index
    %c0_168 = arith.constant 0 : index
    %140 = vector.load %arg17[%c240, %c0_168] : memref<600x99xbf16, #tpu.memory_space<vmem>>, vector<24x24xbf16>
    tpu.vector_store %arg17[%c240, %c0_168], %139 {strides = array<i32>} : memref<600x99xbf16, #tpu.memory_space<vmem>>, vector<24x24xbf16>,
    %c0_169 = arith.constant 0 : index
    %c44 = arith.constant 44 : index
    %141 = vector.load %arg19[%c0_169, %c44] : memref<24x152xbf16, #tpu.memory_space<vmem>>, vector<24x24xbf16>
    %c264 = arith.constant 264 : index
    %c0_170 = arith.constant 0 : index
    %142 = vector.load %arg17[%c264, %c0_170] : memref<600x99xbf16, #tpu.memory_space<vmem>>, vector<24x24xbf16>
    tpu.vector_store %arg17[%c264, %c0_170], %141 {strides = array<i32>} : memref<600x99xbf16, #tpu.memory_space<vmem>>, vector<24x24xbf16>,
    %c0_171 = arith.constant 0 : index
    %c7 = arith.constant 7 : index
    %143 = vector.load %arg19[%c0_171, %c7] : memref<24x152xbf16, #tpu.memory_space<vmem>>, vector<24x24xbf16>
    %c288 = arith.constant 288 : index
    %c0_172 = arith.constant 0 : index
    %144 = vector.load %arg17[%c288, %c0_172] : memref<600x99xbf16, #tpu.memory_space<vmem>>, vector<24x24xbf16>
    tpu.vector_store %arg17[%c288, %c0_172], %143 {strides = array<i32>} : memref<600x99xbf16, #tpu.memory_space<vmem>>, vector<24x24xbf16>,
    %c0_173 = arith.constant 0 : index
    %c45 = arith.constant 45 : index
    %145 = vector.load %arg19[%c0_173, %c45] : memref<24x152xbf16, #tpu.memory_space<vmem>>, vector<24x24xbf16>
    %c312 = arith.constant 312 : index
    %c0_174 = arith.constant 0 : index
    %146 = vector.load %arg17[%c312, %c0_174] : memref<600x99xbf16, #tpu.memory_space<vmem>>, vector<24x24xbf16>
    tpu.vector_store %arg17[%c312, %c0_174], %145 {strides = array<i32>} : memref<600x99xbf16, #tpu.memory_space<vmem>>, vector<24x24xbf16>,
    %c0_175 = arith.constant 0 : index
    %c8_176 = arith.constant 8 : index
    %147 = vector.load %arg19[%c0_175, %c8_176] : memref<24x152xbf16, #tpu.memory_space<vmem>>, vector<24x24xbf16>
    %c336 = arith.constant 336 : index
    %c0_177 = arith.constant 0 : index
    %148 = vector.load %arg17[%c336, %c0_177] : memref<600x99xbf16, #tpu.memory_space<vmem>>, vector<24x24xbf16>
    tpu.vector_store %arg17[%c336, %c0_177], %147 {strides = array<i32>} : memref<600x99xbf16, #tpu.memory_space<vmem>>, vector<24x24xbf16>,
    %c0_178 = arith.constant 0 : index
    %c82 = arith.constant 82 : index
    %149 = vector.load %arg19[%c0_178, %c82] : memref<24x152xbf16, #tpu.memory_space<vmem>>, vector<24x24xbf16>
    %c360 = arith.constant 360 : index
    %c0_179 = arith.constant 0 : index
    %150 = vector.load %arg17[%c360, %c0_179] : memref<600x99xbf16, #tpu.memory_space<vmem>>, vector<24x24xbf16>
    tpu.vector_store %arg17[%c360, %c0_179], %149 {strides = array<i32>} : memref<600x99xbf16, #tpu.memory_space<vmem>>, vector<24x24xbf16>,
    %c0_180 = arith.constant 0 : index
    %c120_181 = arith.constant 120 : index
    %151 = vector.load %arg19[%c0_180, %c120_181] : memref<24x152xbf16, #tpu.memory_space<vmem>>, vector<24x24xbf16>
    %c384 = arith.constant 384 : index
    %c0_182 = arith.constant 0 : index
    %152 = vector.load %arg17[%c384, %c0_182] : memref<600x99xbf16, #tpu.memory_space<vmem>>, vector<24x24xbf16>
    tpu.vector_store %arg17[%c384, %c0_182], %151 {strides = array<i32>} : memref<600x99xbf16, #tpu.memory_space<vmem>>, vector<24x24xbf16>,
    %c0_183 = arith.constant 0 : index
    %c83_184 = arith.constant 83 : index
    %153 = vector.load %arg19[%c0_183, %c83_184] : memref<24x152xbf16, #tpu.memory_space<vmem>>, vector<24x24xbf16>
    %c408 = arith.constant 408 : index
    %c0_185 = arith.constant 0 : index
    %154 = vector.load %arg17[%c408, %c0_185] : memref<600x99xbf16, #tpu.memory_space<vmem>>, vector<24x24xbf16>
    tpu.vector_store %arg17[%c408, %c0_185], %153 {strides = array<i32>} : memref<600x99xbf16, #tpu.memory_space<vmem>>, vector<24x24xbf16>,
    %c0_186 = arith.constant 0 : index
    %c121 = arith.constant 121 : index
    %155 = vector.load %arg19[%c0_186, %c121] : memref<24x152xbf16, #tpu.memory_space<vmem>>, vector<24x24xbf16>
    %c432 = arith.constant 432 : index
    %c0_187 = arith.constant 0 : index
    %156 = vector.load %arg17[%c432, %c0_187] : memref<600x99xbf16, #tpu.memory_space<vmem>>, vector<24x24xbf16>
    tpu.vector_store %arg17[%c432, %c0_187], %155 {strides = array<i32>} : memref<600x99xbf16, #tpu.memory_space<vmem>>, vector<24x24xbf16>,
    %c0_188 = arith.constant 0 : index
    %c84_189 = arith.constant 84 : index
    %157 = vector.load %arg19[%c0_188, %c84_189] : memref<24x152xbf16, #tpu.memory_space<vmem>>, vector<24x24xbf16>
    %c456 = arith.constant 456 : index
    %c0_190 = arith.constant 0 : index
    %158 = vector.load %arg17[%c456, %c0_190] : memref<600x99xbf16, #tpu.memory_space<vmem>>, vector<24x24xbf16>
    tpu.vector_store %arg17[%c456, %c0_190], %157 {strides = array<i32>} : memref<600x99xbf16, #tpu.memory_space<vmem>>, vector<24x24xbf16>,
    %c0_191 = arith.constant 0 : index
    %c12_192 = arith.constant 12 : index
    %159 = vector.load %arg19[%c0_191, %c12_192] : memref<24x152xbf16, #tpu.memory_space<vmem>>, vector<24x24xbf16>
    %c480 = arith.constant 480 : index
    %c0_193 = arith.constant 0 : index
    %160 = vector.load %arg17[%c480, %c0_193] : memref<600x99xbf16, #tpu.memory_space<vmem>>, vector<24x24xbf16>
    tpu.vector_store %arg17[%c480, %c0_193], %159 {strides = array<i32>} : memref<600x99xbf16, #tpu.memory_space<vmem>>, vector<24x24xbf16>,
    %c0_194 = arith.constant 0 : index
    %c50 = arith.constant 50 : index
    %161 = vector.load %arg19[%c0_194, %c50] : memref<24x152xbf16, #tpu.memory_space<vmem>>, vector<24x24xbf16>
    %c504 = arith.constant 504 : index
    %c0_195 = arith.constant 0 : index
    %162 = vector.load %arg17[%c504, %c0_195] : memref<600x99xbf16, #tpu.memory_space<vmem>>, vector<24x24xbf16>
    tpu.vector_store %arg17[%c504, %c0_195], %161 {strides = array<i32>} : memref<600x99xbf16, #tpu.memory_space<vmem>>, vector<24x24xbf16>,
    %c0_196 = arith.constant 0 : index
    %c13_197 = arith.constant 13 : index
    %163 = vector.load %arg19[%c0_196, %c13_197] : memref<24x152xbf16, #tpu.memory_space<vmem>>, vector<24x24xbf16>
    %c528 = arith.constant 528 : index
    %c0_198 = arith.constant 0 : index
    %164 = vector.load %arg17[%c528, %c0_198] : memref<600x99xbf16, #tpu.memory_space<vmem>>, vector<24x24xbf16>
    tpu.vector_store %arg17[%c528, %c0_198], %163 {strides = array<i32>} : memref<600x99xbf16, #tpu.memory_space<vmem>>, vector<24x24xbf16>,
    %c0_199 = arith.constant 0 : index
    %c51 = arith.constant 51 : index
    %165 = vector.load %arg19[%c0_199, %c51] : memref<24x152xbf16, #tpu.memory_space<vmem>>, vector<24x24xbf16>
    %c552 = arith.constant 552 : index
    %c0_200 = arith.constant 0 : index
    %166 = vector.load %arg17[%c552, %c0_200] : memref<600x99xbf16, #tpu.memory_space<vmem>>, vector<24x24xbf16>
    tpu.vector_store %arg17[%c552, %c0_200], %165 {strides = array<i32>} : memref<600x99xbf16, #tpu.memory_space<vmem>>, vector<24x24xbf16>,
    %c0_201 = arith.constant 0 : index
    %c14 = arith.constant 14 : index
    %167 = vector.load %arg19[%c0_201, %c14] : memref<24x152xbf16, #tpu.memory_space<vmem>>, vector<24x24xbf16>
    %c576 = arith.constant 576 : index
    %c0_202 = arith.constant 0 : index
    %168 = vector.load %arg17[%c576, %c0_202] : memref<600x99xbf16, #tpu.memory_space<vmem>>, vector<24x24xbf16>
    tpu.vector_store %arg17[%c576, %c0_202], %167 {strides = array<i32>} : memref<600x99xbf16, #tpu.memory_space<vmem>>, vector<24x24xbf16>,
    %c0_203 = arith.constant 0 : index
    %c0_204 = arith.constant 0 : index
    %169 = vector.load %arg6[%c0_203, %c0_204] : memref<24x600xbf16, #tpu.memory_space<vmem>>, vector<24x600xbf16>
    %c0_205 = arith.constant 0 : index
    %c0_206 = arith.constant 0 : index
    %170 = vector.load %arg17[%c0_205, %c0_206] : memref<600x99xbf16, #tpu.memory_space<vmem>>, vector<600x24xbf16>
    %cst_207 = arith.constant dense<0.000000e+00> : vector<24x24xf32>
    %171 = tpu.matmul %169, %170, %cst_207 {dimension_numbers = #tpu.dot_dimension_numbers<[1], [0], [0], [1], [0, 0, 1, 1], [], []>} : vector<24x600xbf16>, vector<600x24xbf16>, vector<24x24xf32> -> vector<24x24xf32>
    %c0_208 = arith.constant 0 : index
    %c0_209 = arith.constant 0 : index
    %172 = vector.load %arg7[%c0_208, %c0_209] : memref<24x1xf32, #tpu.memory_space<vmem>>, vector<24x1xf32>
    %173 = vector.broadcast %172 : vector<24x1xf32> to vector<24x24xf32>
    %174 = arith.addf %171, %173 : vector<24x24xf32>
    %cst_210 = arith.constant 0.000000e+00 : f32
    %175 = vector.broadcast %cst_210 : f32 to vector<24x24xf32>
    %176 = arith.maximumf %174, %175 : vector<24x24xf32>
    %177 = arith.truncf %176 : vector<24x24xf32> to vector<24x24xbf16>
    %c0_211 = arith.constant 0 : index
    %c0_212 = arith.constant 0 : index
    %178 = vector.load %arg14[%c0_211, %c0_212] : memref<24x66xbf16, #tpu.memory_space<vmem>>, vector<24x66xbf16>
    %cst_213 = arith.constant dense<0.000000e+00> : vector<24x66xf32>
    %179 = tpu.matmul %177, %178, %cst_213 {dimension_numbers = #tpu.dot_dimension_numbers<[1], [0], [0], [1], [0, 0, 1, 1], [], []>} : vector<24x24xbf16>, vector<24x66xbf16>, vector<24x66xf32> -> vector<24x66xf32>
    %180 = arith.truncf %179 : vector<24x66xf32> to vector<24x66xbf16>
    %c0_214 = arith.constant 0 : index
    %c0_215 = arith.constant 0 : index
    %181 = vector.load %arg20[%c0_214, %c0_215] : memref<24x66xbf16, #tpu.memory_space<vmem>>, vector<24x66xbf16>
    tpu.vector_store %arg20[%c0_214, %c0_215], %180 {strides = array<i32>} : memref<24x66xbf16, #tpu.memory_space<vmem>>, vector<24x66xbf16>,
    %c0_216 = arith.constant 0 : index
    %c0_217 = arith.constant 0 : index
    %182 = vector.load %arg20[%c0_216, %c0_217] : memref<24x66xbf16, #tpu.memory_space<vmem>>, vector<24x48xbf16>
    %c0_218 = arith.constant 0 : index
    %c0_219 = arith.constant 0 : index
    %183 = vector.load %arg17[%c0_218, %c0_219] : memref<600x99xbf16, #tpu.memory_space<vmem>>, vector<24x48xbf16>
    tpu.vector_store %arg17[%c0_218, %c0_219], %182 {strides = array<i32>} : memref<600x99xbf16, #tpu.memory_space<vmem>>, vector<24x48xbf16>,
    %c0_220 = arith.constant 0 : index
    %c1_221 = arith.constant 1 : index
    %184 = vector.load %arg20[%c0_220, %c1_221] : memref<24x66xbf16, #tpu.memory_space<vmem>>, vector<24x48xbf16>
    %c24_222 = arith.constant 24 : index
    %c0_223 = arith.constant 0 : index
    %185 = vector.load %arg17[%c24_222, %c0_223] : memref<600x99xbf16, #tpu.memory_space<vmem>>, vector<24x48xbf16>
    tpu.vector_store %arg17[%c24_222, %c0_223], %184 {strides = array<i32>} : memref<600x99xbf16, #tpu.memory_space<vmem>>, vector<24x48xbf16>,
    %c0_224 = arith.constant 0 : index
    %c2_225 = arith.constant 2 : index
    %186 = vector.load %arg20[%c0_224, %c2_225] : memref<24x66xbf16, #tpu.memory_space<vmem>>, vector<24x48xbf16>
    %c48_226 = arith.constant 48 : index
    %c0_227 = arith.constant 0 : index
    %187 = vector.load %arg17[%c48_226, %c0_227] : memref<600x99xbf16, #tpu.memory_space<vmem>>, vector<24x48xbf16>
    tpu.vector_store %arg17[%c48_226, %c0_227], %186 {strides = array<i32>} : memref<600x99xbf16, #tpu.memory_space<vmem>>, vector<24x48xbf16>,
    %c0_228 = arith.constant 0 : index
    %c8_229 = arith.constant 8 : index
    %188 = vector.load %arg20[%c0_228, %c8_229] : memref<24x66xbf16, #tpu.memory_space<vmem>>, vector<24x48xbf16>
    %c72_230 = arith.constant 72 : index
    %c0_231 = arith.constant 0 : index
    %189 = vector.load %arg17[%c72_230, %c0_231] : memref<600x99xbf16, #tpu.memory_space<vmem>>, vector<24x48xbf16>
    tpu.vector_store %arg17[%c72_230, %c0_231], %188 {strides = array<i32>} : memref<600x99xbf16, #tpu.memory_space<vmem>>, vector<24x48xbf16>,
    %c0_232 = arith.constant 0 : index
    %c9_233 = arith.constant 9 : index
    %190 = vector.load %arg20[%c0_232, %c9_233] : memref<24x66xbf16, #tpu.memory_space<vmem>>, vector<24x48xbf16>
    %c96_234 = arith.constant 96 : index
    %c0_235 = arith.constant 0 : index
    %191 = vector.load %arg17[%c96_234, %c0_235] : memref<600x99xbf16, #tpu.memory_space<vmem>>, vector<24x48xbf16>
    tpu.vector_store %arg17[%c96_234, %c0_235], %190 {strides = array<i32>} : memref<600x99xbf16, #tpu.memory_space<vmem>>, vector<24x48xbf16>,
    %c0_236 = arith.constant 0 : index
    %c10_237 = arith.constant 10 : index
    %192 = vector.load %arg20[%c0_236, %c10_237] : memref<24x66xbf16, #tpu.memory_space<vmem>>, vector<24x48xbf16>
    %c120_238 = arith.constant 120 : index
    %c0_239 = arith.constant 0 : index
    %193 = vector.load %arg17[%c120_238, %c0_239] : memref<600x99xbf16, #tpu.memory_space<vmem>>, vector<24x48xbf16>
    tpu.vector_store %arg17[%c120_238, %c0_239], %192 {strides = array<i32>} : memref<600x99xbf16, #tpu.memory_space<vmem>>, vector<24x48xbf16>,
    %c0_240 = arith.constant 0 : index
    %c16_241 = arith.constant 16 : index
    %194 = vector.load %arg20[%c0_240, %c16_241] : memref<24x66xbf16, #tpu.memory_space<vmem>>, vector<24x48xbf16>
    %c144_242 = arith.constant 144 : index
    %c0_243 = arith.constant 0 : index
    %195 = vector.load %arg17[%c144_242, %c0_243] : memref<600x99xbf16, #tpu.memory_space<vmem>>, vector<24x48xbf16>
    tpu.vector_store %arg17[%c144_242, %c0_243], %194 {strides = array<i32>} : memref<600x99xbf16, #tpu.memory_space<vmem>>, vector<24x48xbf16>,
    %c0_244 = arith.constant 0 : index
    %c17 = arith.constant 17 : index
    %196 = vector.load %arg20[%c0_244, %c17] : memref<24x66xbf16, #tpu.memory_space<vmem>>, vector<24x48xbf16>
    %c168_245 = arith.constant 168 : index
    %c0_246 = arith.constant 0 : index
    %197 = vector.load %arg17[%c168_245, %c0_246] : memref<600x99xbf16, #tpu.memory_space<vmem>>, vector<24x48xbf16>
    tpu.vector_store %arg17[%c168_245, %c0_246], %196 {strides = array<i32>} : memref<600x99xbf16, #tpu.memory_space<vmem>>, vector<24x48xbf16>,
    %c0_247 = arith.constant 0 : index
    %c18_248 = arith.constant 18 : index
    %198 = vector.load %arg20[%c0_247, %c18_248] : memref<24x66xbf16, #tpu.memory_space<vmem>>, vector<24x48xbf16>
    %c192_249 = arith.constant 192 : index
    %c0_250 = arith.constant 0 : index
    %199 = vector.load %arg17[%c192_249, %c0_250] : memref<600x99xbf16, #tpu.memory_space<vmem>>, vector<24x48xbf16>
    tpu.vector_store %arg17[%c192_249, %c0_250], %198 {strides = array<i32>} : memref<600x99xbf16, #tpu.memory_space<vmem>>, vector<24x48xbf16>,
    %c0_251 = arith.constant 0 : index
    %c0_252 = arith.constant 0 : index
    %200 = vector.load %arg8[%c0_251, %c0_252] : memref<24x216xbf16, #tpu.memory_space<vmem>>, vector<24x216xbf16>
    %c0_253 = arith.constant 0 : index
    %c0_254 = arith.constant 0 : index
    %201 = vector.load %arg17[%c0_253, %c0_254] : memref<600x99xbf16, #tpu.memory_space<vmem>>, vector<216x48xbf16>
    %cst_255 = arith.constant dense<0.000000e+00> : vector<24x48xf32>
    %202 = tpu.matmul %200, %201, %cst_255 {dimension_numbers = #tpu.dot_dimension_numbers<[1], [0], [0], [1], [0, 0, 1, 1], [], []>} : vector<24x216xbf16>, vector<216x48xbf16>, vector<24x48xf32> -> vector<24x48xf32>
    %c0_256 = arith.constant 0 : index
    %c0_257 = arith.constant 0 : index
    %203 = vector.load %arg9[%c0_256, %c0_257] : memref<24x1xf32, #tpu.memory_space<vmem>>, vector<24x1xf32>
    %204 = vector.broadcast %203 : vector<24x1xf32> to vector<24x48xf32>
    %205 = arith.addf %202, %204 : vector<24x48xf32>
    %cst_258 = arith.constant 0.000000e+00 : f32
    %206 = vector.broadcast %cst_258 : f32 to vector<24x48xf32>
    %207 = arith.maximumf %205, %206 : vector<24x48xf32>
    %208 = arith.truncf %207 : vector<24x48xf32> to vector<24x48xbf16>
    %c0_259 = arith.constant 0 : index
    %c0_260 = arith.constant 0 : index
    %209 = vector.load %arg15[%c0_259, %c0_260] : memref<48x38xbf16, #tpu.memory_space<vmem>>, vector<48x38xbf16>
    %cst_261 = arith.constant dense<0.000000e+00> : vector<24x38xf32>
    %210 = tpu.matmul %208, %209, %cst_261 {dimension_numbers = #tpu.dot_dimension_numbers<[1], [0], [0], [1], [0, 0, 1, 1], [], []>} : vector<24x48xbf16>, vector<48x38xbf16>, vector<24x38xf32> -> vector<24x38xf32>
    %211 = arith.truncf %210 : vector<24x38xf32> to vector<24x38xbf16>
    %c0_262 = arith.constant 0 : index
    %c0_263 = arith.constant 0 : index
    %212 = vector.load %arg21[%c0_262, %c0_263] : memref<24x38xbf16, #tpu.memory_space<vmem>>, vector<24x38xbf16>
    tpu.vector_store %arg21[%c0_262, %c0_263], %211 {strides = array<i32>} : memref<24x38xbf16, #tpu.memory_space<vmem>>, vector<24x38xbf16>,
    %c0_264 = arith.constant 0 : index
    %c0_265 = arith.constant 0 : index
    %213 = vector.load %arg21[%c0_264, %c0_265] : memref<24x38xbf16, #tpu.memory_space<vmem>>, vector<24x24xbf16>
    %c0_266 = arith.constant 0 : index
    %c0_267 = arith.constant 0 : index
    %214 = vector.load %arg17[%c0_266, %c0_267] : memref<600x99xbf16, #tpu.memory_space<vmem>>, vector<24x24xbf16>
    tpu.vector_store %arg17[%c0_266, %c0_267], %213 {strides = array<i32>} : memref<600x99xbf16, #tpu.memory_space<vmem>>, vector<24x24xbf16>,
    %c0_268 = arith.constant 0 : index
    %c1_269 = arith.constant 1 : index
    %215 = vector.load %arg21[%c0_268, %c1_269] : memref<24x38xbf16, #tpu.memory_space<vmem>>, vector<24x24xbf16>
    %c24_270 = arith.constant 24 : index
    %c0_271 = arith.constant 0 : index
    %216 = vector.load %arg17[%c24_270, %c0_271] : memref<600x99xbf16, #tpu.memory_space<vmem>>, vector<24x24xbf16>
    tpu.vector_store %arg17[%c24_270, %c0_271], %215 {strides = array<i32>} : memref<600x99xbf16, #tpu.memory_space<vmem>>, vector<24x24xbf16>,
    %c0_272 = arith.constant 0 : index
    %c2_273 = arith.constant 2 : index
    %217 = vector.load %arg21[%c0_272, %c2_273] : memref<24x38xbf16, #tpu.memory_space<vmem>>, vector<24x24xbf16>
    %c48_274 = arith.constant 48 : index
    %c0_275 = arith.constant 0 : index
    %218 = vector.load %arg17[%c48_274, %c0_275] : memref<600x99xbf16, #tpu.memory_space<vmem>>, vector<24x24xbf16>
    tpu.vector_store %arg17[%c48_274, %c0_275], %217 {strides = array<i32>} : memref<600x99xbf16, #tpu.memory_space<vmem>>, vector<24x24xbf16>,
    %c0_276 = arith.constant 0 : index
    %c6_277 = arith.constant 6 : index
    %219 = vector.load %arg21[%c0_276, %c6_277] : memref<24x38xbf16, #tpu.memory_space<vmem>>, vector<24x24xbf16>
    %c72_278 = arith.constant 72 : index
    %c0_279 = arith.constant 0 : index
    %220 = vector.load %arg17[%c72_278, %c0_279] : memref<600x99xbf16, #tpu.memory_space<vmem>>, vector<24x24xbf16>
    tpu.vector_store %arg17[%c72_278, %c0_279], %219 {strides = array<i32>} : memref<600x99xbf16, #tpu.memory_space<vmem>>, vector<24x24xbf16>,
    %c0_280 = arith.constant 0 : index
    %c7_281 = arith.constant 7 : index
    %221 = vector.load %arg21[%c0_280, %c7_281] : memref<24x38xbf16, #tpu.memory_space<vmem>>, vector<24x24xbf16>
    %c96_282 = arith.constant 96 : index
    %c0_283 = arith.constant 0 : index
    %222 = vector.load %arg17[%c96_282, %c0_283] : memref<600x99xbf16, #tpu.memory_space<vmem>>, vector<24x24xbf16>
    tpu.vector_store %arg17[%c96_282, %c0_283], %221 {strides = array<i32>} : memref<600x99xbf16, #tpu.memory_space<vmem>>, vector<24x24xbf16>,
    %c0_284 = arith.constant 0 : index
    %c8_285 = arith.constant 8 : index
    %223 = vector.load %arg21[%c0_284, %c8_285] : memref<24x38xbf16, #tpu.memory_space<vmem>>, vector<24x24xbf16>
    %c120_286 = arith.constant 120 : index
    %c0_287 = arith.constant 0 : index
    %224 = vector.load %arg17[%c120_286, %c0_287] : memref<600x99xbf16, #tpu.memory_space<vmem>>, vector<24x24xbf16>
    tpu.vector_store %arg17[%c120_286, %c0_287], %223 {strides = array<i32>} : memref<600x99xbf16, #tpu.memory_space<vmem>>, vector<24x24xbf16>,
    %c0_288 = arith.constant 0 : index
    %c12_289 = arith.constant 12 : index
    %225 = vector.load %arg21[%c0_288, %c12_289] : memref<24x38xbf16, #tpu.memory_space<vmem>>, vector<24x24xbf16>
    %c144_290 = arith.constant 144 : index
    %c0_291 = arith.constant 0 : index
    %226 = vector.load %arg17[%c144_290, %c0_291] : memref<600x99xbf16, #tpu.memory_space<vmem>>, vector<24x24xbf16>
    tpu.vector_store %arg17[%c144_290, %c0_291], %225 {strides = array<i32>} : memref<600x99xbf16, #tpu.memory_space<vmem>>, vector<24x24xbf16>,
    %c0_292 = arith.constant 0 : index
    %c13_293 = arith.constant 13 : index
    %227 = vector.load %arg21[%c0_292, %c13_293] : memref<24x38xbf16, #tpu.memory_space<vmem>>, vector<24x24xbf16>
    %c168_294 = arith.constant 168 : index
    %c0_295 = arith.constant 0 : index
    %228 = vector.load %arg17[%c168_294, %c0_295] : memref<600x99xbf16, #tpu.memory_space<vmem>>, vector<24x24xbf16>
    tpu.vector_store %arg17[%c168_294, %c0_295], %227 {strides = array<i32>} : memref<600x99xbf16, #tpu.memory_space<vmem>>, vector<24x24xbf16>,
    %c0_296 = arith.constant 0 : index
    %c14_297 = arith.constant 14 : index
    %229 = vector.load %arg21[%c0_296, %c14_297] : memref<24x38xbf16, #tpu.memory_space<vmem>>, vector<24x24xbf16>
    %c192_298 = arith.constant 192 : index
    %c0_299 = arith.constant 0 : index
    %230 = vector.load %arg17[%c192_298, %c0_299] : memref<600x99xbf16, #tpu.memory_space<vmem>>, vector<24x24xbf16>
    tpu.vector_store %arg17[%c192_298, %c0_299], %229 {strides = array<i32>} : memref<600x99xbf16, #tpu.memory_space<vmem>>, vector<24x24xbf16>,
    %c0_300 = arith.constant 0 : index
    %c0_301 = arith.constant 0 : index
    %231 = vector.load %arg10[%c0_300, %c0_301] : memref<32x216xbf16, #tpu.memory_space<vmem>>, vector<32x216xbf16>
    %c0_302 = arith.constant 0 : index
    %c0_303 = arith.constant 0 : index
    %232 = vector.load %arg17[%c0_302, %c0_303] : memref<600x99xbf16, #tpu.memory_space<vmem>>, vector<216x24xbf16>
    %cst_304 = arith.constant dense<0.000000e+00> : vector<32x24xf32>
    %233 = tpu.matmul %231, %232, %cst_304 {dimension_numbers = #tpu.dot_dimension_numbers<[1], [0], [0], [1], [0, 0, 1, 1], [], []>} : vector<32x216xbf16>, vector<216x24xbf16>, vector<32x24xf32> -> vector<32x24xf32>
    %c0_305 = arith.constant 0 : index
    %c0_306 = arith.constant 0 : index
    %234 = vector.load %arg11[%c0_305, %c0_306] : memref<32x1xf32, #tpu.memory_space<vmem>>, vector<32x1xf32>
    %235 = vector.broadcast %234 : vector<32x1xf32> to vector<32x24xf32>
    %236 = arith.addf %233, %235 : vector<32x24xf32>
    %237 = math.tanh %236 : vector<32x24xf32>
    %c0_307 = arith.constant 0 : index
    %c0_308 = arith.constant 0 : index
    %c0_309 = arith.constant 0 : index
    %238 = vector.load %arg16[%c0_307, %c0_308, %c0_309] : memref<1x32x24xf32, #tpu.memory_space<vmem>>, vector<1x32x24xf32>
    %239 = vector.shape_cast %238 : vector<1x32x24xf32> to vector<32x24xf32>
    %240 = vector.shape_cast %237 : vector<32x24xf32> to vector<1x32x24xf32>
    tpu.vector_store %arg16[%c0_307, %c0_308, %c0_309], %240 {strides = array<i32>} : memref<1x32x24xf32, #tpu.memory_space<vmem>>, vector<1x32x24xf32>,
    return
  }
  func.func @transform_0(%arg0: i32) -> (i32, i32, i32) {
    %c0_i32 = arith.constant 0 : i32
    %c0_i32_0 = arith.constant 0 : i32
    %c0_i32_1 = arith.constant 0 : i32
    return %arg0, %c0_i32, %c0_i32_0 : i32, i32, i32
  }
  func.func @transform_1(%arg0: i32) -> (i32, i32) {
    %c0_i32 = arith.constant 0 : i32
    %c0_i32_0 = arith.constant 0 : i32
    %c0_i32_1 = arith.constant 0 : i32
    return %c0_i32, %c0_i32_0 : i32, i32
  }
  func.func @transform_2(%arg0: i32) -> (i32, i32) {
    %c0_i32 = arith.constant 0 : i32
    %c0_i32_0 = arith.constant 0 : i32
    %c0_i32_1 = arith.constant 0 : i32
    return %c0_i32, %c0_i32_0 : i32, i32
  }
  func.func @transform_3(%arg0: i32) -> (i32, i32) {
    %c0_i32 = arith.constant 0 : i32
    %c0_i32_0 = arith.constant 0 : i32
    %c0_i32_1 = arith.constant 0 : i32
    return %c0_i32, %c0_i32_0 : i32, i32
  }
  func.func @transform_4(%arg0: i32) -> (i32, i32) {
    %c0_i32 = arith.constant 0 : i32
    %c0_i32_0 = arith.constant 0 : i32
    %c0_i32_1 = arith.constant 0 : i32
    return %c0_i32, %c0_i32_0 : i32, i32
  }
  func.func @transform_5(%arg0: i32) -> (i32, i32) {
    %c0_i32 = arith.constant 0 : i32
    %c0_i32_0 = arith.constant 0 : i32
    %c0_i32_1 = arith.constant 0 : i32
    return %c0_i32, %c0_i32_0 : i32, i32
  }
  func.func @transform_6(%arg0: i32) -> (i32, i32) {
    %c0_i32 = arith.constant 0 : i32
    %c0_i32_0 = arith.constant 0 : i32
    %c0_i32_1 = arith.constant 0 : i32
    return %c0_i32, %c0_i32_0 : i32, i32
  }
  func.func @transform_7(%arg0: i32) -> (i32, i32) {
    %c0_i32 = arith.constant 0 : i32
    %c0_i32_0 = arith.constant 0 : i32
    %c0_i32_1 = arith.constant 0 : i32
    return %c0_i32, %c0_i32_0 : i32, i32
  }
  func.func @transform_8(%arg0: i32) -> (i32, i32) {
    %c0_i32 = arith.constant 0 : i32
    %c0_i32_0 = arith.constant 0 : i32
    %c0_i32_1 = arith.constant 0 : i32
    return %c0_i32, %c0_i32_0 : i32, i32
  }
  func.func @transform_9(%arg0: i32) -> (i32, i32) {
    %c0_i32 = arith.constant 0 : i32
    %c0_i32_0 = arith.constant 0 : i32
    %c0_i32_1 = arith.constant 0 : i32
    return %c0_i32, %c0_i32_0 : i32, i32
  }
  func.func @transform_10(%arg0: i32) -> (i32, i32) {
    %c0_i32 = arith.constant 0 : i32
    %c0_i32_0 = arith.constant 0 : i32
    %c0_i32_1 = arith.constant 0 : i32
    return %c0_i32, %c0_i32_0 : i32, i32
  }
  func.func @transform_11(%arg0: i32) -> (i32, i32) {
    %c0_i32 = arith.constant 0 : i32
    %c0_i32_0 = arith.constant 0 : i32
    %c0_i32_1 = arith.constant 0 : i32
    return %c0_i32, %c0_i32_0 : i32, i32
  }
  func.func @transform_12(%arg0: i32) -> (i32, i32) {
    %c0_i32 = arith.constant 0 : i32
    %c0_i32_0 = arith.constant 0 : i32
    %c0_i32_1 = arith.constant 0 : i32
    return %c0_i32, %c0_i32_0 : i32, i32
  }
  func.func @transform_13(%arg0: i32) -> (i32, i32) {
    %c0_i32 = arith.constant 0 : i32
    %c0_i32_0 = arith.constant 0 : i32
    %c0_i32_1 = arith.constant 0 : i32
    return %c0_i32, %c0_i32_0 : i32, i32
  }
  func.func @transform_14(%arg0: i32) -> (i32, i32) {
    %c0_i32 = arith.constant 0 : i32
    %c0_i32_0 = arith.constant 0 : i32
    %c0_i32_1 = arith.constant 0 : i32
    return %c0_i32, %c0_i32_0 : i32, i32
  }
  func.func @transform_15(%arg0: i32) -> (i32, i32, i32) {
    %c0_i32 = arith.constant 0 : i32
    %c0_i32_0 = arith.constant 0 : i32
    %c0_i32_1 = arith.constant 0 : i32
    return %arg0, %c0_i32, %c0_i32_0 : i32, i32, i32
  }
}

</mosaic_0001>

<llo_original>
// kernel: coarse_flow_forward.1
$region0: #{coarse_flow_forward.1}
  #allocation0 [shape = 'u32[]', space=smem, size = 0x4, offset = 0x4, fixed_abs, tag = 'smem constant byte address 0x4 - core index']
  #allocation1 [shape = 'u32[144,128]{1,0:T(1,128)}', space=vmem, size = 0x12000, scoped, tag = 'internal scratch']
  #allocation2 [shape = 'bf16[600,99]{1,0:T(8,128)(2,1)}', space=vmem, size = 0x25800, scoped, tag = 'scratch operand']
  #allocation3 [shape = 'bf16[24,123]{1,0:T(8,128)(2,1)}', space=vmem, size = 0x1800, scoped, tag = 'scratch operand']
  #allocation4 [shape = 'bf16[24,152]{1,0:T(8,128)(2,1)}', space=vmem, size = 0x3000, scoped, tag = 'scratch operand']
  #allocation5 [shape = 'bf16[24,66]{1,0:T(8,128)(2,1)}', space=vmem, size = 0x1800, scoped, tag = 'scratch operand']
  #allocation6 [shape = 'bf16[24,38]{1,0:T(8,128)(2,1)}', space=vmem, size = 0x1800, scoped, tag = 'scratch operand']
  %s0 = inlined_call_operand.vmem [shape: bf16[2,8,332], index: 0, kind: input, shape index: {}]
  %s1 = inlined_call_operand.vmem [shape: bf16[24,200], index: 1, kind: input, shape index: {}]
  %s2 = inlined_call_operand.vmem [shape: f32[24,1], index: 2, kind: input, shape index: {}]
  %s3 = inlined_call_operand.vmem [shape: bf16[24,216], index: 3, kind: input, shape index: {}]
  %s4 = inlined_call_operand.vmem [shape: f32[24,1], index: 4, kind: input, shape index: {}]
  %s5 = inlined_call_operand.vmem [shape: bf16[24,600], index: 5, kind: input, shape index: {}]
  %s6 = inlined_call_operand.vmem [shape: f32[24,1], index: 6, kind: input, shape index: {}]
  %s7 = inlined_call_operand.vmem [shape: bf16[24,216], index: 7, kind: input, shape index: {}]
  %s8 = inlined_call_operand.vmem [shape: f32[24,1], index: 8, kind: input, shape index: {}]
  %s9 = inlined_call_operand.vmem [shape: bf16[32,216], index: 9, kind: input, shape index: {}]
  %s10 = inlined_call_operand.vmem [shape: f32[32,1], index: 10, kind: input, shape index: {}]
  %s11 = inlined_call_operand.vmem [shape: bf16[63,123], index: 11, kind: input, shape index: {}]
  %s12 = inlined_call_operand.vmem [shape: bf16[99,152], index: 12, kind: input, shape index: {}]
  %s13 = inlined_call_operand.vmem [shape: bf16[24,66], index: 13, kind: input, shape index: {}]
  %s14 = inlined_call_operand.vmem [shape: bf16[48,38], index: 14, kind: input, shape index: {}]
  %s15 = inlined_call_operand.vmem [shape: f32[2,32,24], index: 15, kind: output, shape index: {}]
  %s16 = sld [smem:[#allocation0]]
  $region93: #{coarse_flow_forward.1} parent=0
    _
  %s18 = ssub.s32 1, %s16
  %s19 = scalar_select 0, %s18, %s16
  loop: start=0, step=1, limit=4
  $region2: #{coarse_flow_forward.1} parent=0 // loop_pre_header
    _
  $region3: #{coarse_flow_forward.1} parent=0 // loop_header
    %s21 = sphi 0, %s25
    %p22 = scmp.ge.s32.totalorder %s21, 4
    %s31 = sphi 0, %s33
    %s34 = sphi 0, %s31
    %s35 = sphi 0, %s34
    %s51 = sphi 0, %s35
    %s55 = sphi 0, %s55
    %s57 = sphi 0, %s55
    %s58 = sphi 0, %s57
    %s72 = sphi 0, %s58
    %s76 = sphi 0, %s76
    %s78 = sphi 0, %s76
    %s79 = sphi 0, %s78
    %s93 = sphi 0, %s79
    %s97 = sphi 0, %s97
    %s99 = sphi 0, %s97
    %s100 = sphi 0, %s99
    %s114 = sphi 0, %s100
    %s118 = sphi 0, %s118
    %s120 = sphi 0, %s118
    %s121 = sphi 0, %s120
    %s135 = sphi 0, %s121
    %s139 = sphi 0, %s139
    %s141 = sphi 0, %s139
    %s142 = sphi 0, %s141
    %s156 = sphi 0, %s142
    %s160 = sphi 0, %s160
    %s162 = sphi 0, %s160
    %s163 = sphi 0, %s162
    %s177 = sphi 0, %s163
    %s181 = sphi 0, %s181
    %s183 = sphi 0, %s181
    %s184 = sphi 0, %s183
    %s198 = sphi 0, %s184
    %s202 = sphi 0, %s202
    %s204 = sphi 0, %s202
    %s205 = sphi 0, %s204
    %s219 = sphi 0, %s205
    %s223 = sphi 0, %s223
    %s225 = sphi 0, %s223
    %s226 = sphi 0, %s225
    %s240 = sphi 0, %s226
    %s244 = sphi 0, %s244
    %s246 = sphi 0, %s244
    %s247 = sphi 0, %s246
    %s261 = sphi 0, %s247
    %s265 = sphi 0, %s265
    %s267 = sphi 0, %s265
    %s268 = sphi 0, %s267
    %s282 = sphi 0, %s268
    %s286 = sphi 0, %s286
    %s288 = sphi 0, %s286
    %s289 = sphi 0, %s288
    %s303 = sphi 0, %s289
    %s307 = sphi 0, %s307
    %s309 = sphi 0, %s307
    %s310 = sphi 0, %s309
    %s324 = sphi 0, %s310
    %s328 = sphi 0, %s328
    %s330 = sphi 0, %s328
    %s331 = sphi 0, %s330
    %s345 = sphi 0, %s331
    %s351 = sphi 0, %s353
    %s354 = sphi 0, %s351
    %s355 = sphi 0, %s354
    %s371 = sphi 0, %s355
  $region4: #{coarse_flow_forward.1} parent=0 // loop_header_branch
    %24 = sbr.rel (%p22) target = $region8
  $region5: #{coarse_flow_forward.1} parent=0 // loop_body
    %s26 = ssub.s32 %s21, 1
    %s27 = ssub.s32 %s21, 2
    %s28 = sadd.s32 %s21, 1
    %s29 = ssub.s32 %s21, %s28
    %p30 = scmp.eq.s32.totalorder %s29, 0
    %s32 = sadd.s32 %s31, 1
    %s33 = scalar_select %p30, %s31, %s32
    %p36 = pneg %p30
    %p37 = scmp.eq.s32.totalorder %s21, 1
    %p38 = por %p36, %p37
    %p39 = scmp.ne.s32.totalorder %s31, %s34
    %p40 = scmp.eq.s32.totalorder %s21, 0
    %p41 = por %p39, %p40
    %p42 = scmp.ne.s32.totalorder %s31, %s34
    %p43 = scmp.eq.s32.totalorder %s26, 1
    %p44 = por %p42, %p43
    %p45 = scmp.ne.s32.totalorder %s34, %s35
    %p46 = scmp.eq.s32.totalorder %s26, 0
    %p47 = por %p45, %p46
    %p48 = scmp.ne.s32.totalorder %s34, %s35
    %p49 = scmp.eq.s32.totalorder %s27, 1
    %p50 = por %p48, %p49
    %p52 = scmp.ne.s32.totalorder %s35, %s51
    %p53 = scmp.eq.s32.totalorder %s27, 0
    %p54 = por %p52, %p53
    %s56 = sadd.s32 %s55, 1
    %p59 = scmp.eq.s32.totalorder %s21, 1
    %p60 = scmp.ne.s32.totalorder %s55, %s57
    %p61 = scmp.eq.s32.totalorder %s21, 0
    %p62 = por %p60, %p61
    %p63 = scmp.ne.s32.totalorder %s55, %s57
    %p64 = scmp.eq.s32.totalorder %s26, 1
    %p65 = por %p63, %p64
    %p66 = scmp.ne.s32.totalorder %s57, %s58
    %p67 = scmp.eq.s32.totalorder %s26, 0
    %p68 = por %p66, %p67
    %p69 = scmp.ne.s32.totalorder %s57, %s58
    %p70 = scmp.eq.s32.totalorder %s27, 1
    %p71 = por %p69, %p70
    %p73 = scmp.ne.s32.totalorder %s58, %s72
    %p74 = scmp.eq.s32.totalorder %s27, 0
    %p75 = por %p73, %p74
    %s77 = sadd.s32 %s76, 1
    %p80 = scmp.eq.s32.totalorder %s21, 1
    %p81 = scmp.ne.s32.totalorder %s76, %s78
    %p82 = scmp.eq.s32.totalorder %s21, 0
    %p83 = por %p81, %p82
    %p84 = scmp.ne.s32.totalorder %s76, %s78
    %p85 = scmp.eq.s32.totalorder %s26, 1
    %p86 = por %p84, %p85
    %p87 = scmp.ne.s32.totalorder %s78, %s79
    %p88 = scmp.eq.s32.totalorder %s26, 0
    %p89 = por %p87, %p88
    %p90 = scmp.ne.s32.totalorder %s78, %s79
    %p91 = scmp.eq.s32.totalorder %s27, 1
    %p92 = por %p90, %p91
    %p94 = scmp.ne.s32.totalorder %s79, %s93
    %p95 = scmp.eq.s32.totalorder %s27, 0
    %p96 = por %p94, %p95
    %s98 = sadd.s32 %s97, 1
    %p101 = scmp.eq.s32.totalorder %s21, 1
    %p102 = scmp.ne.s32.totalorder %s97, %s99
    %p103 = scmp.eq.s32.totalorder %s21, 0
    %p104 = por %p102, %p103
    %p105 = scmp.ne.s32.totalorder %s97, %s99
    %p106 = scmp.eq.s32.totalorder %s26, 1
    %p107 = por %p105, %p106
    %p108 = scmp.ne.s32.totalorder %s99, %s100
    %p109 = scmp.eq.s32.totalorder %s26, 0
    %p110 = por %p108, %p109
    %p111 = scmp.ne.s32.totalorder %s99, %s100
    %p112 = scmp.eq.s32.totalorder %s27, 1
    %p113 = por %p111, %p112
    %p115 = scmp.ne.s32.totalorder %s100, %s114
    %p116 = scmp.eq.s32.totalorder %s27, 0
    %p117 = por %p115, %p116
    %s119 = sadd.s32 %s118, 1
    %p122 = scmp.eq.s32.totalorder %s21, 1
    %p123 = scmp.ne.s32.totalorder %s118, %s120
    %p124 = scmp.eq.s32.totalorder %s21, 0
    %p125 = por %p123, %p124
    %p126 = scmp.ne.s32.totalorder %s118, %s120
    %p127 = scmp.eq.s32.totalorder %s26, 1
    %p128 = por %p126, %p127
    %p129 = scmp.ne.s32.totalorder %s120, %s121
    %p130 = scmp.eq.s32.totalorder %s26, 0
    %p131 = por %p129, %p130
    %p132 = scmp.ne.s32.totalorder %s120, %s121
    %p133 = scmp.eq.s32.totalorder %s27, 1
    %p134 = por %p132, %p133
    %p136 = scmp.ne.s32.totalorder %s121, %s135
    %p137 = scmp.eq.s32.totalorder %s27, 0
    %p138 = por %p136, %p137
    %s140 = sadd.s32 %s139, 1
    %p143 = scmp.eq.s32.totalorder %s21, 1
    %p144 = scmp.ne.s32.totalorder %s139, %s141
    %p145 = scmp.eq.s32.totalorder %s21, 0
    %p146 = por %p144, %p145
    %p147 = scmp.ne.s32.totalorder %s139, %s141
    %p148 = scmp.eq.s32.totalorder %s26, 1
    %p149 = por %p147, %p148
    %p150 = scmp.ne.s32.totalorder %s141, %s142
    %p151 = scmp.eq.s32.totalorder %s26, 0
    %p152 = por %p150, %p151
    %p153 = scmp.ne.s32.totalorder %s141, %s142
    %p154 = scmp.eq.s32.totalorder %s27, 1
    %p155 = por %p153, %p154
    %p157 = scmp.ne.s32.totalorder %s142, %s156
    %p158 = scmp.eq.s32.totalorder %s27, 0
    %p159 = por %p157, %p158
    %s161 = sadd.s32 %s160, 1
    %p164 = scmp.eq.s32.totalorder %s21, 1
    %p165 = scmp.ne.s32.totalorder %s160, %s162
    %p166 = scmp.eq.s32.totalorder %s21, 0
    %p167 = por %p165, %p166
    %p168 = scmp.ne.s32.totalorder %s160, %s162
    %p169 = scmp.eq.s32.totalorder %s26, 1
    %p170 = por %p168, %p169
    %p171 = scmp.ne.s32.totalorder %s162, %s163
    %p172 = scmp.eq.s32.totalorder %s26, 0
    %p173 = por %p171, %p172
    %p174 = scmp.ne.s32.totalorder %s162, %s163
    %p175 = scmp.eq.s32.totalorder %s27, 1
    %p176 = por %p174, %p175
    %p178 = scmp.ne.s32.totalorder %s163, %s177
    %p179 = scmp.eq.s32.totalorder %s27, 0
    %p180 = por %p178, %p179
    %s182 = sadd.s32 %s181, 1
    %p185 = scmp.eq.s32.totalorder %s21, 1
    %p186 = scmp.ne.s32.totalorder %s181, %s183
    %p187 = scmp.eq.s32.totalorder %s21, 0
    %p188 = por %p186, %p187
    %p189 = scmp.ne.s32.totalorder %s181, %s183
    %p190 = scmp.eq.s32.totalorder %s26, 1
    %p191 = por %p189, %p190
    %p192 = scmp.ne.s32.totalorder %s183, %s184
    %p193 = scmp.eq.s32.totalorder %s26, 0
    %p194 = por %p192, %p193
    %p195 = scmp.ne.s32.totalorder %s183, %s184
    %p196 = scmp.eq.s32.totalorder %s27, 1
    %p197 = por %p195, %p196
    %p199 = scmp.ne.s32.totalorder %s184, %s198
    %p200 = scmp.eq.s32.totalorder %s27, 0
    %p201 = por %p199, %p200
    %s203 = sadd.s32 %s202, 1
    %p206 = scmp.eq.s32.totalorder %s21, 1
    %p207 = scmp.ne.s32.totalorder %s202, %s204
    %p208 = scmp.eq.s32.totalorder %s21, 0
    %p209 = por %p207, %p208
    %p210 = scmp.ne.s32.totalorder %s202, %s204
    %p211 = scmp.eq.s32.totalorder %s26, 1
    %p212 = por %p210, %p211
    %p213 = scmp.ne.s32.totalorder %s204, %s205
    %p214 = scmp.eq.s32.totalorder %s26, 0
    %p215 = por %p213, %p214
    %p216 = scmp.ne.s32.totalorder %s204, %s205
    %p217 = scmp.eq.s32.totalorder %s27, 1
    %p218 = por %p216, %p217
    %p220 = scmp.ne.s32.totalorder %s205, %s219
    %p221 = scmp.eq.s32.totalorder %s27, 0
    %p222 = por %p220, %p221
    %s224 = sadd.s32 %s223, 1
    %p227 = scmp.eq.s32.totalorder %s21, 1
    %p228 = scmp.ne.s32.totalorder %s223, %s225
    %p229 = scmp.eq.s32.totalorder %s21, 0
    %p230 = por %p228, %p229
    %p231 = scmp.ne.s32.totalorder %s223, %s225
    %p232 = scmp.eq.s32.totalorder %s26, 1
    %p233 = por %p231, %p232
    %p234 = scmp.ne.s32.totalorder %s225, %s226
    %p235 = scmp.eq.s32.totalorder %s26, 0
    %p236 = por %p234, %p235
    %p237 = scmp.ne.s32.totalorder %s225, %s226
    %p238 = scmp.eq.s32.totalorder %s27, 1
    %p239 = por %p237, %p238
    %p241 = scmp.ne.s32.totalorder %s226, %s240
    %p242 = scmp.eq.s32.totalorder %s27, 0
    %p243 = por %p241, %p242
    %s245 = sadd.s32 %s244, 1
    %p248 = scmp.eq.s32.totalorder %s21, 1
    %p249 = scmp.ne.s32.totalorder %s244, %s246
    %p250 = scmp.eq.s32.totalorder %s21, 0
    %p251 = por %p249, %p250
    %p252 = scmp.ne.s32.totalorder %s244, %s246
    %p253 = scmp.eq.s32.totalorder %s26, 1
    %p254 = por %p252, %p253
    %p255 = scmp.ne.s32.totalorder %s246, %s247
    %p256 = scmp.eq.s32.totalorder %s26, 0
    %p257 = por %p255, %p256
    %p258 = scmp.ne.s32.totalorder %s246, %s247
    %p259 = scmp.eq.s32.totalorder %s27, 1
    %p260 = por %p258, %p259
    %p262 = scmp.ne.s32.totalorder %s247, %s261
    %p263 = scmp.eq.s32.totalorder %s27, 0
    %p264 = por %p262, %p263
    %s266 = sadd.s32 %s265, 1
    %p269 = scmp.eq.s32.totalorder %s21, 1
    %p270 = scmp.ne.s32.totalorder %s265, %s267
    %p271 = scmp.eq.s32.totalorder %s21, 0
    %p272 = por %p270, %p271
    %p273 = scmp.ne.s32.totalorder %s265, %s267
    %p274 = scmp.eq.s32.totalorder %s26, 1
    %p275 = por %p273, %p274
    %p276 = scmp.ne.s32.totalorder %s267, %s268
    %p277 = scmp.eq.s32.totalorder %s26, 0
    %p278 = por %p276, %p277
    %p279 = scmp.ne.s32.totalorder %s267, %s268
    %p280 = scmp.eq.s32.totalorder %s27, 1
    %p281 = por %p279, %p280
    %p283 = scmp.ne.s32.totalorder %s268, %s282
    %p284 = scmp.eq.s32.totalorder %s27, 0
    %p285 = por %p283, %p284
    %s287 = sadd.s32 %s286, 1
    %p290 = scmp.eq.s32.totalorder %s21, 1
    %p291 = scmp.ne.s32.totalorder %s286, %s288
    %p292 = scmp.eq.s32.totalorder %s21, 0
    %p293 = por %p291, %p292
    %p294 = scmp.ne.s32.totalorder %s286, %s288
    %p295 = scmp.eq.s32.totalorder %s26, 1
    %p296 = por %p294, %p295
    %p297 = scmp.ne.s32.totalorder %s288, %s289
    %p298 = scmp.eq.s32.totalorder %s26, 0
    %p299 = por %p297, %p298
    %p300 = scmp.ne.s32.totalorder %s288, %s289
    %p301 = scmp.eq.s32.totalorder %s27, 1
    %p302 = por %p300, %p301
    %p304 = scmp.ne.s32.totalorder %s289, %s303
    %p305 = scmp.eq.s32.totalorder %s27, 0
    %p306 = por %p304, %p305
    %s308 = sadd.s32 %s307, 1
    %p311 = scmp.eq.s32.totalorder %s21, 1
    %p312 = scmp.ne.s32.totalorder %s307, %s309
    %p313 = scmp.eq.s32.totalorder %s21, 0
    %p314 = por %p312, %p313
    %p315 = scmp.ne.s32.totalorder %s307, %s309
    %p316 = scmp.eq.s32.totalorder %s26, 1
    %p317 = por %p315, %p316
    %p318 = scmp.ne.s32.totalorder %s309, %s310
    %p319 = scmp.eq.s32.totalorder %s26, 0
    %p320 = por %p318, %p319
    %p321 = scmp.ne.s32.totalorder %s309, %s310
    %p322 = scmp.eq.s32.totalorder %s27, 1
    %p323 = por %p321, %p322
    %p325 = scmp.ne.s32.totalorder %s310, %s324
    %p326 = scmp.eq.s32.totalorder %s27, 0
    %p327 = por %p325, %p326
    %s329 = sadd.s32 %s328, 1
    %p332 = scmp.eq.s32.totalorder %s21, 1
    %p333 = scmp.ne.s32.totalorder %s328, %s330
    %p334 = scmp.eq.s32.totalorder %s21, 0
    %p335 = por %p333, %p334
    %p336 = scmp.ne.s32.totalorder %s328, %s330
    %p337 = scmp.eq.s32.totalorder %s26, 1
    %p338 = por %p336, %p337
    %p339 = scmp.ne.s32.totalorder %s330, %s331
    %p340 = scmp.eq.s32.totalorder %s26, 0
    %p341 = por %p339, %p340
    %p342 = scmp.ne.s32.totalorder %s330, %s331
    %p343 = scmp.eq.s32.totalorder %s27, 1
    %p344 = por %p342, %p343
    %p346 = scmp.ne.s32.totalorder %s331, %s345
    %p347 = scmp.eq.s32.totalorder %s27, 0
    %p348 = por %p346, %p347
    %s349 = ssub.s32 %s21, %s28
    %p350 = scmp.eq.s32.totalorder %s349, 0
    %s352 = sadd.s32 %s351, 1
    %s353 = scalar_select %p350, %s351, %s352
    %p356 = pneg %p350
    %p357 = scmp.eq.s32.totalorder %s21, 1
    %p358 = por %p356, %p357
    %p359 = scmp.ne.s32.totalorder %s351, %s354
    %p360 = scmp.eq.s32.totalorder %s21, 0
    %p361 = por %p359, %p360
    %p362 = scmp.ne.s32.totalorder %s351, %s354
    %p363 = scmp.eq.s32.totalorder %s26, 1
    %p364 = por %p362, %p363
    %p365 = scmp.ne.s32.totalorder %s354, %s355
    %p366 = scmp.eq.s32.totalorder %s26, 0
    %p367 = por %p365, %p366
    %p368 = scmp.ne.s32.totalorder %s354, %s355
    %p369 = scmp.eq.s32.totalorder %s27, 1
    %p370 = por %p368, %p369
    %p372 = scmp.ne.s32.totalorder %s355, %s371
    %p373 = scmp.eq.s32.totalorder %s27, 0
    %p374 = por %p372, %p373
    %p375 = scmp.le.s32.totalorder 1, %s21
    %p376 = scmp.lt.s32.totalorder %s21, 3
    %p377 = pnand %p375, %p376
    %p378 = pneg %p377
    // Predicated region
    $region9: #{coarse_flow_forward.1} parent=5 // pred_check
      _
    $region10: #{coarse_flow_forward.1} parent=5 // pred_check_branch
      %380 = sbr.rel (%p377) target = $region12
    $region11: #{coarse_flow_forward.1} parent=5 // pred_region
      %s381 = ssub.s32 %s21, 1
      // Predicated region
      $region13: #{coarse_flow_forward.1} parent=11 // pred_check
        %p382 = pneg %p68
      $region14: #{coarse_flow_forward.1} parent=11 // pred_check_branch
        %384 = sbr.rel (%p382) target = $region16
      $region15: #{coarse_flow_forward.1} parent=11 // pred_region
        _
      $region16: #{coarse_flow_forward.1} parent=11 // pred_fallthru
        _
      // Predicated region
      $region17: #{coarse_flow_forward.1} parent=11 // pred_check
        %p385 = pneg %p89
      $region18: #{coarse_flow_forward.1} parent=11 // pred_check_branch
        %387 = sbr.rel (%p385) target = $region20
      $region19: #{coarse_flow_forward.1} parent=11 // pred_region
        _
      $region20: #{coarse_flow_forward.1} parent=11 // pred_fallthru
        _
      // Predicated region
      $region21: #{coarse_flow_forward.1} parent=11 // pred_check
        %p388 = pneg %p110
      $region22: #{coarse_flow_forward.1} parent=11 // pred_check_branch
        %390 = sbr.rel (%p388) target = $region24
      $region23: #{coarse_flow_forward.1} parent=11 // pred_region
        _
      $region24: #{coarse_flow_forward.1} parent=11 // pred_fallthru
        _
      // Predicated region
      $region25: #{coarse_flow_forward.1} parent=11 // pred_check
        %p391 = pneg %p131
      $region26: #{coarse_flow_forward.1} parent=11 // pred_check_branch
        %393 = sbr.rel (%p391) target = $region28
      $region27: #{coarse_flow_forward.1} parent=11 // pred_region
        _
      $region28: #{coarse_flow_forward.1} parent=11 // pred_fallthru
        _
      // Predicated region
      $region29: #{coarse_flow_forward.1} parent=11 // pred_check
        %p394 = pneg %p152
      $region30: #{coarse_flow_forward.1} parent=11 // pred_check_branch
        %396 = sbr.rel (%p394) target = $region32
      $region31: #{coarse_flow_forward.1} parent=11 // pred_region
        _
      $region32: #{coarse_flow_forward.1} parent=11 // pred_fallthru
        _
      // Predicated region
      $region33: #{coarse_flow_forward.1} parent=11 // pred_check
        %p397 = pneg %p173
      $region34: #{coarse_flow_forward.1} parent=11 // pred_check_branch
        %399 = sbr.rel (%p397) target = $region36
      $region35: #{coarse_flow_forward.1} parent=11 // pred_region
        _
      $region36: #{coarse_flow_forward.1} parent=11 // pred_fallthru
        _
      // Predicated region
      $region37: #{coarse_flow_forward.1} parent=11 // pred_check
        %p400 = pneg %p194
      $region38: #{coarse_flow_forward.1} parent=11 // pred_check_branch
        %402 = sbr.rel (%p400) target = $region40
      $region39: #{coarse_flow_forward.1} parent=11 // pred_region
        _
      $region40: #{coarse_flow_forward.1} parent=11 // pred_fallthru
        _
      // Predicated region
      $region41: #{coarse_flow_forward.1} parent=11 // pred_check
        %p403 = pneg %p215
      $region42: #{coarse_flow_forward.1} parent=11 // pred_check_branch
        %405 = sbr.rel (%p403) target = $region44
      $region43: #{coarse_flow_forward.1} parent=11 // pred_region
        _
      $region44: #{coarse_flow_forward.1} parent=11 // pred_fallthru
        _
      // Predicated region
      $region45: #{coarse_flow_forward.1} parent=11 // pred_check
        %p406 = pneg %p236
      $region46: #{coarse_flow_forward.1} parent=11 // pred_check_branch
        %408 = sbr.rel (%p406) target = $region48
      $region47: #{coarse_flow_forward.1} parent=11 // pred_region
        _
      $region48: #{coarse_flow_forward.1} parent=11 // pred_fallthru
        _
      // Predicated region
      $region49: #{coarse_flow_forward.1} parent=11 // pred_check
        %p409 = pneg %p257
      $region50: #{coarse_flow_forward.1} parent=11 // pred_check_branch
        %411 = sbr.rel (%p409) target = $region52
      $region51: #{coarse_flow_forward.1} parent=11 // pred_region
        _
      $region52: #{coarse_flow_forward.1} parent=11 // pred_fallthru
        _
      // Predicated region
      $region53: #{coarse_flow_forward.1} parent=11 // pred_check
        %p412 = pneg %p278
      $region54: #{coarse_flow_forward.1} parent=11 // pred_check_branch
        %414 = sbr.rel (%p412) target = $region56
      $region55: #{coarse_flow_forward.1} parent=11 // pred_region
        _
      $region56: #{coarse_flow_forward.1} parent=11 // pred_fallthru
        _
      // Predicated region
      $region57: #{coarse_flow_forward.1} parent=11 // pred_check
        %p415 = pneg %p299
      $region58: #{coarse_flow_forward.1} parent=11 // pred_check_branch
        %417 = sbr.rel (%p415) target = $region60
      $region59: #{coarse_flow_forward.1} parent=11 // pred_region
        _
      $region60: #{coarse_flow_forward.1} parent=11 // pred_fallthru
        _
      // Predicated region
      $region61: #{coarse_flow_forward.1} parent=11 // pred_check
        %p418 = pneg %p320
      $region62: #{coarse_flow_forward.1} parent=11 // pred_check_branch
        %420 = sbr.rel (%p418) target = $region64
      $region63: #{coarse_flow_forward.1} parent=11 // pred_region
        _
      $region64: #{coarse_flow_forward.1} parent=11 // pred_fallthru
        _
      // Predicated region
      $region65: #{coarse_flow_forward.1} parent=11 // pred_check
        %p421 = pneg %p341
      $region66: #{coarse_flow_forward.1} parent=11 // pred_check_branch
        %423 = sbr.rel (%p421) target = $region68
      $region67: #{coarse_flow_forward.1} parent=11 // pred_region
        _
      $region68: #{coarse_flow_forward.1} parent=11 // pred_fallthru
        _
    $region12: #{coarse_flow_forward.1} parent=5 // pred_fallthru
      _
    %p424 = scmp.lt.s32.totalorder %s21, 2
    // Predicated region
    $region69: #{coarse_flow_forward.1} parent=5 // pred_check
      %p425 = pneg %p424
    $region70: #{coarse_flow_forward.1} parent=5 // pred_check_branch
      %427 = sbr.rel (%p425) target = $region72
    $region71: #{coarse_flow_forward.1} parent=5 // pred_region
      // Predicated region
      $region73: #{coarse_flow_forward.1} parent=71 // pred_check
        %p428 = pneg %p41
      $region74: #{coarse_flow_forward.1} parent=71 // pred_check_branch
        %430 = sbr.rel (%p428) target = $region76
      $region75: #{coarse_flow_forward.1} parent=71 // pred_region
        %p431 = scmp.lt.s32.totalorder %s21, 1
        %s432 = scalar_select %p431, %s21, 1
        %s433 = smul.addr %s432, 3
        %s434 = smul.addr %s433, 4
        %s435 = scalar_lea.vmem %s0, %s434
      $region76: #{coarse_flow_forward.1} parent=71 // pred_fallthru
        _
    $region72: #{coarse_flow_forward.1} parent=5 // pred_fallthru
      _
    %p436 = scmp.le.s32.totalorder 1, %s21
    %p437 = scmp.lt.s32.totalorder %s21, 3
    %p438 = pnand %p436, %p437
    %p439 = pneg %p438
    // Predicated region
    $region77: #{coarse_flow_forward.1} parent=5 // pred_check
      _
    $region78: #{coarse_flow_forward.1} parent=5 // pred_check_branch
      %441 = sbr.rel (%p438) target = $region80
    $region79: #{coarse_flow_forward.1} parent=5 // pred_region
      %s442 = ssub.s32 %s21, 1
      %p443 = scmp.lt.s32.totalorder %s26, 1
      %s444 = scalar_select %p443, %s26, 1
      %s445 = smul.addr %s444, 3
      %s446 = smul.addr %s445, 4
      %s447 = scalar_lea.vmem %s0, %s446
      %p448 = pneg %p47
      %p449 = pneg %p44
      %p450 = pneg %p68
      %p451 = pneg %p65
      %p452 = pneg %p89
      %p453 = pneg %p86
      %p454 = pneg %p110
      %p455 = pneg %p107
      %p456 = pneg %p131
      %p457 = pneg %p128
      %p458 = pneg %p152
      %p459 = pneg %p149
      %p460 = pneg %p173
      %p461 = pneg %p170
      %p462 = pneg %p194
      %p463 = pneg %p191
      %p464 = pneg %p215
      %p465 = pneg %p212
      %p466 = pneg %p236
      %p467 = pneg %p233
      %p468 = pneg %p257
      %p469 = pneg %p254
      %p470 = pneg %p278
      %p471 = pneg %p275
      %p472 = pneg %p299
      %p473 = pneg %p296
      %p474 = pneg %p320
      %p475 = pneg %p317
      %p476 = pneg %p341
      %p477 = pneg %p338
      %p478 = pneg %p367
      %p479 = pneg %p364
      %p480 = scmp.lt.s32.totalorder %s26, 1
      %s481 = scalar_select %p480, %s26, 1
      %s482 = smul.addr %s481, 4
      %s483 = smul.addr %s482, 8
      %s484 = scalar_lea.vmem %s15, %s483
      %p485 = scmp.lt.s32.totalorder %s26, 1
      %s486 = scalar_select %p485, %s26, 1
      %s487 = smul.addr %s486, 3
      %s488 = smul.addr %s487, 4
      %s489 = scalar_lea.vmem %s0, %s488
      %p490 = scmp.lt.s32.totalorder %s26, 1
      %s491 = scalar_select %p490, %s26, 1
      %s492 = smul.addr %s491, 4
      %s493 = smul.addr %s492, 8
      %s494 = scalar_lea.vmem %s15, %s493
      %v496 = vld [vmem:[%s489] sm:$0xf]
      %vm497 = vcmask 510976
      %498 = vst.msk [vmem:[#allocation2] sm:$0xf] %vm497, %v496
      %v499 = vld [vmem:[%s489] sm:$0xff]
      %501 = vrot.lane.b32.xlu0 %v499, 45
      %v502 = vpop.permute.xlu0 %501
      %v503 = vrot.slane %v502, 4
      %vm504 = vcmask 367616
      %v505 = vsel %vm504, %v502, %v503
      %507 = vst.msk [vmem:[#allocation2 + $0x4] sm:$0xf] %vm497, %v505
      %v508 = vld [vmem:[%s489] sm:$0xf]
      %510 = vrot.lane.b32.xlu0 %v508, 127
      %v511 = vpop.permute.xlu0 %510
      %513 = vst.msk [vmem:[#allocation2 + $0x8] sm:$0xf] %vm497, %v511
      %v514 = vld [vmem:[%s489] sm:$0xff]
      %516 = vrot.lane.b32.xlu0 %v514, 44
      %v517 = vpop.permute.xlu0 %516
      %v518 = vrot.slane %v517, 4
      %vm519 = vcmask 359424
      %v520 = vsel %vm519, %v517, %v518
      %522 = vst.msk [vmem:[#allocation2 + $0xc] sm:$0xf] %vm497, %v520
      %v523 = vld [vmem:[%s489] sm:$0xf]
      %525 = vrot.lane.b32.xlu0 %v523, 126
      %v526 = vpop.permute.xlu0 %525
      %528 = vst.msk [vmem:[#allocation2 + $0x10] sm:$0xf] %vm497, %v526
      %v529 = vld [vmem:[%s489 + $0x4] sm:$0xf]
      %531 = vrot.lane.b32.xlu0 %v529, 90
      %v532 = vpop.permute.xlu0 %531
      %534 = vst.msk [vmem:[#allocation2 + $0x14] sm:$0xf] %vm497, %v532
      %v535 = vld [vmem:[%s489 + $0x4] sm:$0xff]
      %537 = vrot.lane.b32.xlu0 %v535, 7
      %v538 = vpop.permute.xlu0 %537
      %v539 = vrot.slane %v538, 4
      %vm540 = vcmask 56320
      %v541 = vsel %vm540, %v538, %v539
      %543 = vst.msk [vmem:[#allocation2 + $0x18] sm:$0xf] %vm497, %v541
      %v544 = vld [vmem:[%s489 + $0x4] sm:$0xf]
      %546 = vrot.lane.b32.xlu0 %v544, 89
      %v547 = vpop.permute.xlu0 %546
      %549 = vst.msk [vmem:[#allocation2 + $0x1c] sm:$0xf] %vm497, %v547
      %v550 = vld [vmem:[%s489 + $0x4] sm:$0xff]
      %552 = vrot.lane.b32.xlu0 %v550, 6
      %v553 = vpop.permute.xlu0 %552
      %v554 = vrot.slane %v553, 4
      %vm555 = vcmask 48128
      %v556 = vsel %vm555, %v553, %v554
      %558 = vst.msk [vmem:[#allocation2 + $0x20] sm:$0xf] %vm497, %v556
      %v559 = vld [vmem:[%s489 + $0x4] sm:$0xf]
      %561 = vrot.lane.b32.xlu0 %v559, 88
      %v562 = vpop.permute.xlu0 %561
      %564 = vst.msk [vmem:[#allocation2 + $0x24] sm:$0xf] %vm497, %v562
      %v565 = vld [vmem:[%s489] sm:$0xf]
      %567 = vrot.lane.b32.xlu0 %v565, 119
      %v568 = vpop.permute.xlu0 %567
      %570 = vst.msk [vmem:[#allocation2 + $0x28] sm:$0xf] %vm497, %v568
      %v571 = vld [vmem:[%s489] sm:$0xff]
      %573 = vrot.lane.b32.xlu0 %v571, 36
      %v574 = vpop.permute.xlu0 %573
      %v575 = vrot.slane %v574, 4
      %vm576 = vcmask 293888
      %v577 = vsel %vm576, %v574, %v575
      %579 = vst.msk [vmem:[#allocation2 + $0x2c] sm:$0xf] %vm497, %v577
      %v580 = vld [vmem:[%s489] sm:$0xf]
      %582 = vrot.lane.b32.xlu0 %v580, 118
      %v583 = vpop.permute.xlu0 %582
      %585 = vst.msk [vmem:[#allocation2 + $0x30] sm:$0xf] %vm497, %v583
      %v586 = vld [vmem:[%s489] sm:$0xff]
      %588 = vrot.lane.b32.xlu0 %v586, 35
      %v589 = vpop.permute.xlu0 %588
      %v590 = vrot.slane %v589, 4
      %vm591 = vcmask 285696
      %v592 = vsel %vm591, %v589, %v590
      %594 = vst.msk [vmem:[#allocation2 + $0x34] sm:$0xf] %vm497, %v592
      %v595 = vld [vmem:[%s489] sm:$0xf]
      %597 = vrot.lane.b32.xlu0 %v595, 117
      %v598 = vpop.permute.xlu0 %597
      %600 = vst.msk [vmem:[#allocation2 + $0x38] sm:$0xf] %vm497, %v598
      %v601 = vld [vmem:[%s489 + $0x4] sm:$0xf]
      %603 = vrot.lane.b32.xlu0 %v601, 81
      %v604 = vpop.permute.xlu0 %603
      %606 = vst.msk [vmem:[#allocation2 + $0x3c] sm:$0xf] %vm497, %v604
      %v607 = vld [vmem:[%s489 + $0x8] sm:$0xf]
      %609 = vrot.lane.b32.xlu0 %v607, 126
      %v610 = vpop.permute.xlu0 %609
      %612 = vst.msk [vmem:[#allocation2 + $0x40] sm:$0xf] %vm497, %v610
      %v613 = vld [vmem:[%s489 + $0x4] sm:$0xf]
      %615 = vrot.lane.b32.xlu0 %v613, 80
      %v616 = vpop.permute.xlu0 %615
      %618 = vst.msk [vmem:[#allocation2 + $0x44] sm:$0xf] %vm497, %v616
      %v619 = vld [vmem:[%s489 + $0x8] sm:$0xf]
      %621 = vrot.lane.b32.xlu0 %v619, 125
      %v622 = vpop.permute.xlu0 %621
      %624 = vst.msk [vmem:[#allocation2 + $0x48] sm:$0xf] %vm497, %v622
      %v625 = vld [vmem:[%s489 + $0x4] sm:$0xf]
      %627 = vrot.lane.b32.xlu0 %v625, 79
      %v628 = vpop.permute.xlu0 %627
      %630 = vst.msk [vmem:[#allocation2 + $0x4c] sm:$0xf] %vm497, %v628
      %v631 = vld [vmem:[%s489] sm:$0xf]
      %633 = vrot.lane.b32.xlu0 %v631, 110
      %v634 = vpop.permute.xlu0 %633
      %636 = vst.msk [vmem:[#allocation2 + $0x50] sm:$0xf] %vm497, %v634
      %v637 = vld [vmem:[%s489] sm:$0xff]
      %639 = vrot.lane.b32.xlu0 %v637, 27
      %v640 = vpop.permute.xlu0 %639
      %v641 = vrot.slane %v640, 4
      %vm642 = vcmask 220160
      %v643 = vsel %vm642, %v640, %v641
      %645 = vst.msk [vmem:[#allocation2 + $0x54] sm:$0xf] %vm497, %v643
      %v646 = vld [vmem:[%s489] sm:$0xf]
      %648 = vrot.lane.b32.xlu0 %v646, 109
      %v649 = vpop.permute.xlu0 %648
      %651 = vst.msk [vmem:[#allocation2 + $0x58] sm:$0xf] %vm497, %v649
      %v652 = vld [vmem:[%s489] sm:$0xff]
      %654 = vrot.lane.b32.xlu0 %v652, 26
      %v655 = vpop.permute.xlu0 %654
      %v656 = vrot.slane %v655, 4
      %vm657 = vcmask 211968
      %v658 = vsel %vm657, %v655, %v656
      %660 = vst.msk [vmem:[#allocation2 + $0x5c] sm:$0xf] %vm497, %v658
      %v661 = vld [vmem:[%s489] sm:$0xf]
      %663 = vrot.lane.b32.xlu0 %v661, 108
      %v664 = vpop.permute.xlu0 %663
      %666 = vst.msk [vmem:[#allocation2 + $0x60] sm:$0xf] %vm497, %v664
      %v667 = vld [vmem:[%s1] sm:$0xff]
      %v668 = vld [vmem:[%s1 + $0x8] sm:$0xff]
      %v669 = vld [vmem:[%s1 + $0x10] sm:$0xff]
      %v670 = vld [vmem:[#allocation2] sm:$0xf]
      %v671 = vld [vmem:[#allocation2 + $0x4] sm:$0xf]
      %v672 = vld [vmem:[#allocation2 + $0x8] sm:$0xf]
      %v673 = vld [vmem:[#allocation2 + $0xc] sm:$0xf]
      %v674 = vld [vmem:[#allocation2 + $0x10] sm:$0xf]
      %v675 = vld [vmem:[#allocation2 + $0x14] sm:$0xf]
      %v676 = vld [vmem:[#allocation2 + $0x18] sm:$0xf]
      %v677 = vld [vmem:[#allocation2 + $0x1c] sm:$0xf]
      %v678 = vld [vmem:[#allocation2 + $0x20] sm:$0xf]
      %v679 = vld [vmem:[#allocation2 + $0x24] sm:$0xf]
      %v680 = vld [vmem:[#allocation2 + $0x28] sm:$0xf]
      %v681 = vld [vmem:[#allocation2 + $0x2c] sm:$0xf]
      %v682 = vld [vmem:[#allocation2 + $0x30] sm:$0xf]
      %v683 = vld [vmem:[#allocation2 + $0x34] sm:$0xf]
      %v684 = vld [vmem:[#allocation2 + $0x38] sm:$0xf]
      %v685 = vld [vmem:[#allocation2 + $0x3c] sm:$0xf]
      %v686 = vld [vmem:[#allocation2 + $0x40] sm:$0xf]
      %v687 = vld [vmem:[#allocation2 + $0x44] sm:$0xf]
      %v688 = vld [vmem:[#allocation2 + $0x48] sm:$0xf]
      %v689 = vld [vmem:[#allocation2 + $0x4c] sm:$0xf]
      %v690 = vld [vmem:[#allocation2 + $0x50] sm:$0xf]
      %v691 = vld [vmem:[#allocation2 + $0x54] sm:$0xf]
      %v692 = vld [vmem:[#allocation2 + $0x58] sm:$0xf]
      %v693 = vld [vmem:[#allocation2 + $0x5c] sm:$0xf]
      %v694 = vld [vmem:[#allocation2 + $0x60] sm:$0xf]
      %v695 = vld [vmem:[%s2] sm:$0xff]
      %v696 = vld [vmem:[%s2 + $0x8] sm:$0xff]
      %v697 = vld [vmem:[%s2 + $0x10] sm:$0xff]
      %699 = vset.pattern.permute.xlu0 0
      %700 = vperm.xlu0 %699, %v695
      %v701 = vpop.permute.xlu0 %700
      %704 = vset.pattern.permute.xlu0 0
      %705 = vperm.xlu0 %704, %v696
      %v706 = vpop.permute.xlu0 %705
      %709 = vset.pattern.permute.xlu0 0
      %710 = vperm.xlu0 %709, %v697
      %v711 = vpop.permute.xlu0 %710
      %v716 = vunpack.c.l.b16 %v667
      %v717 = vunpack.c.h.b16 %v667
      %v718 = vunpack.c.l.b16 %v668
      %v719 = vunpack.c.h.b16 %v668
      %v720 = vunpack.c.l.b16 %v669
      %v721 = vunpack.c.h.b16 %v669
      %v722 = vpack.c.b16 %v718, %v716
      %v723 = vpack.c.b16 %v719, %v717
      %v724 = vpack.c.b16 %v720, %v720
      %v725 = vpack.c.b16 %v721, %v721
      %v753 = vunpack.c.l.b16 %v670
      %v754 = vunpack.c.l.b16 %v671
      %v755 = vunpack.c.l.b16 %v672
      %v756 = vunpack.c.l.b16 %v673
      %v757 = vunpack.c.l.b16 %v674
      %v758 = vunpack.c.l.b16 %v675
      %v759 = vunpack.c.l.b16 %v676
      %v760 = vunpack.c.l.b16 %v677
      %v761 = vunpack.c.l.b16 %v678
      %v762 = vunpack.c.l.b16 %v679
      %v763 = vunpack.c.l.b16 %v680
      %v764 = vunpack.c.l.b16 %v681
      %v765 = vunpack.c.l.b16 %v682
      %v766 = vunpack.c.l.b16 %v683
      %v767 = vunpack.c.l.b16 %v684
      %v768 = vunpack.c.l.b16 %v685
      %v769 = vunpack.c.l.b16 %v686
      %v770 = vunpack.c.l.b16 %v687
      %v771 = vunpack.c.l.b16 %v688
      %v772 = vunpack.c.l.b16 %v689
      %v773 = vunpack.c.l.b16 %v690
      %v774 = vunpack.c.l.b16 %v691
      %v775 = vunpack.c.l.b16 %v692
      %v776 = vunpack.c.l.b16 %v693
      %v777 = vunpack.c.l.b16 %v694
      %v778 = vpack.c.b16 %v754, %v753
      %v779 = vpack.c.b16 %v756, %v755
      %v780 = vpack.c.b16 %v758, %v757
      %v781 = vpack.c.b16 %v760, %v759
      %v782 = vpack.c.b16 %v762, %v761
      %v783 = vpack.c.b16 %v764, %v763
      %v784 = vpack.c.b16 %v766, %v765
      %v785 = vpack.c.b16 %v768, %v767
      %v786 = vpack.c.b16 %v770, %v769
      %v787 = vpack.c.b16 %v772, %v771
      %v788 = vpack.c.b16 %v774, %v773
      %v789 = vpack.c.b16 %v776, %v775
      %v790 = vpack.c.b16 %v777, %v777
      %vm803 = vcmask 588800
      %v805 = vsel %vm803, %v723, 0
      %v808 = vsel %vm803, %v725, 0
      %vm810 = vcmask 1043456
      %v812 = vsel %vm810, %v790, 0
      %814 = vmatprep.subr.bf16.mxu0 0
      %815 = vmatpush1.bf16.msra.mxu0 %v785
      %816 = vmatprep.subr.bf16.mxu0 0
      %817 = vmatpush1.bf16.msra.mxu0 %v784
      %818 = vmatprep.subr.bf16.mxu0 0
      %819 = vmatpush1.bf16.msra.mxu0 %v783
      %820 = vmatprep.subr.bf16.mxu0 0
      %821 = vmatpush1.bf16.msra.mxu0 %v782
      %822 = vmatprep.subr.bf16.mxu0 0
      %823 = vmatpush1.bf16.msra.mxu0 %v781
      %824 = vmatprep.subr.bf16.mxu0 0
      %825 = vmatpush1.bf16.msra.mxu0 %v780
      %826 = vmatprep.subr.bf16.mxu0 0
      %827 = vmatpush1.bf16.msra.mxu0 %v779
      %828 = vmatprep.subr.bf16.mxu0 0
      %829 = vmatpush1.bf16.msra.mxu0 %v778
      %830 = vmatprep.subr.bf16.mxu0 0
      %831 = vmatpush2.bf16.msra.mxu0 0
      %832 = vmatprep.subr.bf16.mxu0 0
      %833 = vmatpush2.bf16.msra.mxu0 0
      %834 = vmatprep.subr.bf16.mxu0 0
      %835 = vmatpush2.bf16.msra.mxu0 0
      %836 = vmatprep.subr.bf16.mxu0 0
      %837 = vmatpush2.bf16.msra.mxu0 %v812
      %838 = vmatprep.subr.bf16.mxu0 0
      %839 = vmatpush2.bf16.msra.mxu0 %v789
      %840 = vmatprep.subr.bf16.mxu0 0
      %841 = vmatpush2.bf16.msra.mxu0 %v788
      %842 = vmatprep.subr.bf16.mxu0 0
      %843 = vmatpush2.bf16.msra.mxu0 %v787
      %844 = vmatprep.subr.bf16.mxu0 0
      %845 = vmatpush2.bf16.msra.mxu0 %v786
      %846 = vmatprep.mubr.bf16.mxu0 %v805
      %847 = vmatmul.mubr.bf16.gmra.mxu0 %v722
      %v848 = vpop.f32.mrf.mxu0
      %v849 = vadd.f32 %v701, %v848
      %v850 = vpop.f32.mrf.mxu0
      %v851 = vpop.f32.mrf.mxu0
      %v852 = vadd.f32 %v706, %v851
      %v853 = vpop.f32.mrf.mxu0
      %854 = vmatprep.mubr.bf16.mxu0 %v808
      %855 = vmatmul.mubr.bf16.gmra.mxu0 %v724
      %v856 = vpop.f32.mrf.mxu0
      %v857 = vadd.f32 %v711, %v856
      %v858 = vpop.f32.mrf.mxu0
      %v859 = vpop.f32.mrf.mxu0
      %v860 = vpop.f32.mrf.mxu0
      %861 = vdwg.mxu0
      %v862 = vmax.f32 %v849, 0.0
      %v863 = vmax.f32 %v852, 0.0
      %v864 = vmax.f32 %v857, 0.0
      %v865 = vpack.c.bf16 %v863, %v862
      %v866 = vpack.c.bf16 %v864, %v864
      %v867 = vld [vmem:[%s11] sm:$0xf]
      %v868 = vld [vmem:[%s11 + $0x4] sm:$0xf]
      %v869 = vld [vmem:[%s11 + $0x8] sm:$0xf]
      %v870 = vld [vmem:[%s11 + $0xc] sm:$0xf]
      %v871 = vld [vmem:[%s11 + $0x10] sm:$0xf]
      %v872 = vld [vmem:[%s11 + $0x14] sm:$0xf]
      %v873 = vld [vmem:[%s11 + $0x18] sm:$0xf]
      %v874 = vld [vmem:[%s11 + $0x1c] sm:$0xf]
      %v883 = vunpack.c.l.b16 %v867
      %v884 = vunpack.c.l.b16 %v868
      %v885 = vunpack.c.l.b16 %v869
      %v886 = vunpack.c.l.b16 %v870
      %v887 = vunpack.c.l.b16 %v871
      %v888 = vunpack.c.l.b16 %v872
      %v889 = vunpack.c.l.b16 %v873
      %v890 = vunpack.c.l.b16 %v874
      %v891 = vpack.c.b16 %v884, %v883
      %v892 = vpack.c.b16 %v886, %v885
      %v893 = vpack.c.b16 %v888, %v887
      %v894 = vpack.c.b16 %v890, %v889
      %vm898 = vcmask 515072
      %v900 = vsel %vm898, %v865, 0
      %v903 = vsel %vm898, %v866, 0
      %vm905 = vcmask 1046528
      %vm906 = vcmask 1047552
      %v907 = vsel %vm905, 4294967295, 65535
      %v908 = vsel %vm906, %v907, 0
      %v910 = vand.u32 %v894, %v908
      %912 = vmatprep.subr.bf16.mxu0 0
      %913 = vmatpush1.bf16.msra.mxu0 0
      %914 = vmatprep.subr.bf16.mxu0 0
      %915 = vmatpush1.bf16.msra.mxu0 0
      %916 = vmatprep.subr.bf16.mxu0 0
      %917 = vmatpush1.bf16.msra.mxu0 0
      %918 = vmatprep.subr.bf16.mxu0 0
      %919 = vmatpush1.bf16.msra.mxu0 0
      %920 = vmatprep.subr.bf16.mxu0 0
      %921 = vmatpush1.bf16.msra.mxu0 %v910
      %922 = vmatprep.subr.bf16.mxu0 0
      %923 = vmatpush1.bf16.msra.mxu0 %v893
      %924 = vmatprep.subr.bf16.mxu0 0
      %925 = vmatpush1.bf16.msra.mxu0 %v892
      %926 = vmatprep.subr.bf16.mxu0 0
      %927 = vmatpush1.bf16.msra.mxu0 %v891
      %928 = vmatprep.subr.bf16.mxu0 0
      %929 = vmatpush2.bf16.msra.mxu0 0
      %930 = vmatprep.subr.bf16.mxu0 0
      %931 = vmatpush2.bf16.msra.mxu0 0
      %932 = vmatprep.subr.bf16.mxu0 0
      %933 = vmatpush2.bf16.msra.mxu0 0
      %934 = vmatprep.subr.bf16.mxu0 0
      %935 = vmatpush2.bf16.msra.mxu0 0
      %936 = vmatprep.subr.bf16.mxu0 0
      %937 = vmatpush2.bf16.msra.mxu0 0
      %938 = vmatprep.subr.bf16.mxu0 0
      %939 = vmatpush2.bf16.msra.mxu0 0
      %940 = vmatprep.subr.bf16.mxu0 0
      %941 = vmatpush2.bf16.msra.mxu0 0
      %942 = vmatprep.subr.bf16.mxu0 0
      %943 = vmatpush2.bf16.msra.mxu0 0
      %944 = vmatprep.mubr.bf16.mxu0 0
      %945 = vmatmul.mubr.bf16.gmra.mxu0 %v900
      %v946 = vpop.f32.mrf.mxu0
      %v947 = vadd.f32 0.0, %v946
      %v948 = vpop.f32.mrf.mxu0
      %v949 = vpop.f32.mrf.mxu0
      %v950 = vadd.f32 0.0, %v949
      %v951 = vpop.f32.mrf.mxu0
      %952 = vmatprep.mubr.bf16.mxu0 0
      %953 = vmatmul.mubr.bf16.gmra.mxu0 %v903
      %v954 = vpop.f32.mrf.mxu0
      %v955 = vadd.f32 0.0, %v954
      %v956 = vpop.f32.mrf.mxu0
      %v957 = vpop.f32.mrf.mxu0
      %v958 = vpop.f32.mrf.mxu0
      %959 = vdwg.mxu0
      %v960 = vpack.c.bf16 %v950, %v947
      %v961 = vpack.c.bf16 %v955, %v955
      %v964 = vunpack.c.l.b16 %v960
      %v965 = vunpack.c.h.b16 %v960
      %v966 = vunpack.c.l.b16 %v961
      %v967 = vpack.c.b16 %v964, %v964
      %v968 = vpack.c.b16 %v965, %v965
      %v969 = vpack.c.b16 %v966, %v966
      %vm973 = vcmask 1002496
      %974 = vst.msk [vmem:[#allocation3] sm:$0xf] %vm973, %v967
      %975 = vst.msk [vmem:[#allocation3 + $0x4] sm:$0xf] %vm973, %v968
      %976 = vst.msk [vmem:[#allocation3 + $0x8] sm:$0xf] %vm973, %v969
      %v977 = vld [vmem:[#allocation3] sm:$0xf]
      %v978 = vld [vmem:[#allocation3 + $0x4] sm:$0xf]
      %v979 = vld [vmem:[#allocation3 + $0x8] sm:$0xf]
      %vm980 = vcmask 805888
      %981 = vst.msk [vmem:[#allocation2] sm:$0xf] %vm980, %v977
      %982 = vst.msk [vmem:[#allocation2 + $0x4] sm:$0xf] %vm980, %v978
      %983 = vst.msk [vmem:[#allocation2 + $0x8] sm:$0xf] %vm980, %v979
      %v984 = vld [vmem:[#allocation3] sm:$0xf]
      %v985 = vld [vmem:[#allocation3 + $0x4] sm:$0xf]
      %v986 = vld [vmem:[#allocation3 + $0x8] sm:$0xf]
      %990 = vrot.lane.b32.xlu0 %v984, 127
      %v991 = vpop.permute.xlu0 %990
      %992 = vrot.lane.b32.xlu0 %v985, 127
      %v993 = vpop.permute.xlu0 %992
      %994 = vrot.lane.b32.xlu0 %v986, 127
      %v995 = vpop.permute.xlu0 %994
      %999 = vst.msk [vmem:[#allocation2 + $0xc] sm:$0xf] %vm980, %v991
      %1000 = vst.msk [vmem:[#allocation2 + $0x10] sm:$0xf] %vm980, %v993
      %1001 = vst.msk [vmem:[#allocation2 + $0x14] sm:$0xf] %vm980, %v995
      %v1002 = vld [vmem:[#allocation3] sm:$0xf]
      %v1003 = vld [vmem:[#allocation3 + $0x4] sm:$0xf]
      %v1004 = vld [vmem:[#allocation3 + $0x8] sm:$0xf]
      %1008 = vrot.lane.b32.xlu0 %v1002, 126
      %v1009 = vpop.permute.xlu0 %1008
      %1010 = vrot.lane.b32.xlu0 %v1003, 126
      %v1011 = vpop.permute.xlu0 %1010
      %1012 = vrot.lane.b32.xlu0 %v1004, 126
      %v1013 = vpop.permute.xlu0 %1012
      %1017 = vst.msk [vmem:[#allocation2 + $0x18] sm:$0xf] %vm980, %v1009
      %1018 = vst.msk [vmem:[#allocation2 + $0x1c] sm:$0xf] %vm980, %v1011
      %1019 = vst.msk [vmem:[#allocation2 + $0x20] sm:$0xf] %vm980, %v1013
      %v1020 = vld [vmem:[#allocation3] sm:$0xf]
      %v1021 = vld [vmem:[#allocation3 + $0x4] sm:$0xf]
      %v1022 = vld [vmem:[#allocation3 + $0x8] sm:$0xf]
      %1026 = vrot.lane.b32.xlu0 %v1020, 117
      %v1027 = vpop.permute.xlu0 %1026
      %1028 = vrot.lane.b32.xlu0 %v1021, 117
      %v1029 = vpop.permute.xlu0 %1028
      %1030 = vrot.lane.b32.xlu0 %v1022, 117
      %v1031 = vpop.permute.xlu0 %1030
      %1035 = vst.msk [vmem:[#allocation2 + $0x24] sm:$0xf] %vm980, %v1027
      %1036 = vst.msk [vmem:[#allocation2 + $0x28] sm:$0xf] %vm980, %v1029
      %1037 = vst.msk [vmem:[#allocation2 + $0x2c] sm:$0xf] %vm980, %v1031
      %v1038 = vld [vmem:[#allocation3] sm:$0xf]
      %v1039 = vld [vmem:[#allocation3 + $0x4] sm:$0xf]
      %v1040 = vld [vmem:[#allocation3 + $0x8] sm:$0xf]
      %1044 = vrot.lane.b32.xlu0 %v1038, 116
      %v1045 = vpop.permute.xlu0 %1044
      %1046 = vrot.lane.b32.xlu0 %v1039, 116
      %v1047 = vpop.permute.xlu0 %1046
      %1048 = vrot.lane.b32.xlu0 %v1040, 116
      %v1049 = vpop.permute.xlu0 %1048
      %1053 = vst.msk [vmem:[#allocation2 + $0x30] sm:$0xf] %vm980, %v1045
      %1054 = vst.msk [vmem:[#allocation2 + $0x34] sm:$0xf] %vm980, %v1047
      %1055 = vst.msk [vmem:[#allocation2 + $0x38] sm:$0xf] %vm980, %v1049
      %v1056 = vld [vmem:[#allocation3] sm:$0xf]
      %v1057 = vld [vmem:[#allocation3 + $0x4] sm:$0xf]
      %v1058 = vld [vmem:[#allocation3 + $0x8] sm:$0xf]
      %1062 = vrot.lane.b32.xlu0 %v1056, 115
      %v1063 = vpop.permute.xlu0 %1062
      %1064 = vrot.lane.b32.xlu0 %v1057, 115
      %v1065 = vpop.permute.xlu0 %1064
      %1066 = vrot.lane.b32.xlu0 %v1058, 115
      %v1067 = vpop.permute.xlu0 %1066
      %1071 = vst.msk [vmem:[#allocation2 + $0x3c] sm:$0xf] %vm980, %v1063
      %1072 = vst.msk [vmem:[#allocation2 + $0x40] sm:$0xf] %vm980, %v1065
      %1073 = vst.msk [vmem:[#allocation2 + $0x44] sm:$0xf] %vm980, %v1067
      %v1074 = vld [vmem:[#allocation3] sm:$0xf]
      %v1075 = vld [vmem:[#allocation3 + $0x4] sm:$0xf]
      %v1076 = vld [vmem:[#allocation3 + $0x8] sm:$0xf]
      %1080 = vrot.lane.b32.xlu0 %v1074, 106
      %v1081 = vpop.permute.xlu0 %1080
      %1082 = vrot.lane.b32.xlu0 %v1075, 106
      %v1083 = vpop.permute.xlu0 %1082
      %1084 = vrot.lane.b32.xlu0 %v1076, 106
      %v1085 = vpop.permute.xlu0 %1084
      %1089 = vst.msk [vmem:[#allocation2 + $0x48] sm:$0xf] %vm980, %v1081
      %1090 = vst.msk [vmem:[#allocation2 + $0x4c] sm:$0xf] %vm980, %v1083
      %1091 = vst.msk [vmem:[#allocation2 + $0x50] sm:$0xf] %vm980, %v1085
      %v1092 = vld [vmem:[#allocation3] sm:$0xf]
      %v1093 = vld [vmem:[#allocation3 + $0x4] sm:$0xf]
      %v1094 = vld [vmem:[#allocation3 + $0x8] sm:$0xf]
      %1098 = vrot.lane.b32.xlu0 %v1092, 105
      %v1099 = vpop.permute.xlu0 %1098
      %1100 = vrot.lane.b32.xlu0 %v1093, 105
      %v1101 = vpop.permute.xlu0 %1100
      %1102 = vrot.lane.b32.xlu0 %v1094, 105
      %v1103 = vpop.permute.xlu0 %1102
      %1107 = vst.msk [vmem:[#allocation2 + $0x54] sm:$0xf] %vm980, %v1099
      %1108 = vst.msk [vmem:[#allocation2 + $0x58] sm:$0xf] %vm980, %v1101
      %1109 = vst.msk [vmem:[#allocation2 + $0x5c] sm:$0xf] %vm980, %v1103
      %v1110 = vld [vmem:[#allocation3] sm:$0xf]
      %v1111 = vld [vmem:[#allocation3 + $0x4] sm:$0xf]
      %v1112 = vld [vmem:[#allocation3 + $0x8] sm:$0xf]
      %1116 = vrot.lane.b32.xlu0 %v1110, 104
      %v1117 = vpop.permute.xlu0 %1116
      %1118 = vrot.lane.b32.xlu0 %v1111, 104
      %v1119 = vpop.permute.xlu0 %1118
      %1120 = vrot.lane.b32.xlu0 %v1112, 104
      %v1121 = vpop.permute.xlu0 %1120
      %1125 = vst.msk [vmem:[#allocation2 + $0x60] sm:$0xf] %vm980, %v1117
      %1126 = vst.msk [vmem:[#allocation2 + $0x64] sm:$0xf] %vm980, %v1119
      %1127 = vst.msk [vmem:[#allocation2 + $0x68] sm:$0xf] %vm980, %v1121
      %v1128 = vld [vmem:[%s3] sm:$0xff]
      %v1129 = vld [vmem:[%s3 + $0x8] sm:$0xff]
      %v1130 = vld [vmem:[%s3 + $0x10] sm:$0xff]
      %v1131 = vld [vmem:[#allocation2] sm:$0xf]
      %v1132 = vld [vmem:[#allocation2 + $0x4] sm:$0xf]
      %v1133 = vld [vmem:[#allocation2 + $0x8] sm:$0xf]
      %v1134 = vld [vmem:[#allocation2 + $0xc] sm:$0xf]
      %v1135 = vld [vmem:[#allocation2 + $0x10] sm:$0xf]
      %v1136 = vld [vmem:[#allocation2 + $0x14] sm:$0xf]
      %v1137 = vld [vmem:[#allocation2 + $0x18] sm:$0xf]
      %v1138 = vld [vmem:[#allocation2 + $0x1c] sm:$0xf]
      %v1139 = vld [vmem:[#allocation2 + $0x20] sm:$0xf]
      %v1140 = vld [vmem:[#allocation2 + $0x24] sm:$0xf]
      %v1141 = vld [vmem:[#allocation2 + $0x28] sm:$0xf]
      %v1142 = vld [vmem:[#allocation2 + $0x2c] sm:$0xf]
      %v1143 = vld [vmem:[#allocation2 + $0x30] sm:$0xf]
      %v1144 = vld [vmem:[#allocation2 + $0x34] sm:$0xf]
      %v1145 = vld [vmem:[#allocation2 + $0x38] sm:$0xf]
      %v1146 = vld [vmem:[#allocation2 + $0x3c] sm:$0xf]
      %v1147 = vld [vmem:[#allocation2 + $0x40] sm:$0xf]
      %v1148 = vld [vmem:[#allocation2 + $0x44] sm:$0xf]
      %v1149 = vld [vmem:[#allocation2 + $0x48] sm:$0xf]
      %v1150 = vld [vmem:[#allocation2 + $0x4c] sm:$0xf]
      %v1151 = vld [vmem:[#allocation2 + $0x50] sm:$0xf]
      %v1152 = vld [vmem:[#allocation2 + $0x54] sm:$0xf]
      %v1153 = vld [vmem:[#allocation2 + $0x58] sm:$0xf]
      %v1154 = vld [vmem:[#allocation2 + $0x5c] sm:$0xf]
      %v1155 = vld [vmem:[#allocation2 + $0x60] sm:$0xf]
      %v1156 = vld [vmem:[#allocation2 + $0x64] sm:$0xf]
      %v1157 = vld [vmem:[#allocation2 + $0x68] sm:$0xf]
      %v1158 = vld [vmem:[%s4] sm:$0xff]
      %v1159 = vld [vmem:[%s4 + $0x8] sm:$0xff]
      %v1160 = vld [vmem:[%s4 + $0x10] sm:$0xff]
      %1162 = vset.pattern.permute.xlu0 0
      %1163 = vperm.xlu0 %1162, %v1158
      %v1164 = vpop.permute.xlu0 %1163
      %1167 = vset.pattern.permute.xlu0 0
      %1168 = vperm.xlu0 %1167, %v1159
      %v1169 = vpop.permute.xlu0 %1168
      %1172 = vset.pattern.permute.xlu0 0
      %1173 = vperm.xlu0 %1172, %v1160
      %v1174 = vpop.permute.xlu0 %1173
      %v1179 = vunpack.c.l.b16 %v1128
      %v1180 = vunpack.c.h.b16 %v1128
      %v1181 = vunpack.c.l.b16 %v1129
      %v1182 = vunpack.c.h.b16 %v1129
      %v1183 = vunpack.c.l.b16 %v1130
      %v1184 = vunpack.c.h.b16 %v1130
      %v1185 = vpack.c.b16 %v1181, %v1179
      %v1186 = vpack.c.b16 %v1182, %v1180
      %v1187 = vpack.c.b16 %v1183, %v1183
      %v1188 = vpack.c.b16 %v1184, %v1184
      %v1218 = vunpack.c.l.b16 %v1131
      %v1219 = vunpack.c.l.b16 %v1132
      %v1220 = vunpack.c.l.b16 %v1133
      %v1221 = vunpack.c.l.b16 %v1134
      %v1222 = vunpack.c.l.b16 %v1135
      %v1223 = vunpack.c.l.b16 %v1136
      %v1224 = vunpack.c.l.b16 %v1137
      %v1225 = vunpack.c.l.b16 %v1138
      %v1226 = vunpack.c.l.b16 %v1139
      %v1227 = vunpack.c.l.b16 %v1140
      %v1228 = vunpack.c.l.b16 %v1141
      %v1229 = vunpack.c.l.b16 %v1142
      %v1230 = vunpack.c.l.b16 %v1143
      %v1231 = vunpack.c.l.b16 %v1144
      %v1232 = vunpack.c.l.b16 %v1145
      %v1233 = vunpack.c.l.b16 %v1146
      %v1234 = vunpack.c.l.b16 %v1147
      %v1235 = vunpack.c.l.b16 %v1148
      %v1236 = vunpack.c.l.b16 %v1149
      %v1237 = vunpack.c.l.b16 %v1150
      %v1238 = vunpack.c.l.b16 %v1151
      %v1239 = vunpack.c.l.b16 %v1152
      %v1240 = vunpack.c.l.b16 %v1153
      %v1241 = vunpack.c.l.b16 %v1154
      %v1242 = vunpack.c.l.b16 %v1155
      %v1243 = vunpack.c.l.b16 %v1156
      %v1244 = vunpack.c.l.b16 %v1157
      %v1245 = vpack.c.b16 %v1219, %v1218
      %v1246 = vpack.c.b16 %v1221, %v1220
      %v1247 = vpack.c.b16 %v1223, %v1222
      %v1248 = vpack.c.b16 %v1225, %v1224
      %v1249 = vpack.c.b16 %v1227, %v1226
      %v1250 = vpack.c.b16 %v1229, %v1228
      %v1251 = vpack.c.b16 %v1231, %v1230
      %v1252 = vpack.c.b16 %v1233, %v1232
      %v1253 = vpack.c.b16 %v1235, %v1234
      %v1254 = vpack.c.b16 %v1237, %v1236
      %v1255 = vpack.c.b16 %v1239, %v1238
      %v1256 = vpack.c.b16 %v1241, %v1240
      %v1257 = vpack.c.b16 %v1243, %v1242
      %v1258 = vpack.c.b16 %v1244, %v1244
      %vm1272 = vcmask 719872
      %v1274 = vsel %vm1272, %v1186, 0
      %v1277 = vsel %vm1272, %v1188, 0
      %v1280 = vsel %vm810, %v1258, 0
      %1282 = vmatprep.subr.bf16.mxu0 0
      %1283 = vmatpush1.bf16.msra.mxu0 %v1252
      %1284 = vmatprep.subr.bf16.mxu0 0
      %1285 = vmatpush1.bf16.msra.mxu0 %v1251
      %1286 = vmatprep.subr.bf16.mxu0 0
      %1287 = vmatpush1.bf16.msra.mxu0 %v1250
      %1288 = vmatprep.subr.bf16.mxu0 0
      %1289 = vmatpush1.bf16.msra.mxu0 %v1249
      %1290 = vmatprep.subr.bf16.mxu0 0
      %1291 = vmatpush1.bf16.msra.mxu0 %v1248
      %1292 = vmatprep.subr.bf16.mxu0 0
      %1293 = vmatpush1.bf16.msra.mxu0 %v1247
      %1294 = vmatprep.subr.bf16.mxu0 0
      %1295 = vmatpush1.bf16.msra.mxu0 %v1246
      %1296 = vmatprep.subr.bf16.mxu0 0
      %1297 = vmatpush1.bf16.msra.mxu0 %v1245
      %1298 = vmatprep.subr.bf16.mxu0 0
      %1299 = vmatpush2.bf16.msra.mxu0 0
      %1300 = vmatprep.subr.bf16.mxu0 0
      %1301 = vmatpush2.bf16.msra.mxu0 0
      %1302 = vmatprep.subr.bf16.mxu0 0
      %1303 = vmatpush2.bf16.msra.mxu0 %v1280
      %1304 = vmatprep.subr.bf16.mxu0 0
      %1305 = vmatpush2.bf16.msra.mxu0 %v1257
      %1306 = vmatprep.subr.bf16.mxu0 0
      %1307 = vmatpush2.bf16.msra.mxu0 %v1256
      %1308 = vmatprep.subr.bf16.mxu0 0
      %1309 = vmatpush2.bf16.msra.mxu0 %v1255
      %1310 = vmatprep.subr.bf16.mxu0 0
      %1311 = vmatpush2.bf16.msra.mxu0 %v1254
      %1312 = vmatprep.subr.bf16.mxu0 0
      %1313 = vmatpush2.bf16.msra.mxu0 %v1253
      %1314 = vmatprep.mubr.bf16.mxu0 %v1274
      %1315 = vmatmul.mubr.bf16.gmra.mxu0 %v1185
      %v1316 = vpop.f32.mrf.mxu0
      %v1317 = vadd.f32 %v1164, %v1316
      %v1318 = vpop.f32.mrf.mxu0
      %v1319 = vpop.f32.mrf.mxu0
      %v1320 = vadd.f32 %v1169, %v1319
      %v1321 = vpop.f32.mrf.mxu0
      %1322 = vmatprep.mubr.bf16.mxu0 %v1277
      %1323 = vmatmul.mubr.bf16.gmra.mxu0 %v1187
      %v1324 = vpop.f32.mrf.mxu0
      %v1325 = vadd.f32 %v1174, %v1324
      %v1326 = vpop.f32.mrf.mxu0
      %v1327 = vpop.f32.mrf.mxu0
      %v1328 = vpop.f32.mrf.mxu0
      %1329 = vdwg.mxu0
      %v1330 = vmax.f32 %v1317, 0.0
      %v1331 = vmax.f32 %v1320, 0.0
      %v1332 = vmax.f32 %v1325, 0.0
      %v1333 = vpack.c.bf16 %v1331, %v1330
      %v1334 = vpack.c.bf16 %v1332, %v1332
      %v1335 = vld [vmem:[%s12] sm:$0xff]
      %v1336 = vld [vmem:[%s12 + $0x8] sm:$0xff]
      %v1337 = vld [vmem:[%s12 + $0x10] sm:$0xff]
      %v1338 = vld [vmem:[%s12 + $0x18] sm:$0xff]
      %v1339 = vld [vmem:[%s12 + $0x20] sm:$0xff]
      %v1340 = vld [vmem:[%s12 + $0x28] sm:$0xff]
      %v1341 = vld [vmem:[%s12 + $0x30] sm:$0xff]
      %v1342 = vld [vmem:[%s12 + $0x38] sm:$0xff]
      %v1343 = vld [vmem:[%s12 + $0x40] sm:$0xff]
      %v1344 = vld [vmem:[%s12 + $0x48] sm:$0xff]
      %v1345 = vld [vmem:[%s12 + $0x50] sm:$0xff]
      %v1346 = vld [vmem:[%s12 + $0x58] sm:$0xff]
      %v1347 = vld [vmem:[%s12 + $0x60] sm:$0x33]
      %v1361 = vunpack.c.l.b16 %v1335
      %v1362 = vunpack.c.h.b16 %v1335
      %v1363 = vunpack.c.l.b16 %v1336
      %v1364 = vunpack.c.h.b16 %v1336
      %v1365 = vunpack.c.l.b16 %v1337
      %v1366 = vunpack.c.h.b16 %v1337
      %v1367 = vunpack.c.l.b16 %v1338
      %v1368 = vunpack.c.h.b16 %v1338
      %v1369 = vunpack.c.l.b16 %v1339
      %v1370 = vunpack.c.h.b16 %v1339
      %v1371 = vunpack.c.l.b16 %v1340
      %v1372 = vunpack.c.h.b16 %v1340
      %v1373 = vunpack.c.l.b16 %v1341
      %v1374 = vunpack.c.h.b16 %v1341
      %v1375 = vunpack.c.l.b16 %v1342
      %v1376 = vunpack.c.h.b16 %v1342
      %v1377 = vunpack.c.l.b16 %v1343
      %v1378 = vunpack.c.h.b16 %v1343
      %v1379 = vunpack.c.l.b16 %v1344
      %v1380 = vunpack.c.h.b16 %v1344
      %v1381 = vunpack.c.l.b16 %v1345
      %v1382 = vunpack.c.h.b16 %v1345
      %v1383 = vunpack.c.l.b16 %v1346
      %v1384 = vunpack.c.h.b16 %v1346
      %v1385 = vunpack.c.l.b16 %v1347
      %v1386 = vunpack.c.h.b16 %v1347
      %v1387 = vpack.c.b16 %v1363, %v1361
      %v1388 = vpack.c.b16 %v1364, %v1362
      %v1389 = vpack.c.b16 %v1367, %v1365
      %v1390 = vpack.c.b16 %v1368, %v1366
      %v1391 = vpack.c.b16 %v1371, %v1369
      %v1392 = vpack.c.b16 %v1372, %v1370
      %v1393 = vpack.c.b16 %v1375, %v1373
      %v1394 = vpack.c.b16 %v1376, %v1374
      %v1395 = vpack.c.b16 %v1379, %v1377
      %v1396 = vpack.c.b16 %v1380, %v1378
      %v1397 = vpack.c.b16 %v1383, %v1381
      %v1398 = vpack.c.b16 %v1384, %v1382
      %v1399 = vpack.c.b16 %v1385, %v1385
      %v1400 = vpack.c.b16 %v1386, %v1386
      %vm1413 = vcmask 809984
      %v1415 = vsel %vm1413, %v1333, 0
      %v1418 = vsel %vm1413, %v1334, 0
      %vm1420 = vcmask 1040384
      %vm1421 = vcmask 1041408
      %v1422 = vsel %vm1420, 4294967295, 65535
      %v1423 = vsel %vm1421, %v1422, 0
      %v1425 = vand.u32 %v1399, %v1423
      %v1428 = vand.u32 %v1400, %v1423
      %1430 = vmatprep.subr.bf16.mxu0 0
      %1431 = vmatpush1.bf16.msra.mxu0 0
      %1432 = vmatprep.subr.bf16.mxu0 %v1428
      %1433 = vmatpush1.bf16.msra.mxu0 %v1425
      %1434 = vmatprep.subr.bf16.mxu0 %v1398
      %1435 = vmatpush1.bf16.msra.mxu0 %v1397
      %1436 = vmatprep.subr.bf16.mxu0 %v1396
      %1437 = vmatpush1.bf16.msra.mxu0 %v1395
      %1438 = vmatprep.subr.bf16.mxu0 %v1394
      %1439 = vmatpush1.bf16.msra.mxu0 %v1393
      %1440 = vmatprep.subr.bf16.mxu0 %v1392
      %1441 = vmatpush1.bf16.msra.mxu0 %v1391
      %1442 = vmatprep.subr.bf16.mxu0 %v1390
      %1443 = vmatpush1.bf16.msra.mxu0 %v1389
      %1444 = vmatprep.subr.bf16.mxu0 %v1388
      %1445 = vmatpush1.bf16.msra.mxu0 %v1387
      %1446 = vmatprep.subr.bf16.mxu0 0
      %1447 = vmatpush2.bf16.msra.mxu0 0
      %1448 = vmatprep.subr.bf16.mxu0 0
      %1449 = vmatpush2.bf16.msra.mxu0 0
      %1450 = vmatprep.subr.bf16.mxu0 0
      %1451 = vmatpush2.bf16.msra.mxu0 0
      %1452 = vmatprep.subr.bf16.mxu0 0
      %1453 = vmatpush2.bf16.msra.mxu0 0
      %1454 = vmatprep.subr.bf16.mxu0 0
      %1455 = vmatpush2.bf16.msra.mxu0 0
      %1456 = vmatprep.subr.bf16.mxu0 0
      %1457 = vmatpush2.bf16.msra.mxu0 0
      %1458 = vmatprep.subr.bf16.mxu0 0
      %1459 = vmatpush2.bf16.msra.mxu0 0
      %1460 = vmatprep.subr.bf16.mxu0 0
      %1461 = vmatpush2.bf16.msra.mxu0 0
      %1462 = vmatprep.mubr.bf16.mxu0 0
      %1463 = vmatmul.mubr.bf16.gmra.mxu0 %v1415
      %v1464 = vpop.f32.mrf.mxu0
      %v1465 = vadd.f32 0.0, %v1464
      %v1466 = vpop.f32.mrf.mxu0
      %v1467 = vadd.f32 0.0, %v1466
      %v1468 = vpop.f32.mrf.mxu0
      %v1469 = vadd.f32 0.0, %v1468
      %v1470 = vpop.f32.mrf.mxu0
      %v1471 = vadd.f32 0.0, %v1470
      %1472 = vmatprep.mubr.bf16.mxu0 0
      %1473 = vmatmul.mubr.bf16.gmra.mxu0 %v1418
      %v1474 = vpop.f32.mrf.mxu0
      %v1475 = vadd.f32 0.0, %v1474
      %v1476 = vpop.f32.mrf.mxu0
      %v1477 = vadd.f32 0.0, %v1476
      %v1478 = vpop.f32.mrf.mxu0
      %v1479 = vpop.f32.mrf.mxu0
      %1480 = vdwg.mxu0
      %v1481 = vpack.c.bf16 %v1469, %v1465
      %v1482 = vpack.c.bf16 %v1471, %v1467
      %v1483 = vpack.c.bf16 %v1475, %v1475
      %v1484 = vpack.c.bf16 %v1477, %v1477
      %v1489 = vunpack.c.l.b16 %v1481
      %v1490 = vunpack.c.l.b16 %v1482
      %v1491 = vunpack.c.h.b16 %v1481
      %v1492 = vunpack.c.h.b16 %v1482
      %v1493 = vunpack.c.l.b16 %v1483
      %v1494 = vunpack.c.l.b16 %v1484
      %v1495 = vpack.c.b16 %v1490, %v1489
      %v1496 = vpack.c.b16 %v1492, %v1491
      %v1497 = vpack.c.b16 %v1494, %v1493
      %vm1501 = vcmask 195588
      %vm1502 = vmor %vm1501, %vm810
      %1503 = vst.msk [vmem:[#allocation4] sm:$0xff] %vm1502, %v1495
      %1504 = vst.msk [vmem:[#allocation4 + $0x8] sm:$0xff] %vm1502, %v1496
      %1505 = vst.msk [vmem:[#allocation4 + $0x10] sm:$0xff] %vm1502, %v1497
      %v1506 = vld [vmem:[#allocation4] sm:$0xf]
      %v1507 = vld [vmem:[#allocation4 + $0x8] sm:$0xf]
      %v1508 = vld [vmem:[#allocation4 + $0x10] sm:$0xf]
      %vm1509 = vcmask 191488
      %1510 = vst.msk [vmem:[#allocation2] sm:$0xf] %vm1509, %v1506
      %1511 = vst.msk [vmem:[#allocation2 + $0x4] sm:$0xf] %vm1509, %v1507
      %1512 = vst.msk [vmem:[#allocation2 + $0x8] sm:$0xf] %vm1509, %v1508
      %v1513 = vld [vmem:[#allocation4] sm:$0xf]
      %v1514 = vld [vmem:[#allocation4 + $0x8] sm:$0xf]
      %v1515 = vld [vmem:[#allocation4 + $0x10] sm:$0xf]
      %1519 = vrot.lane.b32.xlu0 %v1513, 90
      %v1520 = vpop.permute.xlu0 %1519
      %1521 = vrot.lane.b32.xlu0 %v1514, 90
      %v1522 = vpop.permute.xlu0 %1521
      %1523 = vrot.lane.b32.xlu0 %v1515, 90
      %v1524 = vpop.permute.xlu0 %1523
      %1528 = vst.msk [vmem:[#allocation2 + $0xc] sm:$0xf] %vm1509, %v1520
      %1529 = vst.msk [vmem:[#allocation2 + $0x10] sm:$0xf] %vm1509, %v1522
      %1530 = vst.msk [vmem:[#allocation2 + $0x14] sm:$0xf] %vm1509, %v1524
      %v1531 = vld [vmem:[#allocation4] sm:$0xf]
      %v1532 = vld [vmem:[#allocation4 + $0x8] sm:$0xf]
      %v1533 = vld [vmem:[#allocation4 + $0x10] sm:$0xf]
      %1537 = vrot.lane.b32.xlu0 %v1531, 127
      %v1538 = vpop.permute.xlu0 %1537
      %1539 = vrot.lane.b32.xlu0 %v1532, 127
      %v1540 = vpop.permute.xlu0 %1539
      %1541 = vrot.lane.b32.xlu0 %v1533, 127
      %v1542 = vpop.permute.xlu0 %1541
      %1546 = vst.msk [vmem:[#allocation2 + $0x18] sm:$0xf] %vm1509, %v1538
      %1547 = vst.msk [vmem:[#allocation2 + $0x1c] sm:$0xf] %vm1509, %v1540
      %1548 = vst.msk [vmem:[#allocation2 + $0x20] sm:$0xf] %vm1509, %v1542
      %v1549 = vld [vmem:[#allocation4] sm:$0xf]
      %v1550 = vld [vmem:[#allocation4 + $0x8] sm:$0xf]
      %v1551 = vld [vmem:[#allocation4 + $0x10] sm:$0xf]
      %1555 = vrot.lane.b32.xlu0 %v1549, 89
      %v1556 = vpop.permute.xlu0 %1555
      %1557 = vrot.lane.b32.xlu0 %v1550, 89
      %v1558 = vpop.permute.xlu0 %1557
      %1559 = vrot.lane.b32.xlu0 %v1551, 89
      %v1560 = vpop.permute.xlu0 %1559
      %1564 = vst.msk [vmem:[#allocation2 + $0x24] sm:$0xf] %vm1509, %v1556
      %1565 = vst.msk [vmem:[#allocation2 + $0x28] sm:$0xf] %vm1509, %v1558
      %1566 = vst.msk [vmem:[#allocation2 + $0x2c] sm:$0xf] %vm1509, %v1560
      %v1567 = vld [vmem:[#allocation4] sm:$0xf]
      %v1568 = vld [vmem:[#allocation4 + $0x8] sm:$0xf]
      %v1569 = vld [vmem:[#allocation4 + $0x10] sm:$0xf]
      %1573 = vrot.lane.b32.xlu0 %v1567, 126
      %v1574 = vpop.permute.xlu0 %1573
      %1575 = vrot.lane.b32.xlu0 %v1568, 126
      %v1576 = vpop.permute.xlu0 %1575
      %1577 = vrot.lane.b32.xlu0 %v1569, 126
      %v1578 = vpop.permute.xlu0 %1577
      %1582 = vst.msk [vmem:[#allocation2 + $0x30] sm:$0xf] %vm1509, %v1574
      %1583 = vst.msk [vmem:[#allocation2 + $0x34] sm:$0xf] %vm1509, %v1576
      %1584 = vst.msk [vmem:[#allocation2 + $0x38] sm:$0xf] %vm1509, %v1578
      %v1585 = vld [vmem:[#allocation4] sm:$0xf]
      %v1586 = vld [vmem:[#allocation4 + $0x8] sm:$0xf]
      %v1587 = vld [vmem:[#allocation4 + $0x10] sm:$0xf]
      %1591 = vrot.lane.b32.xlu0 %v1585, 52
      %v1592 = vpop.permute.xlu0 %1591
      %1593 = vrot.lane.b32.xlu0 %v1586, 52
      %v1594 = vpop.permute.xlu0 %1593
      %1595 = vrot.lane.b32.xlu0 %v1587, 52
      %v1596 = vpop.permute.xlu0 %1595
      %1600 = vst.msk [vmem:[#allocation2 + $0x3c] sm:$0xf] %vm1509, %v1592
      %1601 = vst.msk [vmem:[#allocation2 + $0x40] sm:$0xf] %vm1509, %v1594
      %1602 = vst.msk [vmem:[#allocation2 + $0x44] sm:$0xf] %vm1509, %v1596
      %v1603 = vld [vmem:[#allocation4] sm:$0xff]
      %v1604 = vld [vmem:[#allocation4 + $0x8] sm:$0xff]
      %v1605 = vld [vmem:[#allocation4 + $0x10] sm:$0xff]
      %1609 = vrot.lane.b32.xlu0 %v1603, 14
      %v1610 = vpop.permute.xlu0 %1609
      %1611 = vrot.lane.b32.xlu0 %v1604, 14
      %v1612 = vpop.permute.xlu0 %1611
      %1613 = vrot.lane.b32.xlu0 %v1605, 14
      %v1614 = vpop.permute.xlu0 %1613
      %v1615 = vrot.slane %v1610, 4
      %v1616 = vrot.slane %v1612, 4
      %v1617 = vrot.slane %v1614, 4
      %vm1618 = vcmask 113664
      %v1619 = vsel %vm1618, %v1610, %v1615
      %v1620 = vsel %vm1618, %v1612, %v1616
      %v1621 = vsel %vm1618, %v1614, %v1617
      %1625 = vst.msk [vmem:[#allocation2 + $0x48] sm:$0xf] %vm1509, %v1619
      %1626 = vst.msk [vmem:[#allocation2 + $0x4c] sm:$0xf] %vm1509, %v1620
      %1627 = vst.msk [vmem:[#allocation2 + $0x50] sm:$0xf] %vm1509, %v1621
      %v1628 = vld [vmem:[#allocation4] sm:$0xf]
      %v1629 = vld [vmem:[#allocation4 + $0x8] sm:$0xf]
      %v1630 = vld [vmem:[#allocation4 + $0x10] sm:$0xf]
      %1634 = vrot.lane.b32.xlu0 %v1628, 51
      %v1635 = vpop.permute.xlu0 %1634
      %1636 = vrot.lane.b32.xlu0 %v1629, 51
      %v1637 = vpop.permute.xlu0 %1636
      %1638 = vrot.lane.b32.xlu0 %v1630, 51
      %v1639 = vpop.permute.xlu0 %1638
      %1643 = vst.msk [vmem:[#allocation2 + $0x54] sm:$0xf] %vm1509, %v1635
      %1644 = vst.msk [vmem:[#allocation2 + $0x58] sm:$0xf] %vm1509, %v1637
      %1645 = vst.msk [vmem:[#allocation2 + $0x5c] sm:$0xf] %vm1509, %v1639
      %v1646 = vld [vmem:[#allocation4] sm:$0xff]
      %v1647 = vld [vmem:[#allocation4 + $0x8] sm:$0xff]
      %v1648 = vld [vmem:[#allocation4 + $0x10] sm:$0xff]
      %1652 = vrot.lane.b32.xlu0 %v1646, 13
      %v1653 = vpop.permute.xlu0 %1652
      %1654 = vrot.lane.b32.xlu0 %v1647, 13
      %v1655 = vpop.permute.xlu0 %1654
      %1656 = vrot.lane.b32.xlu0 %v1648, 13
      %v1657 = vpop.permute.xlu0 %1656
      %v1658 = vrot.slane %v1653, 4
      %v1659 = vrot.slane %v1655, 4
      %v1660 = vrot.slane %v1657, 4
      %vm1661 = vcmask 105472
      %v1662 = vsel %vm1661, %v1653, %v1658
      %v1663 = vsel %vm1661, %v1655, %v1659
      %v1664 = vsel %vm1661, %v1657, %v1660
      %1668 = vst.msk [vmem:[#allocation2 + $0x60] sm:$0xf] %vm1509, %v1662
      %1669 = vst.msk [vmem:[#allocation2 + $0x64] sm:$0xf] %vm1509, %v1663
      %1670 = vst.msk [vmem:[#allocation2 + $0x68] sm:$0xf] %vm1509, %v1664
      %v1671 = vld [vmem:[#allocation4] sm:$0xf]
      %v1672 = vld [vmem:[#allocation4 + $0x8] sm:$0xf]
      %v1673 = vld [vmem:[#allocation4 + $0x10] sm:$0xf]
      %1677 = vrot.lane.b32.xlu0 %v1671, 50
      %v1678 = vpop.permute.xlu0 %1677
      %1679 = vrot.lane.b32.xlu0 %v1672, 50
      %v1680 = vpop.permute.xlu0 %1679
      %1681 = vrot.lane.b32.xlu0 %v1673, 50
      %v1682 = vpop.permute.xlu0 %1681
      %1686 = vst.msk [vmem:[#allocation2 + $0x6c] sm:$0xf] %vm1509, %v1678
      %1687 = vst.msk [vmem:[#allocation2 + $0x70] sm:$0xf] %vm1509, %v1680
      %1688 = vst.msk [vmem:[#allocation2 + $0x74] sm:$0xf] %vm1509, %v1682
      %v1689 = vld [vmem:[#allocation4] sm:$0xf]
      %v1690 = vld [vmem:[#allocation4 + $0x8] sm:$0xf]
      %v1691 = vld [vmem:[#allocation4 + $0x10] sm:$0xf]
      %1695 = vrot.lane.b32.xlu0 %v1689, 122
      %v1696 = vpop.permute.xlu0 %1695
      %1697 = vrot.lane.b32.xlu0 %v1690, 122
      %v1698 = vpop.permute.xlu0 %1697
      %1699 = vrot.lane.b32.xlu0 %v1691, 122
      %v1700 = vpop.permute.xlu0 %1699
      %1704 = vst.msk [vmem:[#allocation2 + $0x78] sm:$0xf] %vm1509, %v1696
      %1705 = vst.msk [vmem:[#allocation2 + $0x7c] sm:$0xf] %vm1509, %v1698
      %1706 = vst.msk [vmem:[#allocation2 + $0x80] sm:$0xf] %vm1509, %v1700
      %v1707 = vld [vmem:[#allocation4] sm:$0xf]
      %v1708 = vld [vmem:[#allocation4 + $0x8] sm:$0xf]
      %v1709 = vld [vmem:[#allocation4 + $0x10] sm:$0xf]
      %1713 = vrot.lane.b32.xlu0 %v1707, 84
      %v1714 = vpop.permute.xlu0 %1713
      %1715 = vrot.lane.b32.xlu0 %v1708, 84
      %v1716 = vpop.permute.xlu0 %1715
      %1717 = vrot.lane.b32.xlu0 %v1709, 84
      %v1718 = vpop.permute.xlu0 %1717
      %1722 = vst.msk [vmem:[#allocation2 + $0x84] sm:$0xf] %vm1509, %v1714
      %1723 = vst.msk [vmem:[#allocation2 + $0x88] sm:$0xf] %vm1509, %v1716
      %1724 = vst.msk [vmem:[#allocation2 + $0x8c] sm:$0xf] %vm1509, %v1718
      %v1725 = vld [vmem:[#allocation4] sm:$0xf]
      %v1726 = vld [vmem:[#allocation4 + $0x8] sm:$0xf]
      %v1727 = vld [vmem:[#allocation4 + $0x10] sm:$0xf]
      %1731 = vrot.lane.b32.xlu0 %v1725, 121
      %v1732 = vpop.permute.xlu0 %1731
      %1733 = vrot.lane.b32.xlu0 %v1726, 121
      %v1734 = vpop.permute.xlu0 %1733
      %1735 = vrot.lane.b32.xlu0 %v1727, 121
      %v1736 = vpop.permute.xlu0 %1735
      %1740 = vst.msk [vmem:[#allocation2 + $0x90] sm:$0xf] %vm1509, %v1732
      %1741 = vst.msk [vmem:[#allocation2 + $0x94] sm:$0xf] %vm1509, %v1734
      %1742 = vst.msk [vmem:[#allocation2 + $0x98] sm:$0xf] %vm1509, %v1736
      %v1743 = vld [vmem:[#allocation4] sm:$0xf]
      %v1744 = vld [vmem:[#allocation4 + $0x8] sm:$0xf]
      %v1745 = vld [vmem:[#allocation4 + $0x10] sm:$0xf]
      %1749 = vrot.lane.b32.xlu0 %v1743, 83
      %v1750 = vpop.permute.xlu0 %1749
      %1751 = vrot.lane.b32.xlu0 %v1744, 83
      %v1752 = vpop.permute.xlu0 %1751
      %1753 = vrot.lane.b32.xlu0 %v1745, 83
      %v1754 = vpop.permute.xlu0 %1753
      %1758 = vst.msk [vmem:[#allocation2 + $0x9c] sm:$0xf] %vm1509, %v1750
      %1759 = vst.msk [vmem:[#allocation2 + $0xa0] sm:$0xf] %vm1509, %v1752
      %1760 = vst.msk [vmem:[#allocation2 + $0xa4] sm:$0xf] %vm1509, %v1754
      %v1761 = vld [vmem:[#allocation4] sm:$0xf]
      %v1762 = vld [vmem:[#allocation4 + $0x8] sm:$0xf]
      %v1763 = vld [vmem:[#allocation4 + $0x10] sm:$0xf]
      %1767 = vrot.lane.b32.xlu0 %v1761, 120
      %v1768 = vpop.permute.xlu0 %1767
      %1769 = vrot.lane.b32.xlu0 %v1762, 120
      %v1770 = vpop.permute.xlu0 %1769
      %1771 = vrot.lane.b32.xlu0 %v1763, 120
      %v1772 = vpop.permute.xlu0 %1771
      %1776 = vst.msk [vmem:[#allocation2 + $0xa8] sm:$0xf] %vm1509, %v1768
      %1777 = vst.msk [vmem:[#allocation2 + $0xac] sm:$0xf] %vm1509, %v1770
      %1778 = vst.msk [vmem:[#allocation2 + $0xb0] sm:$0xf] %vm1509, %v1772
      %v1779 = vld [vmem:[#allocation4] sm:$0xf]
      %v1780 = vld [vmem:[#allocation4 + $0x8] sm:$0xf]
      %v1781 = vld [vmem:[#allocation4 + $0x10] sm:$0xf]
      %1785 = vrot.lane.b32.xlu0 %v1779, 46
      %v1786 = vpop.permute.xlu0 %1785
      %1787 = vrot.lane.b32.xlu0 %v1780, 46
      %v1788 = vpop.permute.xlu0 %1787
      %1789 = vrot.lane.b32.xlu0 %v1781, 46
      %v1790 = vpop.permute.xlu0 %1789
      %1794 = vst.msk [vmem:[#allocation2 + $0xb4] sm:$0xf] %vm1509, %v1786
      %1795 = vst.msk [vmem:[#allocation2 + $0xb8] sm:$0xf] %vm1509, %v1788
      %1796 = vst.msk [vmem:[#allocation2 + $0xbc] sm:$0xf] %vm1509, %v1790
      %v1797 = vld [vmem:[#allocation4] sm:$0xff]
      %v1798 = vld [vmem:[#allocation4 + $0x8] sm:$0xff]
      %v1799 = vld [vmem:[#allocation4 + $0x10] sm:$0xff]
      %1803 = vrot.lane.b32.xlu0 %v1797, 8
      %v1804 = vpop.permute.xlu0 %1803
      %1805 = vrot.lane.b32.xlu0 %v1798, 8
      %v1806 = vpop.permute.xlu0 %1805
      %1807 = vrot.lane.b32.xlu0 %v1799, 8
      %v1808 = vpop.permute.xlu0 %1807
      %v1809 = vrot.slane %v1804, 4
      %v1810 = vrot.slane %v1806, 4
      %v1811 = vrot.slane %v1808, 4
      %vm1812 = vcmask 64512
      %v1813 = vsel %vm1812, %v1804, %v1809
      %v1814 = vsel %vm1812, %v1806, %v1810
      %v1815 = vsel %vm1812, %v1808, %v1811
      %1819 = vst.msk [vmem:[#allocation2 + $0xc0] sm:$0xf] %vm1509, %v1813
      %1820 = vst.msk [vmem:[#allocation2 + $0xc4] sm:$0xf] %vm1509, %v1814
      %1821 = vst.msk [vmem:[#allocation2 + $0xc8] sm:$0xf] %vm1509, %v1815
      %v1822 = vld [vmem:[#allocation4] sm:$0xf]
      %v1823 = vld [vmem:[#allocation4 + $0x8] sm:$0xf]
      %v1824 = vld [vmem:[#allocation4 + $0x10] sm:$0xf]
      %1828 = vrot.lane.b32.xlu0 %v1822, 45
      %v1829 = vpop.permute.xlu0 %1828
      %1830 = vrot.lane.b32.xlu0 %v1823, 45
      %v1831 = vpop.permute.xlu0 %1830
      %1832 = vrot.lane.b32.xlu0 %v1824, 45
      %v1833 = vpop.permute.xlu0 %1832
      %1837 = vst.msk [vmem:[#allocation2 + $0xcc] sm:$0xf] %vm1509, %v1829
      %1838 = vst.msk [vmem:[#allocation2 + $0xd0] sm:$0xf] %vm1509, %v1831
      %1839 = vst.msk [vmem:[#allocation2 + $0xd4] sm:$0xf] %vm1509, %v1833
      %v1840 = vld [vmem:[#allocation4] sm:$0xff]
      %v1841 = vld [vmem:[#allocation4 + $0x8] sm:$0xff]
      %v1842 = vld [vmem:[#allocation4 + $0x10] sm:$0xff]
      %1846 = vrot.lane.b32.xlu0 %v1840, 7
      %v1847 = vpop.permute.xlu0 %1846
      %1848 = vrot.lane.b32.xlu0 %v1841, 7
      %v1849 = vpop.permute.xlu0 %1848
      %1850 = vrot.lane.b32.xlu0 %v1842, 7
      %v1851 = vpop.permute.xlu0 %1850
      %v1852 = vrot.slane %v1847, 4
      %v1853 = vrot.slane %v1849, 4
      %v1854 = vrot.slane %v1851, 4
      %v1855 = vsel %vm540, %v1847, %v1852
      %v1856 = vsel %vm540, %v1849, %v1853
      %v1857 = vsel %vm540, %v1851, %v1854
      %1861 = vst.msk [vmem:[#allocation2 + $0xd8] sm:$0xf] %vm1509, %v1855
      %1862 = vst.msk [vmem:[#allocation2 + $0xdc] sm:$0xf] %vm1509, %v1856
      %1863 = vst.msk [vmem:[#allocation2 + $0xe0] sm:$0xf] %vm1509, %v1857
      %v1864 = vld [vmem:[#allocation4] sm:$0xf]
      %v1865 = vld [vmem:[#allocation4 + $0x8] sm:$0xf]
      %v1866 = vld [vmem:[#allocation4 + $0x10] sm:$0xf]
      %1870 = vrot.lane.b32.xlu0 %v1864, 44
      %v1871 = vpop.permute.xlu0 %1870
      %1872 = vrot.lane.b32.xlu0 %v1865, 44
      %v1873 = vpop.permute.xlu0 %1872
      %1874 = vrot.lane.b32.xlu0 %v1866, 44
      %v1875 = vpop.permute.xlu0 %1874
      %1879 = vst.msk [vmem:[#allocation2 + $0xe4] sm:$0xf] %vm1509, %v1871
      %1880 = vst.msk [vmem:[#allocation2 + $0xe8] sm:$0xf] %vm1509, %v1873
      %1881 = vst.msk [vmem:[#allocation2 + $0xec] sm:$0xf] %vm1509, %v1875
      %v1882 = vld [vmem:[#allocation4] sm:$0xf]
      %v1883 = vld [vmem:[#allocation4 + $0x8] sm:$0xf]
      %v1884 = vld [vmem:[#allocation4 + $0x10] sm:$0xf]
      %1888 = vrot.lane.b32.xlu0 %v1882, 116
      %v1889 = vpop.permute.xlu0 %1888
      %1890 = vrot.lane.b32.xlu0 %v1883, 116
      %v1891 = vpop.permute.xlu0 %1890
      %1892 = vrot.lane.b32.xlu0 %v1884, 116
      %v1893 = vpop.permute.xlu0 %1892
      %1897 = vst.msk [vmem:[#allocation2 + $0xf0] sm:$0xf] %vm1509, %v1889
      %1898 = vst.msk [vmem:[#allocation2 + $0xf4] sm:$0xf] %vm1509, %v1891
      %1899 = vst.msk [vmem:[#allocation2 + $0xf8] sm:$0xf] %vm1509, %v1893
      %v1900 = vld [vmem:[#allocation4] sm:$0xf]
      %v1901 = vld [vmem:[#allocation4 + $0x8] sm:$0xf]
      %v1902 = vld [vmem:[#allocation4 + $0x10] sm:$0xf]
      %1906 = vrot.lane.b32.xlu0 %v1900, 78
      %v1907 = vpop.permute.xlu0 %1906
      %1908 = vrot.lane.b32.xlu0 %v1901, 78
      %v1909 = vpop.permute.xlu0 %1908
      %1910 = vrot.lane.b32.xlu0 %v1902, 78
      %v1911 = vpop.permute.xlu0 %1910
      %1915 = vst.msk [vmem:[#allocation2 + $0xfc] sm:$0xf] %vm1509, %v1907
      %1916 = vst.msk [vmem:[#allocation2 + $0x100] sm:$0xf] %vm1509, %v1909
      %1917 = vst.msk [vmem:[#allocation2 + $0x104] sm:$0xf] %vm1509, %v1911
      %v1918 = vld [vmem:[#allocation4] sm:$0xf]
      %v1919 = vld [vmem:[#allocation4 + $0x8] sm:$0xf]
      %v1920 = vld [vmem:[#allocation4 + $0x10] sm:$0xf]
      %1924 = vrot.lane.b32.xlu0 %v1918, 115
      %v1925 = vpop.permute.xlu0 %1924
      %1926 = vrot.lane.b32.xlu0 %v1919, 115
      %v1927 = vpop.permute.xlu0 %1926
      %1928 = vrot.lane.b32.xlu0 %v1920, 115
      %v1929 = vpop.permute.xlu0 %1928
      %1933 = vst.msk [vmem:[#allocation2 + $0x108] sm:$0xf] %vm1509, %v1925
      %1934 = vst.msk [vmem:[#allocation2 + $0x10c] sm:$0xf] %vm1509, %v1927
      %1935 = vst.msk [vmem:[#allocation2 + $0x110] sm:$0xf] %vm1509, %v1929
      %v1936 = vld [vmem:[#allocation4] sm:$0xf]
      %v1937 = vld [vmem:[#allocation4 + $0x8] sm:$0xf]
      %v1938 = vld [vmem:[#allocation4 + $0x10] sm:$0xf]
      %1942 = vrot.lane.b32.xlu0 %v1936, 77
      %v1943 = vpop.permute.xlu0 %1942
      %1944 = vrot.lane.b32.xlu0 %v1937, 77
      %v1945 = vpop.permute.xlu0 %1944
      %1946 = vrot.lane.b32.xlu0 %v1938, 77
      %v1947 = vpop.permute.xlu0 %1946
      %1951 = vst.msk [vmem:[#allocation2 + $0x114] sm:$0xf] %vm1509, %v1943
      %1952 = vst.msk [vmem:[#allocation2 + $0x118] sm:$0xf] %vm1509, %v1945
      %1953 = vst.msk [vmem:[#allocation2 + $0x11c] sm:$0xf] %vm1509, %v1947
      %v1954 = vld [vmem:[#allocation4] sm:$0xf]
      %v1955 = vld [vmem:[#allocation4 + $0x8] sm:$0xf]
      %v1956 = vld [vmem:[#allocation4 + $0x10] sm:$0xf]
      %1960 = vrot.lane.b32.xlu0 %v1954, 114
      %v1961 = vpop.permute.xlu0 %1960
      %1962 = vrot.lane.b32.xlu0 %v1955, 114
      %v1963 = vpop.permute.xlu0 %1962
      %1964 = vrot.lane.b32.xlu0 %v1956, 114
      %v1965 = vpop.permute.xlu0 %1964
      %1969 = vst.msk [vmem:[#allocation2 + $0x120] sm:$0xf] %vm1509, %v1961
      %1970 = vst.msk [vmem:[#allocation2 + $0x124] sm:$0xf] %vm1509, %v1963
      %1971 = vst.msk [vmem:[#allocation2 + $0x128] sm:$0xf] %vm1509, %v1965
      %v1972 = vld [vmem:[%s5] sm:$0xff]
      %v1973 = vld [vmem:[%s5 + $0x8] sm:$0xff]
      %v1974 = vld [vmem:[%s5 + $0x10] sm:$0xf]
      %v1975 = vld [vmem:[%s5 + $0x14] sm:$0xff]
      %v1976 = vld [vmem:[%s5 + $0x1c] sm:$0xff]
      %v1977 = vld [vmem:[%s5 + $0x24] sm:$0xf]
      %v1978 = vld [vmem:[%s5 + $0x28] sm:$0xff]
      %v1979 = vld [vmem:[%s5 + $0x30] sm:$0xff]
      %v1980 = vld [vmem:[%s5 + $0x38] sm:$0xf]
      %v1981 = vld [vmem:[#allocation2] sm:$0xf]
      %v1982 = vld [vmem:[#allocation2 + $0x4] sm:$0xf]
      %v1983 = vld [vmem:[#allocation2 + $0x8] sm:$0xf]
      %v1984 = vld [vmem:[#allocation2 + $0xc] sm:$0xf]
      %v1985 = vld [vmem:[#allocation2 + $0x10] sm:$0xf]
      %v1986 = vld [vmem:[#allocation2 + $0x14] sm:$0xf]
      %v1987 = vld [vmem:[#allocation2 + $0x18] sm:$0xf]
      %v1988 = vld [vmem:[#allocation2 + $0x1c] sm:$0xf]
      %v1989 = vld [vmem:[#allocation2 + $0x20] sm:$0xf]
      %v1990 = vld [vmem:[#allocation2 + $0x24] sm:$0xf]
      %v1991 = vld [vmem:[#allocation2 + $0x28] sm:$0xf]
      %v1992 = vld [vmem:[#allocation2 + $0x2c] sm:$0xf]
      %v1993 = vld [vmem:[#allocation2 + $0x30] sm:$0xf]
      %v1994 = vld [vmem:[#allocation2 + $0x34] sm:$0xf]
      %v1995 = vld [vmem:[#allocation2 + $0x38] sm:$0xf]
      %v1996 = vld [vmem:[#allocation2 + $0x3c] sm:$0xf]
      %v1997 = vld [vmem:[#allocation2 + $0x40] sm:$0xf]
      %v1998 = vld [vmem:[#allocation2 + $0x44] sm:$0xf]
      %v1999 = vld [vmem:[#allocation2 + $0x48] sm:$0xf]
      %v2000 = vld [vmem:[#allocation2 + $0x4c] sm:$0xf]
      %v2001 = vld [vmem:[#allocation2 + $0x50] sm:$0xf]
      %v2002 = vld [vmem:[#allocation2 + $0x54] sm:$0xf]
      %v2003 = vld [vmem:[#allocation2 + $0x58] sm:$0xf]
      %v2004 = vld [vmem:[#allocation2 + $0x5c] sm:$0xf]
      %v2005 = vld [vmem:[#allocation2 + $0x60] sm:$0xf]
      %v2006 = vld [vmem:[#allocation2 + $0x64] sm:$0xf]
      %v2007 = vld [vmem:[#allocation2 + $0x68] sm:$0xf]
      %v2008 = vld [vmem:[#allocation2 + $0x6c] sm:$0xf]
      %v2009 = vld [vmem:[#allocation2 + $0x70] sm:$0xf]
      %v2010 = vld [vmem:[#allocation2 + $0x74] sm:$0xf]
      %v2011 = vld [vmem:[#allocation2 + $0x78] sm:$0xf]
      %v2012 = vld [vmem:[#allocation2 + $0x7c] sm:$0xf]
      %v2013 = vld [vmem:[#allocation2 + $0x80] sm:$0xf]
      %v2014 = vld [vmem:[#allocation2 + $0x84] sm:$0xf]
      %v2015 = vld [vmem:[#allocation2 + $0x88] sm:$0xf]
      %v2016 = vld [vmem:[#allocation2 + $0x8c] sm:$0xf]
      %v2017 = vld [vmem:[#allocation2 + $0x90] sm:$0xf]
      %v2018 = vld [vmem:[#allocation2 + $0x94] sm:$0xf]
      %v2019 = vld [vmem:[#allocation2 + $0x98] sm:$0xf]
      %v2020 = vld [vmem:[#allocation2 + $0x9c] sm:$0xf]
      %v2021 = vld [vmem:[#allocation2 + $0xa0] sm:$0xf]
      %v2022 = vld [vmem:[#allocation2 + $0xa4] sm:$0xf]
      %v2023 = vld [vmem:[#allocation2 + $0xa8] sm:$0xf]
      %v2024 = vld [vmem:[#allocation2 + $0xac] sm:$0xf]
      %v2025 = vld [vmem:[#allocation2 + $0xb0] sm:$0xf]
      %v2026 = vld [vmem:[#allocation2 + $0xb4] sm:$0xf]
      %v2027 = vld [vmem:[#allocation2 + $0xb8] sm:$0xf]
      %v2028 = vld [vmem:[#allocation2 + $0xbc] sm:$0xf]
      %v2029 = vld [vmem:[#allocation2 + $0xc0] sm:$0xf]
      %v2030 = vld [vmem:[#allocation2 + $0xc4] sm:$0xf]
      %v2031 = vld [vmem:[#allocation2 + $0xc8] sm:$0xf]
      %v2032 = vld [vmem:[#allocation2 + $0xcc] sm:$0xf]
      %v2033 = vld [vmem:[#allocation2 + $0xd0] sm:$0xf]
      %v2034 = vld [vmem:[#allocation2 + $0xd4] sm:$0xf]
      %v2035 = vld [vmem:[#allocation2 + $0xd8] sm:$0xf]
      %v2036 = vld [vmem:[#allocation2 + $0xdc] sm:$0xf]
      %v2037 = vld [vmem:[#allocation2 + $0xe0] sm:$0xf]
      %v2038 = vld [vmem:[#allocation2 + $0xe4] sm:$0xf]
      %v2039 = vld [vmem:[#allocation2 + $0xe8] sm:$0xf]
      %v2040 = vld [vmem:[#allocation2 + $0xec] sm:$0xf]
      %v2041 = vld [vmem:[#allocation2 + $0xf0] sm:$0xf]
      %v2042 = vld [vmem:[#allocation2 + $0xf4] sm:$0xf]
      %v2043 = vld [vmem:[#allocation2 + $0xf8] sm:$0xf]
      %v2044 = vld [vmem:[#allocation2 + $0xfc] sm:$0xf]
      %v2045 = vld [vmem:[#allocation2 + $0x100] sm:$0xf]
      %v2046 = vld [vmem:[#allocation2 + $0x104] sm:$0xf]
      %v2047 = vld [vmem:[#allocation2 + $0x108] sm:$0xf]
      %v2048 = vld [vmem:[#allocation2 + $0x10c] sm:$0xf]
      %v2049 = vld [vmem:[#allocation2 + $0x110] sm:$0xf]
      %v2050 = vld [vmem:[#allocation2 + $0x114] sm:$0xf]
      %v2051 = vld [vmem:[#allocation2 + $0x118] sm:$0xf]
      %v2052 = vld [vmem:[#allocation2 + $0x11c] sm:$0xf]
      %v2053 = vld [vmem:[#allocation2 + $0x120] sm:$0xf]
      %v2054 = vld [vmem:[#allocation2 + $0x124] sm:$0xf]
      %v2055 = vld [vmem:[#allocation2 + $0x128] sm:$0xf]
      %v2056 = vld [vmem:[%s6] sm:$0xff]
      %v2057 = vld [vmem:[%s6 + $0x8] sm:$0xff]
      %v2058 = vld [vmem:[%s6 + $0x10] sm:$0xff]
      %2060 = vset.pattern.permute.xlu0 0
      %2061 = vperm.xlu0 %2060, %v2056
      %v2062 = vpop.permute.xlu0 %2061
      %2065 = vset.pattern.permute.xlu0 0
      %2066 = vperm.xlu0 %2065, %v2057
      %v2067 = vpop.permute.xlu0 %2066
      %2070 = vset.pattern.permute.xlu0 0
      %2071 = vperm.xlu0 %2070, %v2058
      %v2072 = vpop.permute.xlu0 %2071
      %v2083 = vunpack.c.l.b16 %v1972
      %v2084 = vunpack.c.h.b16 %v1972
      %v2085 = vunpack.c.l.b16 %v1973
      %v2086 = vunpack.c.h.b16 %v1973
      %v2087 = vunpack.c.l.b16 %v1974
      %v2088 = vunpack.c.l.b16 %v1975
      %v2089 = vunpack.c.h.b16 %v1975
      %v2090 = vunpack.c.l.b16 %v1976
      %v2091 = vunpack.c.h.b16 %v1976
      %v2092 = vunpack.c.l.b16 %v1977
      %v2093 = vunpack.c.l.b16 %v1978
      %v2094 = vunpack.c.h.b16 %v1978
      %v2095 = vunpack.c.l.b16 %v1979
      %v2096 = vunpack.c.h.b16 %v1979
      %v2097 = vunpack.c.l.b16 %v1980
      %v2098 = vpack.c.b16 %v2088, %v2083
      %v2099 = vpack.c.b16 %v2089, %v2084
      %v2100 = vpack.c.b16 %v2090, %v2085
      %v2101 = vpack.c.b16 %v2091, %v2086
      %v2102 = vpack.c.b16 %v2092, %v2087
      %v2103 = vpack.c.b16 %v2093, %v2093
      %v2104 = vpack.c.b16 %v2094, %v2094
      %v2105 = vpack.c.b16 %v2095, %v2095
      %v2106 = vpack.c.b16 %v2096, %v2096
      %v2107 = vpack.c.b16 %v2097, %v2097
      %v2191 = vunpack.c.l.b16 %v1981
      %v2192 = vunpack.c.l.b16 %v1982
      %v2193 = vunpack.c.l.b16 %v1983
      %v2194 = vunpack.c.l.b16 %v1984
      %v2195 = vunpack.c.l.b16 %v1985
      %v2196 = vunpack.c.l.b16 %v1986
      %v2197 = vunpack.c.l.b16 %v1987
      %v2198 = vunpack.c.l.b16 %v1988
      %v2199 = vunpack.c.l.b16 %v1989
      %v2200 = vunpack.c.l.b16 %v1990
      %v2201 = vunpack.c.l.b16 %v1991
      %v2202 = vunpack.c.l.b16 %v1992
      %v2203 = vunpack.c.l.b16 %v1993
      %v2204 = vunpack.c.l.b16 %v1994
      %v2205 = vunpack.c.l.b16 %v1995
      %v2206 = vunpack.c.l.b16 %v1996
      %v2207 = vunpack.c.l.b16 %v1997
      %v2208 = vunpack.c.l.b16 %v1998
      %v2209 = vunpack.c.l.b16 %v1999
      %v2210 = vunpack.c.l.b16 %v2000
      %v2211 = vunpack.c.l.b16 %v2001
      %v2212 = vunpack.c.l.b16 %v2002
      %v2213 = vunpack.c.l.b16 %v2003
      %v2214 = vunpack.c.l.b16 %v2004
      %v2215 = vunpack.c.l.b16 %v2005
      %v2216 = vunpack.c.l.b16 %v2006
      %v2217 = vunpack.c.l.b16 %v2007
      %v2218 = vunpack.c.l.b16 %v2008
      %v2219 = vunpack.c.l.b16 %v2009
      %v2220 = vunpack.c.l.b16 %v2010
      %v2221 = vunpack.c.l.b16 %v2011
      %v2222 = vunpack.c.l.b16 %v2012
      %v2223 = vunpack.c.l.b16 %v2013
      %v2224 = vunpack.c.l.b16 %v2014
      %v2225 = vunpack.c.l.b16 %v2015
      %v2226 = vunpack.c.l.b16 %v2016
      %v2227 = vunpack.c.l.b16 %v2017
      %v2228 = vunpack.c.l.b16 %v2018
      %v2229 = vunpack.c.l.b16 %v2019
      %v2230 = vunpack.c.l.b16 %v2020
      %v2231 = vunpack.c.l.b16 %v2021
      %v2232 = vunpack.c.l.b16 %v2022
      %v2233 = vunpack.c.l.b16 %v2023
      %v2234 = vunpack.c.l.b16 %v2024
      %v2235 = vunpack.c.l.b16 %v2025
      %v2236 = vunpack.c.l.b16 %v2026
      %v2237 = vunpack.c.l.b16 %v2027
      %v2238 = vunpack.c.l.b16 %v2028
      %v2239 = vunpack.c.l.b16 %v2029
      %v2240 = vunpack.c.l.b16 %v2030
      %v2241 = vunpack.c.l.b16 %v2031
      %v2242 = vunpack.c.l.b16 %v2032
      %v2243 = vunpack.c.l.b16 %v2033
      %v2244 = vunpack.c.l.b16 %v2034
      %v2245 = vunpack.c.l.b16 %v2035
      %v2246 = vunpack.c.l.b16 %v2036
      %v2247 = vunpack.c.l.b16 %v2037
      %v2248 = vunpack.c.l.b16 %v2038
      %v2249 = vunpack.c.l.b16 %v2039
      %v2250 = vunpack.c.l.b16 %v2040
      %v2251 = vunpack.c.l.b16 %v2041
      %v2252 = vunpack.c.l.b16 %v2042
      %v2253 = vunpack.c.l.b16 %v2043
      %v2254 = vunpack.c.l.b16 %v2044
      %v2255 = vunpack.c.l.b16 %v2045
      %v2256 = vunpack.c.l.b16 %v2046
      %v2257 = vunpack.c.l.b16 %v2047
      %v2258 = vunpack.c.l.b16 %v2048
      %v2259 = vunpack.c.l.b16 %v2049
      %v2260 = vunpack.c.l.b16 %v2050
      %v2261 = vunpack.c.l.b16 %v2051
      %v2262 = vunpack.c.l.b16 %v2052
      %v2263 = vunpack.c.l.b16 %v2053
      %v2264 = vunpack.c.l.b16 %v2054
      %v2265 = vunpack.c.l.b16 %v2055
      %v2266 = vpack.c.b16 %v2192, %v2191
      %v2267 = vpack.c.b16 %v2194, %v2193
      %v2268 = vpack.c.b16 %v2196, %v2195
      %v2269 = vpack.c.b16 %v2198, %v2197
      %v2270 = vpack.c.b16 %v2200, %v2199
      %v2271 = vpack.c.b16 %v2202, %v2201
      %v2272 = vpack.c.b16 %v2204, %v2203
      %v2273 = vpack.c.b16 %v2206, %v2205
      %v2274 = vpack.c.b16 %v2208, %v2207
      %v2275 = vpack.c.b16 %v2210, %v2209
      %v2276 = vpack.c.b16 %v2212, %v2211
      %v2277 = vpack.c.b16 %v2214, %v2213
      %v2278 = vpack.c.b16 %v2216, %v2215
      %v2279 = vpack.c.b16 %v2218, %v2217
      %v2280 = vpack.c.b16 %v2220, %v2219
      %v2281 = vpack.c.b16 %v2222, %v2221
      %v2282 = vpack.c.b16 %v2224, %v2223
      %v2283 = vpack.c.b16 %v2226, %v2225
      %v2284 = vpack.c.b16 %v2228, %v2227
      %v2285 = vpack.c.b16 %v2230, %v2229
      %v2286 = vpack.c.b16 %v2232, %v2231
      %v2287 = vpack.c.b16 %v2234, %v2233
      %v2288 = vpack.c.b16 %v2236, %v2235
      %v2289 = vpack.c.b16 %v2238, %v2237
      %v2290 = vpack.c.b16 %v2240, %v2239
      %v2291 = vpack.c.b16 %v2242, %v2241
      %v2292 = vpack.c.b16 %v2244, %v2243
      %v2293 = vpack.c.b16 %v2246, %v2245
      %v2294 = vpack.c.b16 %v2248, %v2247
      %v2295 = vpack.c.b16 %v2250, %v2249
      %v2296 = vpack.c.b16 %v2252, %v2251
      %v2297 = vpack.c.b16 %v2254, %v2253
      %v2298 = vpack.c.b16 %v2256, %v2255
      %v2299 = vpack.c.b16 %v2258, %v2257
      %v2300 = vpack.c.b16 %v2260, %v2259
      %v2301 = vpack.c.b16 %v2262, %v2261
      %v2302 = vpack.c.b16 %v2264, %v2263
      %v2303 = vpack.c.b16 %v2265, %v2265
      %v2342 = vsel %vm1272, %v2102, 0
      %v2345 = vsel %vm1272, %v2107, 0
      %v2348 = vsel %vm810, %v2303, 0
      %2350 = vmatprep.subr.bf16.mxu0 0
      %2351 = vmatpush1.bf16.msra.mxu0 %v2273
      %2352 = vmatprep.subr.bf16.mxu0 0
      %2353 = vmatpush1.bf16.msra.mxu0 %v2272
      %2354 = vmatprep.subr.bf16.mxu0 0
      %2355 = vmatpush1.bf16.msra.mxu0 %v2271
      %2356 = vmatprep.subr.bf16.mxu0 0
      %2357 = vmatpush1.bf16.msra.mxu0 %v2270
      %2358 = vmatprep.subr.bf16.mxu0 0
      %2359 = vmatpush1.bf16.msra.mxu0 %v2269
      %2360 = vmatprep.subr.bf16.mxu0 0
      %2361 = vmatpush1.bf16.msra.mxu0 %v2268
      %2362 = vmatprep.subr.bf16.mxu0 0
      %2363 = vmatpush1.bf16.msra.mxu0 %v2267
      %2364 = vmatprep.subr.bf16.mxu0 0
      %2365 = vmatpush1.bf16.msra.mxu0 %v2266
      %2366 = vmatprep.subr.bf16.mxu0 0
      %2367 = vmatpush2.bf16.msra.mxu0 %v2281
      %2368 = vmatprep.subr.bf16.mxu0 0
      %2369 = vmatpush2.bf16.msra.mxu0 %v2280
      %2370 = vmatprep.subr.bf16.mxu0 0
      %2371 = vmatpush2.bf16.msra.mxu0 %v2279
      %2372 = vmatprep.subr.bf16.mxu0 0
      %2373 = vmatpush2.bf16.msra.mxu0 %v2278
      %2374 = vmatprep.subr.bf16.mxu0 0
      %2375 = vmatpush2.bf16.msra.mxu0 %v2277
      %2376 = vmatprep.subr.bf16.mxu0 0
      %2377 = vmatpush2.bf16.msra.mxu0 %v2276
      %2378 = vmatprep.subr.bf16.mxu0 0
      %2379 = vmatpush2.bf16.msra.mxu0 %v2275
      %2380 = vmatprep.subr.bf16.mxu0 0
      %2381 = vmatpush2.bf16.msra.mxu0 %v2274
      %2382 = vmatprep.mubr.bf16.mxu0 %v2099
      %2383 = vmatmul.mubr.bf16.gmra.mxu0 %v2098
      %v2384 = vpop.f32.mrf.mxu0
      %v2385 = vadd.f32 %v2062, %v2384
      %v2386 = vpop.f32.mrf.mxu0
      %v2387 = vpop.f32.mrf.mxu0
      %v2388 = vadd.f32 %v2067, %v2387
      %v2389 = vpop.f32.mrf.mxu0
      %2390 = vmatprep.mubr.bf16.mxu0 %v2104
      %2391 = vmatmul.mubr.bf16.gmra.mxu0 %v2103
      %v2392 = vpop.f32.mrf.mxu0
      %v2393 = vadd.f32 %v2072, %v2392
      %v2394 = vpop.f32.mrf.mxu0
      %v2395 = vpop.f32.mrf.mxu0
      %v2396 = vpop.f32.mrf.mxu0
      %2397 = vdwg.mxu0
      %2398 = vmatprep.subr.bf16.mxu0 0
      %2399 = vmatpush1.bf16.msra.mxu0 %v2289
      %2400 = vmatprep.subr.bf16.mxu0 0
      %2401 = vmatpush1.bf16.msra.mxu0 %v2288
      %2402 = vmatprep.subr.bf16.mxu0 0
      %2403 = vmatpush1.bf16.msra.mxu0 %v2287
      %2404 = vmatprep.subr.bf16.mxu0 0
      %2405 = vmatpush1.bf16.msra.mxu0 %v2286
      %2406 = vmatprep.subr.bf16.mxu0 0
      %2407 = vmatpush1.bf16.msra.mxu0 %v2285
      %2408 = vmatprep.subr.bf16.mxu0 0
      %2409 = vmatpush1.bf16.msra.mxu0 %v2284
      %2410 = vmatprep.subr.bf16.mxu0 0
      %2411 = vmatpush1.bf16.msra.mxu0 %v2283
      %2412 = vmatprep.subr.bf16.mxu0 0
      %2413 = vmatpush1.bf16.msra.mxu0 %v2282
      %2414 = vmatprep.subr.bf16.mxu0 0
      %2415 = vmatpush2.bf16.msra.mxu0 %v2297
      %2416 = vmatprep.subr.bf16.mxu0 0
      %2417 = vmatpush2.bf16.msra.mxu0 %v2296
      %2418 = vmatprep.subr.bf16.mxu0 0
      %2419 = vmatpush2.bf16.msra.mxu0 %v2295
      %2420 = vmatprep.subr.bf16.mxu0 0
      %2421 = vmatpush2.bf16.msra.mxu0 %v2294
      %2422 = vmatprep.subr.bf16.mxu0 0
      %2423 = vmatpush2.bf16.msra.mxu0 %v2293
      %2424 = vmatprep.subr.bf16.mxu0 0
      %2425 = vmatpush2.bf16.msra.mxu0 %v2292
      %2426 = vmatprep.subr.bf16.mxu0 0
      %2427 = vmatpush2.bf16.msra.mxu0 %v2291
      %2428 = vmatprep.subr.bf16.mxu0 0
      %2429 = vmatpush2.bf16.msra.mxu0 %v2290
      %2430 = vmatprep.mubr.bf16.mxu0 %v2101
      %2431 = vmatmul.mubr.bf16.gmra.mxu0 %v2100
      %v2432 = vpop.f32.mrf.mxu0
      %v2433 = vadd.f32 %v2385, %v2432
      %v2434 = vpop.f32.mrf.mxu0
      %v2435 = vpop.f32.mrf.mxu0
      %v2436 = vadd.f32 %v2388, %v2435
      %v2437 = vpop.f32.mrf.mxu0
      %2438 = vmatprep.mubr.bf16.mxu0 %v2106
      %2439 = vmatmul.mubr.bf16.gmra.mxu0 %v2105
      %v2440 = vpop.f32.mrf.mxu0
      %v2441 = vadd.f32 %v2393, %v2440
      %v2442 = vpop.f32.mrf.mxu0
      %v2443 = vpop.f32.mrf.mxu0
      %v2444 = vpop.f32.mrf.mxu0
      %2445 = vdwg.mxu0
      %2446 = vmatprep.subr.bf16.mxu0 0
      %2447 = vmatpush1.bf16.msra.mxu0 0
      %2448 = vmatprep.subr.bf16.mxu0 0
      %2449 = vmatpush1.bf16.msra.mxu0 0
      %2450 = vmatprep.subr.bf16.mxu0 0
      %2451 = vmatpush1.bf16.msra.mxu0 %v2348
      %2452 = vmatprep.subr.bf16.mxu0 0
      %2453 = vmatpush1.bf16.msra.mxu0 %v2302
      %2454 = vmatprep.subr.bf16.mxu0 0
      %2455 = vmatpush1.bf16.msra.mxu0 %v2301
      %2456 = vmatprep.subr.bf16.mxu0 0
      %2457 = vmatpush1.bf16.msra.mxu0 %v2300
      %2458 = vmatprep.subr.bf16.mxu0 0
      %2459 = vmatpush1.bf16.msra.mxu0 %v2299
      %2460 = vmatprep.subr.bf16.mxu0 0
      %2461 = vmatpush1.bf16.msra.mxu0 %v2298
      %2462 = vmatprep.subr.bf16.mxu0 0
      %2463 = vmatpush2.bf16.msra.mxu0 0
      %2464 = vmatprep.subr.bf16.mxu0 0
      %2465 = vmatpush2.bf16.msra.mxu0 0
      %2466 = vmatprep.subr.bf16.mxu0 0
      %2467 = vmatpush2.bf16.msra.mxu0 0
      %2468 = vmatprep.subr.bf16.mxu0 0
      %2469 = vmatpush2.bf16.msra.mxu0 0
      %2470 = vmatprep.subr.bf16.mxu0 0
      %2471 = vmatpush2.bf16.msra.mxu0 0
      %2472 = vmatprep.subr.bf16.mxu0 0
      %2473 = vmatpush2.bf16.msra.mxu0 0
      %2474 = vmatprep.subr.bf16.mxu0 0
      %2475 = vmatpush2.bf16.msra.mxu0 0
      %2476 = vmatprep.subr.bf16.mxu0 0
      %2477 = vmatpush2.bf16.msra.mxu0 0
      %2478 = vmatprep.mubr.bf16.mxu0 0
      %2479 = vmatmul.mubr.bf16.gmra.mxu0 %v2342
      %v2480 = vpop.f32.mrf.mxu0
      %v2481 = vadd.f32 %v2433, %v2480
      %v2482 = vpop.f32.mrf.mxu0
      %v2483 = vpop.f32.mrf.mxu0
      %v2484 = vadd.f32 %v2436, %v2483
      %v2485 = vpop.f32.mrf.mxu0
      %2486 = vmatprep.mubr.bf16.mxu0 0
      %2487 = vmatmul.mubr.bf16.gmra.mxu0 %v2345
      %v2488 = vpop.f32.mrf.mxu0
      %v2489 = vadd.f32 %v2441, %v2488
      %v2490 = vpop.f32.mrf.mxu0
      %v2491 = vpop.f32.mrf.mxu0
      %v2492 = vpop.f32.mrf.mxu0
      %2493 = vdwg.mxu0
      %v2494 = vmax.f32 %v2481, 0.0
      %v2495 = vmax.f32 %v2484, 0.0
      %v2496 = vmax.f32 %v2489, 0.0
      %v2497 = vpack.c.bf16 %v2495, %v2494
      %v2498 = vpack.c.bf16 %v2496, %v2496
      %v2499 = vld [vmem:[%s13] sm:$0xf]
      %v2500 = vld [vmem:[%s13 + $0x4] sm:$0xf]
      %v2501 = vld [vmem:[%s13 + $0x8] sm:$0xf]
      %v2505 = vunpack.c.l.b16 %v2499
      %v2506 = vunpack.c.l.b16 %v2500
      %v2507 = vunpack.c.l.b16 %v2501
      %v2508 = vpack.c.b16 %v2506, %v2505
      %v2509 = vpack.c.b16 %v2507, %v2507
      %vm2511 = vcmask 195584
      %v2513 = vsel %vm2511, %v2497, 0
      %v2516 = vsel %vm2511, %v2498, 0
      %v2519 = vsel %vm810, %v2509, 0
      %2521 = vmatprep.subr.bf16.mxu0 0
      %2522 = vmatpush1.bf16.msra.mxu0 0
      %2523 = vmatprep.subr.bf16.mxu0 0
      %2524 = vmatpush1.bf16.msra.mxu0 0
      %2525 = vmatprep.subr.bf16.mxu0 0
      %2526 = vmatpush1.bf16.msra.mxu0 0
      %2527 = vmatprep.subr.bf16.mxu0 0
      %2528 = vmatpush1.bf16.msra.mxu0 0
      %2529 = vmatprep.subr.bf16.mxu0 0
      %2530 = vmatpush1.bf16.msra.mxu0 0
      %2531 = vmatprep.subr.bf16.mxu0 0
      %2532 = vmatpush1.bf16.msra.mxu0 0
      %2533 = vmatprep.subr.bf16.mxu0 0
      %2534 = vmatpush1.bf16.msra.mxu0 %v2519
      %2535 = vmatprep.subr.bf16.mxu0 0
      %2536 = vmatpush1.bf16.msra.mxu0 %v2508
      %2537 = vmatprep.subr.bf16.mxu0 0
      %2538 = vmatpush2.bf16.msra.mxu0 0
      %2539 = vmatprep.subr.bf16.mxu0 0
      %2540 = vmatpush2.bf16.msra.mxu0 0
      %2541 = vmatprep.subr.bf16.mxu0 0
      %2542 = vmatpush2.bf16.msra.mxu0 0
      %2543 = vmatprep.subr.bf16.mxu0 0
      %2544 = vmatpush2.bf16.msra.mxu0 0
      %2545 = vmatprep.subr.bf16.mxu0 0
      %2546 = vmatpush2.bf16.msra.mxu0 0
      %2547 = vmatprep.subr.bf16.mxu0 0
      %2548 = vmatpush2.bf16.msra.mxu0 0
      %2549 = vmatprep.subr.bf16.mxu0 0
      %2550 = vmatpush2.bf16.msra.mxu0 0
      %2551 = vmatprep.subr.bf16.mxu0 0
      %2552 = vmatpush2.bf16.msra.mxu0 0
      %2553 = vmatprep.mubr.bf16.mxu0 0
      %2554 = vmatmul.mubr.bf16.gmra.mxu0 %v2513
      %v2555 = vpop.f32.mrf.mxu0
      %v2556 = vadd.f32 0.0, %v2555
      %v2557 = vpop.f32.mrf.mxu0
      %v2558 = vpop.f32.mrf.mxu0
      %v2559 = vadd.f32 0.0, %v2558
      %v2560 = vpop.f32.mrf.mxu0
      %2561 = vmatprep.mubr.bf16.mxu0 0
      %2562 = vmatmul.mubr.bf16.gmra.mxu0 %v2516
      %v2563 = vpop.f32.mrf.mxu0
      %v2564 = vadd.f32 0.0, %v2563
      %v2565 = vpop.f32.mrf.mxu0
      %v2566 = vpop.f32.mrf.mxu0
      %v2567 = vpop.f32.mrf.mxu0
      %2568 = vdwg.mxu0
      %v2569 = vpack.c.bf16 %v2559, %v2556
      %v2570 = vpack.c.bf16 %v2564, %v2564
      %v2573 = vunpack.c.l.b16 %v2569
      %v2574 = vunpack.c.h.b16 %v2569
      %v2575 = vunpack.c.l.b16 %v2570
      %v2576 = vpack.c.b16 %v2573, %v2573
      %v2577 = vpack.c.b16 %v2574, %v2574
      %v2578 = vpack.c.b16 %v2575, %v2575
      %vm2582 = vcmask 535552
      %2583 = vst.msk [vmem:[#allocation5] sm:$0xf] %vm2582, %v2576
      %2584 = vst.msk [vmem:[#allocation5 + $0x4] sm:$0xf] %vm2582, %v2577
      %2585 = vst.msk [vmem:[#allocation5 + $0x8] sm:$0xf] %vm2582, %v2578
      %v2586 = vld [vmem:[#allocation5] sm:$0xf]
      %v2587 = vld [vmem:[#allocation5 + $0x4] sm:$0xf]
      %v2588 = vld [vmem:[#allocation5 + $0x8] sm:$0xf]
      %vm2589 = vcmask 388096
      %2590 = vst.msk [vmem:[#allocation2] sm:$0xf] %vm2589, %v2586
      %2591 = vst.msk [vmem:[#allocation2 + $0x4] sm:$0xf] %vm2589, %v2587
      %2592 = vst.msk [vmem:[#allocation2 + $0x8] sm:$0xf] %vm2589, %v2588
      %v2593 = vld [vmem:[#allocation5] sm:$0xf]
      %v2594 = vld [vmem:[#allocation5 + $0x4] sm:$0xf]
      %v2595 = vld [vmem:[#allocation5 + $0x8] sm:$0xf]
      %2599 = vrot.lane.b32.xlu0 %v2593, 127
      %v2600 = vpop.permute.xlu0 %2599
      %2601 = vrot.lane.b32.xlu0 %v2594, 127
      %v2602 = vpop.permute.xlu0 %2601
      %2603 = vrot.lane.b32.xlu0 %v2595, 127
      %v2604 = vpop.permute.xlu0 %2603
      %2608 = vst.msk [vmem:[#allocation2 + $0xc] sm:$0xf] %vm2589, %v2600
      %2609 = vst.msk [vmem:[#allocation2 + $0x10] sm:$0xf] %vm2589, %v2602
      %2610 = vst.msk [vmem:[#allocation2 + $0x14] sm:$0xf] %vm2589, %v2604
      %v2611 = vld [vmem:[#allocation5] sm:$0xf]
      %v2612 = vld [vmem:[#allocation5 + $0x4] sm:$0xf]
      %v2613 = vld [vmem:[#allocation5 + $0x8] sm:$0xf]
      %2617 = vrot.lane.b32.xlu0 %v2611, 126
      %v2618 = vpop.permute.xlu0 %2617
      %2619 = vrot.lane.b32.xlu0 %v2612, 126
      %v2620 = vpop.permute.xlu0 %2619
      %2621 = vrot.lane.b32.xlu0 %v2613, 126
      %v2622 = vpop.permute.xlu0 %2621
      %2626 = vst.msk [vmem:[#allocation2 + $0x18] sm:$0xf] %vm2589, %v2618
      %2627 = vst.msk [vmem:[#allocation2 + $0x1c] sm:$0xf] %vm2589, %v2620
      %2628 = vst.msk [vmem:[#allocation2 + $0x20] sm:$0xf] %vm2589, %v2622
      %v2629 = vld [vmem:[#allocation5] sm:$0xf]
      %v2630 = vld [vmem:[#allocation5 + $0x4] sm:$0xf]
      %v2631 = vld [vmem:[#allocation5 + $0x8] sm:$0xf]
      %2635 = vrot.lane.b32.xlu0 %v2629, 120
      %v2636 = vpop.permute.xlu0 %2635
      %2637 = vrot.lane.b32.xlu0 %v2630, 120
      %v2638 = vpop.permute.xlu0 %2637
      %2639 = vrot.lane.b32.xlu0 %v2631, 120
      %v2640 = vpop.permute.xlu0 %2639
      %2644 = vst.msk [vmem:[#allocation2 + $0x24] sm:$0xf] %vm2589, %v2636
      %2645 = vst.msk [vmem:[#allocation2 + $0x28] sm:$0xf] %vm2589, %v2638
      %2646 = vst.msk [vmem:[#allocation2 + $0x2c] sm:$0xf] %vm2589, %v2640
      %v2647 = vld [vmem:[#allocation5] sm:$0xf]
      %v2648 = vld [vmem:[#allocation5 + $0x4] sm:$0xf]
      %v2649 = vld [vmem:[#allocation5 + $0x8] sm:$0xf]
      %2653 = vrot.lane.b32.xlu0 %v2647, 119
      %v2654 = vpop.permute.xlu0 %2653
      %2655 = vrot.lane.b32.xlu0 %v2648, 119
      %v2656 = vpop.permute.xlu0 %2655
      %2657 = vrot.lane.b32.xlu0 %v2649, 119
      %v2658 = vpop.permute.xlu0 %2657
      %2662 = vst.msk [vmem:[#allocation2 + $0x30] sm:$0xf] %vm2589, %v2654
      %2663 = vst.msk [vmem:[#allocation2 + $0x34] sm:$0xf] %vm2589, %v2656
      %2664 = vst.msk [vmem:[#allocation2 + $0x38] sm:$0xf] %vm2589, %v2658
      %v2665 = vld [vmem:[#allocation5] sm:$0xf]
      %v2666 = vld [vmem:[#allocation5 + $0x4] sm:$0xf]
      %v2667 = vld [vmem:[#allocation5 + $0x8] sm:$0xf]
      %2671 = vrot.lane.b32.xlu0 %v2665, 118
      %v2672 = vpop.permute.xlu0 %2671
      %2673 = vrot.lane.b32.xlu0 %v2666, 118
      %v2674 = vpop.permute.xlu0 %2673
      %2675 = vrot.lane.b32.xlu0 %v2667, 118
      %v2676 = vpop.permute.xlu0 %2675
      %2680 = vst.msk [vmem:[#allocation2 + $0x3c] sm:$0xf] %vm2589, %v2672
      %2681 = vst.msk [vmem:[#allocation2 + $0x40] sm:$0xf] %vm2589, %v2674
      %2682 = vst.msk [vmem:[#allocation2 + $0x44] sm:$0xf] %vm2589, %v2676
      %v2683 = vld [vmem:[#allocation5] sm:$0xf]
      %v2684 = vld [vmem:[#allocation5 + $0x4] sm:$0xf]
      %v2685 = vld [vmem:[#allocation5 + $0x8] sm:$0xf]
      %2689 = vrot.lane.b32.xlu0 %v2683, 112
      %v2690 = vpop.permute.xlu0 %2689
      %2691 = vrot.lane.b32.xlu0 %v2684, 112
      %v2692 = vpop.permute.xlu0 %2691
      %2693 = vrot.lane.b32.xlu0 %v2685, 112
      %v2694 = vpop.permute.xlu0 %2693
      %2698 = vst.msk [vmem:[#allocation2 + $0x48] sm:$0xf] %vm2589, %v2690
      %2699 = vst.msk [vmem:[#allocation2 + $0x4c] sm:$0xf] %vm2589, %v2692
      %2700 = vst.msk [vmem:[#allocation2 + $0x50] sm:$0xf] %vm2589, %v2694
      %v2701 = vld [vmem:[#allocation5] sm:$0xf]
      %v2702 = vld [vmem:[#allocation5 + $0x4] sm:$0xf]
      %v2703 = vld [vmem:[#allocation5 + $0x8] sm:$0xf]
      %2707 = vrot.lane.b32.xlu0 %v2701, 111
      %v2708 = vpop.permute.xlu0 %2707
      %2709 = vrot.lane.b32.xlu0 %v2702, 111
      %v2710 = vpop.permute.xlu0 %2709
      %2711 = vrot.lane.b32.xlu0 %v2703, 111
      %v2712 = vpop.permute.xlu0 %2711
      %2716 = vst.msk [vmem:[#allocation2 + $0x54] sm:$0xf] %vm2589, %v2708
      %2717 = vst.msk [vmem:[#allocation2 + $0x58] sm:$0xf] %vm2589, %v2710
      %2718 = vst.msk [vmem:[#allocation2 + $0x5c] sm:$0xf] %vm2589, %v2712
      %v2719 = vld [vmem:[#allocation5] sm:$0xf]
      %v2720 = vld [vmem:[#allocation5 + $0x4] sm:$0xf]
      %v2721 = vld [vmem:[#allocation5 + $0x8] sm:$0xf]
      %2725 = vrot.lane.b32.xlu0 %v2719, 110
      %v2726 = vpop.permute.xlu0 %2725
      %2727 = vrot.lane.b32.xlu0 %v2720, 110
      %v2728 = vpop.permute.xlu0 %2727
      %2729 = vrot.lane.b32.xlu0 %v2721, 110
      %v2730 = vpop.permute.xlu0 %2729
      %2734 = vst.msk [vmem:[#allocation2 + $0x60] sm:$0xf] %vm2589, %v2726
      %2735 = vst.msk [vmem:[#allocation2 + $0x64] sm:$0xf] %vm2589, %v2728
      %2736 = vst.msk [vmem:[#allocation2 + $0x68] sm:$0xf] %vm2589, %v2730
      %v2737 = vld [vmem:[%s7] sm:$0xff]
      %v2738 = vld [vmem:[%s7 + $0x8] sm:$0xff]
      %v2739 = vld [vmem:[%s7 + $0x10] sm:$0xff]
      %v2740 = vld [vmem:[#allocation2] sm:$0xf]
      %v2741 = vld [vmem:[#allocation2 + $0x4] sm:$0xf]
      %v2742 = vld [vmem:[#allocation2 + $0x8] sm:$0xf]
      %v2743 = vld [vmem:[#allocation2 + $0xc] sm:$0xf]
      %v2744 = vld [vmem:[#allocation2 + $0x10] sm:$0xf]
      %v2745 = vld [vmem:[#allocation2 + $0x14] sm:$0xf]
      %v2746 = vld [vmem:[#allocation2 + $0x18] sm:$0xf]
      %v2747 = vld [vmem:[#allocation2 + $0x1c] sm:$0xf]
      %v2748 = vld [vmem:[#allocation2 + $0x20] sm:$0xf]
      %v2749 = vld [vmem:[#allocation2 + $0x24] sm:$0xf]
      %v2750 = vld [vmem:[#allocation2 + $0x28] sm:$0xf]
      %v2751 = vld [vmem:[#allocation2 + $0x2c] sm:$0xf]
      %v2752 = vld [vmem:[#allocation2 + $0x30] sm:$0xf]
      %v2753 = vld [vmem:[#allocation2 + $0x34] sm:$0xf]
      %v2754 = vld [vmem:[#allocation2 + $0x38] sm:$0xf]
      %v2755 = vld [vmem:[#allocation2 + $0x3c] sm:$0xf]
      %v2756 = vld [vmem:[#allocation2 + $0x40] sm:$0xf]
      %v2757 = vld [vmem:[#allocation2 + $0x44] sm:$0xf]
      %v2758 = vld [vmem:[#allocation2 + $0x48] sm:$0xf]
      %v2759 = vld [vmem:[#allocation2 + $0x4c] sm:$0xf]
      %v2760 = vld [vmem:[#allocation2 + $0x50] sm:$0xf]
      %v2761 = vld [vmem:[#allocation2 + $0x54] sm:$0xf]
      %v2762 = vld [vmem:[#allocation2 + $0x58] sm:$0xf]
      %v2763 = vld [vmem:[#allocation2 + $0x5c] sm:$0xf]
      %v2764 = vld [vmem:[#allocation2 + $0x60] sm:$0xf]
      %v2765 = vld [vmem:[#allocation2 + $0x64] sm:$0xf]
      %v2766 = vld [vmem:[#allocation2 + $0x68] sm:$0xf]
      %v2767 = vld [vmem:[%s8] sm:$0xff]
      %v2768 = vld [vmem:[%s8 + $0x8] sm:$0xff]
      %v2769 = vld [vmem:[%s8 + $0x10] sm:$0xff]
      %2771 = vset.pattern.permute.xlu0 0
      %2772 = vperm.xlu0 %2771, %v2767
      %v2773 = vpop.permute.xlu0 %2772
      %2776 = vset.pattern.permute.xlu0 0
      %2777 = vperm.xlu0 %2776, %v2768
      %v2778 = vpop.permute.xlu0 %2777
      %2781 = vset.pattern.permute.xlu0 0
      %2782 = vperm.xlu0 %2781, %v2769
      %v2783 = vpop.permute.xlu0 %2782
      %v2788 = vunpack.c.l.b16 %v2737
      %v2789 = vunpack.c.h.b16 %v2737
      %v2790 = vunpack.c.l.b16 %v2738
      %v2791 = vunpack.c.h.b16 %v2738
      %v2792 = vunpack.c.l.b16 %v2739
      %v2793 = vunpack.c.h.b16 %v2739
      %v2794 = vpack.c.b16 %v2790, %v2788
      %v2795 = vpack.c.b16 %v2791, %v2789
      %v2796 = vpack.c.b16 %v2792, %v2792
      %v2797 = vpack.c.b16 %v2793, %v2793
      %v2827 = vunpack.c.l.b16 %v2740
      %v2828 = vunpack.c.l.b16 %v2741
      %v2829 = vunpack.c.l.b16 %v2742
      %v2830 = vunpack.c.l.b16 %v2743
      %v2831 = vunpack.c.l.b16 %v2744
      %v2832 = vunpack.c.l.b16 %v2745
      %v2833 = vunpack.c.l.b16 %v2746
      %v2834 = vunpack.c.l.b16 %v2747
      %v2835 = vunpack.c.l.b16 %v2748
      %v2836 = vunpack.c.l.b16 %v2749
      %v2837 = vunpack.c.l.b16 %v2750
      %v2838 = vunpack.c.l.b16 %v2751
      %v2839 = vunpack.c.l.b16 %v2752
      %v2840 = vunpack.c.l.b16 %v2753
      %v2841 = vunpack.c.l.b16 %v2754
      %v2842 = vunpack.c.l.b16 %v2755
      %v2843 = vunpack.c.l.b16 %v2756
      %v2844 = vunpack.c.l.b16 %v2757
      %v2845 = vunpack.c.l.b16 %v2758
      %v2846 = vunpack.c.l.b16 %v2759
      %v2847 = vunpack.c.l.b16 %v2760
      %v2848 = vunpack.c.l.b16 %v2761
      %v2849 = vunpack.c.l.b16 %v2762
      %v2850 = vunpack.c.l.b16 %v2763
      %v2851 = vunpack.c.l.b16 %v2764
      %v2852 = vunpack.c.l.b16 %v2765
      %v2853 = vunpack.c.l.b16 %v2766
      %v2854 = vpack.c.b16 %v2828, %v2827
      %v2855 = vpack.c.b16 %v2830, %v2829
      %v2856 = vpack.c.b16 %v2832, %v2831
      %v2857 = vpack.c.b16 %v2834, %v2833
      %v2858 = vpack.c.b16 %v2836, %v2835
      %v2859 = vpack.c.b16 %v2838, %v2837
      %v2860 = vpack.c.b16 %v2840, %v2839
      %v2861 = vpack.c.b16 %v2842, %v2841
      %v2862 = vpack.c.b16 %v2844, %v2843
      %v2863 = vpack.c.b16 %v2846, %v2845
      %v2864 = vpack.c.b16 %v2848, %v2847
      %v2865 = vpack.c.b16 %v2850, %v2849
      %v2866 = vpack.c.b16 %v2852, %v2851
      %v2867 = vpack.c.b16 %v2853, %v2853
      %v2882 = vsel %vm1272, %v2795, 0
      %v2885 = vsel %vm1272, %v2797, 0
      %v2888 = vsel %vm810, %v2867, 0
      %2890 = vmatprep.subr.bf16.mxu0 0
      %2891 = vmatpush1.bf16.msra.mxu0 %v2861
      %2892 = vmatprep.subr.bf16.mxu0 0
      %2893 = vmatpush1.bf16.msra.mxu0 %v2860
      %2894 = vmatprep.subr.bf16.mxu0 0
      %2895 = vmatpush1.bf16.msra.mxu0 %v2859
      %2896 = vmatprep.subr.bf16.mxu0 0
      %2897 = vmatpush1.bf16.msra.mxu0 %v2858
      %2898 = vmatprep.subr.bf16.mxu0 0
      %2899 = vmatpush1.bf16.msra.mxu0 %v2857
      %2900 = vmatprep.subr.bf16.mxu0 0
      %2901 = vmatpush1.bf16.msra.mxu0 %v2856
      %2902 = vmatprep.subr.bf16.mxu0 0
      %2903 = vmatpush1.bf16.msra.mxu0 %v2855
      %2904 = vmatprep.subr.bf16.mxu0 0
      %2905 = vmatpush1.bf16.msra.mxu0 %v2854
      %2906 = vmatprep.subr.bf16.mxu0 0
      %2907 = vmatpush2.bf16.msra.mxu0 0
      %2908 = vmatprep.subr.bf16.mxu0 0
      %2909 = vmatpush2.bf16.msra.mxu0 0
      %2910 = vmatprep.subr.bf16.mxu0 0
      %2911 = vmatpush2.bf16.msra.mxu0 %v2888
      %2912 = vmatprep.subr.bf16.mxu0 0
      %2913 = vmatpush2.bf16.msra.mxu0 %v2866
      %2914 = vmatprep.subr.bf16.mxu0 0
      %2915 = vmatpush2.bf16.msra.mxu0 %v2865
      %2916 = vmatprep.subr.bf16.mxu0 0
      %2917 = vmatpush2.bf16.msra.mxu0 %v2864
      %2918 = vmatprep.subr.bf16.mxu0 0
      %2919 = vmatpush2.bf16.msra.mxu0 %v2863
      %2920 = vmatprep.subr.bf16.mxu0 0
      %2921 = vmatpush2.bf16.msra.mxu0 %v2862
      %2922 = vmatprep.mubr.bf16.mxu0 %v2882
      %2923 = vmatmul.mubr.bf16.gmra.mxu0 %v2794
      %v2924 = vpop.f32.mrf.mxu0
      %v2925 = vadd.f32 %v2773, %v2924
      %v2926 = vpop.f32.mrf.mxu0
      %v2927 = vpop.f32.mrf.mxu0
      %v2928 = vadd.f32 %v2778, %v2927
      %v2929 = vpop.f32.mrf.mxu0
      %2930 = vmatprep.mubr.bf16.mxu0 %v2885
      %2931 = vmatmul.mubr.bf16.gmra.mxu0 %v2796
      %v2932 = vpop.f32.mrf.mxu0
      %v2933 = vadd.f32 %v2783, %v2932
      %v2934 = vpop.f32.mrf.mxu0
      %v2935 = vpop.f32.mrf.mxu0
      %v2936 = vpop.f32.mrf.mxu0
      %2937 = vdwg.mxu0
      %v2938 = vmax.f32 %v2925, 0.0
      %v2939 = vmax.f32 %v2928, 0.0
      %v2940 = vmax.f32 %v2933, 0.0
      %v2941 = vpack.c.bf16 %v2939, %v2938
      %v2942 = vpack.c.bf16 %v2940, %v2940
      %v2943 = vld [vmem:[%s14] sm:$0xf]
      %v2944 = vld [vmem:[%s14 + $0x4] sm:$0xf]
      %v2945 = vld [vmem:[%s14 + $0x8] sm:$0xf]
      %v2946 = vld [vmem:[%s14 + $0xc] sm:$0xf]
      %v2947 = vld [vmem:[%s14 + $0x10] sm:$0xf]
      %v2948 = vld [vmem:[%s14 + $0x14] sm:$0xf]
      %v2955 = vunpack.c.l.b16 %v2943
      %v2956 = vunpack.c.l.b16 %v2944
      %v2957 = vunpack.c.l.b16 %v2945
      %v2958 = vunpack.c.l.b16 %v2946
      %v2959 = vunpack.c.l.b16 %v2947
      %v2960 = vunpack.c.l.b16 %v2948
      %v2961 = vpack.c.b16 %v2956, %v2955
      %v2962 = vpack.c.b16 %v2958, %v2957
      %v2963 = vpack.c.b16 %v2960, %v2959
      %vm2967 = vcmask 392192
      %v2969 = vsel %vm2967, %v2941, 0
      %v2972 = vsel %vm2967, %v2942, 0
      %2974 = vmatprep.subr.bf16.mxu0 0
      %2975 = vmatpush1.bf16.msra.mxu0 0
      %2976 = vmatprep.subr.bf16.mxu0 0
      %2977 = vmatpush1.bf16.msra.mxu0 0
      %2978 = vmatprep.subr.bf16.mxu0 0
      %2979 = vmatpush1.bf16.msra.mxu0 0
      %2980 = vmatprep.subr.bf16.mxu0 0
      %2981 = vmatpush1.bf16.msra.mxu0 0
      %2982 = vmatprep.subr.bf16.mxu0 0
      %2983 = vmatpush1.bf16.msra.mxu0 0
      %2984 = vmatprep.subr.bf16.mxu0 0
      %2985 = vmatpush1.bf16.msra.mxu0 %v2963
      %2986 = vmatprep.subr.bf16.mxu0 0
      %2987 = vmatpush1.bf16.msra.mxu0 %v2962
      %2988 = vmatprep.subr.bf16.mxu0 0
      %2989 = vmatpush1.bf16.msra.mxu0 %v2961
      %2990 = vmatprep.subr.bf16.mxu0 0
      %2991 = vmatpush2.bf16.msra.mxu0 0
      %2992 = vmatprep.subr.bf16.mxu0 0
      %2993 = vmatpush2.bf16.msra.mxu0 0
      %2994 = vmatprep.subr.bf16.mxu0 0
      %2995 = vmatpush2.bf16.msra.mxu0 0
      %2996 = vmatprep.subr.bf16.mxu0 0
      %2997 = vmatpush2.bf16.msra.mxu0 0
      %2998 = vmatprep.subr.bf16.mxu0 0
      %2999 = vmatpush2.bf16.msra.mxu0 0
      %3000 = vmatprep.subr.bf16.mxu0 0
      %3001 = vmatpush2.bf16.msra.mxu0 0
      %3002 = vmatprep.subr.bf16.mxu0 0
      %3003 = vmatpush2.bf16.msra.mxu0 0
      %3004 = vmatprep.subr.bf16.mxu0 0
      %3005 = vmatpush2.bf16.msra.mxu0 0
      %3006 = vmatprep.mubr.bf16.mxu0 0
      %3007 = vmatmul.mubr.bf16.gmra.mxu0 %v2969
      %v3008 = vpop.f32.mrf.mxu0
      %v3009 = vadd.f32 0.0, %v3008
      %v3010 = vpop.f32.mrf.mxu0
      %v3011 = vpop.f32.mrf.mxu0
      %v3012 = vadd.f32 0.0, %v3011
      %v3013 = vpop.f32.mrf.mxu0
      %3014 = vmatprep.mubr.bf16.mxu0 0
      %3015 = vmatmul.mubr.bf16.gmra.mxu0 %v2972
      %v3016 = vpop.f32.mrf.mxu0
      %v3017 = vadd.f32 0.0, %v3016
      %v3018 = vpop.f32.mrf.mxu0
      %v3019 = vpop.f32.mrf.mxu0
      %v3020 = vpop.f32.mrf.mxu0
      %3021 = vdwg.mxu0
      %v3022 = vpack.c.bf16 %v3012, %v3009
      %v3023 = vpack.c.bf16 %v3017, %v3017
      %v3026 = vunpack.c.l.b16 %v3022
      %v3027 = vunpack.c.h.b16 %v3022
      %v3028 = vunpack.c.l.b16 %v3023
      %v3029 = vpack.c.b16 %v3026, %v3026
      %v3030 = vpack.c.b16 %v3027, %v3027
      %v3031 = vpack.c.b16 %v3028, %v3028
      %vm3035 = vcmask 306176
      %3036 = vst.msk [vmem:[#allocation6] sm:$0xf] %vm3035, %v3029
      %3037 = vst.msk [vmem:[#allocation6 + $0x4] sm:$0xf] %vm3035, %v3030
      %3038 = vst.msk [vmem:[#allocation6 + $0x8] sm:$0xf] %vm3035, %v3031
      %v3039 = vld [vmem:[#allocation6] sm:$0xf]
      %v3040 = vld [vmem:[#allocation6 + $0x4] sm:$0xf]
      %v3041 = vld [vmem:[#allocation6 + $0x8] sm:$0xf]
      %3042 = vst.msk [vmem:[#allocation2] sm:$0xf] %vm1509, %v3039
      %3043 = vst.msk [vmem:[#allocation2 + $0x4] sm:$0xf] %vm1509, %v3040
      %3044 = vst.msk [vmem:[#allocation2 + $0x8] sm:$0xf] %vm1509, %v3041
      %v3045 = vld [vmem:[#allocation6] sm:$0xf]
      %v3046 = vld [vmem:[#allocation6 + $0x4] sm:$0xf]
      %v3047 = vld [vmem:[#allocation6 + $0x8] sm:$0xf]
      %3051 = vrot.lane.b32.xlu0 %v3045, 127
      %v3052 = vpop.permute.xlu0 %3051
      %3053 = vrot.lane.b32.xlu0 %v3046, 127
      %v3054 = vpop.permute.xlu0 %3053
      %3055 = vrot.lane.b32.xlu0 %v3047, 127
      %v3056 = vpop.permute.xlu0 %3055
      %3060 = vst.msk [vmem:[#allocation2 + $0xc] sm:$0xf] %vm1509, %v3052
      %3061 = vst.msk [vmem:[#allocation2 + $0x10] sm:$0xf] %vm1509, %v3054
      %3062 = vst.msk [vmem:[#allocation2 + $0x14] sm:$0xf] %vm1509, %v3056
      %v3063 = vld [vmem:[#allocation6] sm:$0xf]
      %v3064 = vld [vmem:[#allocation6 + $0x4] sm:$0xf]
      %v3065 = vld [vmem:[#allocation6 + $0x8] sm:$0xf]
      %3069 = vrot.lane.b32.xlu0 %v3063, 126
      %v3070 = vpop.permute.xlu0 %3069
      %3071 = vrot.lane.b32.xlu0 %v3064, 126
      %v3072 = vpop.permute.xlu0 %3071
      %3073 = vrot.lane.b32.xlu0 %v3065, 126
      %v3074 = vpop.permute.xlu0 %3073
      %3078 = vst.msk [vmem:[#allocation2 + $0x18] sm:$0xf] %vm1509, %v3070
      %3079 = vst.msk [vmem:[#allocation2 + $0x1c] sm:$0xf] %vm1509, %v3072
      %3080 = vst.msk [vmem:[#allocation2 + $0x20] sm:$0xf] %vm1509, %v3074
      %v3081 = vld [vmem:[#allocation6] sm:$0xf]
      %v3082 = vld [vmem:[#allocation6 + $0x4] sm:$0xf]
      %v3083 = vld [vmem:[#allocation6 + $0x8] sm:$0xf]
      %3087 = vrot.lane.b32.xlu0 %v3081, 122
      %v3088 = vpop.permute.xlu0 %3087
      %3089 = vrot.lane.b32.xlu0 %v3082, 122
      %v3090 = vpop.permute.xlu0 %3089
      %3091 = vrot.lane.b32.xlu0 %v3083, 122
      %v3092 = vpop.permute.xlu0 %3091
      %3096 = vst.msk [vmem:[#allocation2 + $0x24] sm:$0xf] %vm1509, %v3088
      %3097 = vst.msk [vmem:[#allocation2 + $0x28] sm:$0xf] %vm1509, %v3090
      %3098 = vst.msk [vmem:[#allocation2 + $0x2c] sm:$0xf] %vm1509, %v3092
      %v3099 = vld [vmem:[#allocation6] sm:$0xf]
      %v3100 = vld [vmem:[#allocation6 + $0x4] sm:$0xf]
      %v3101 = vld [vmem:[#allocation6 + $0x8] sm:$0xf]
      %3105 = vrot.lane.b32.xlu0 %v3099, 121
      %v3106 = vpop.permute.xlu0 %3105
      %3107 = vrot.lane.b32.xlu0 %v3100, 121
      %v3108 = vpop.permute.xlu0 %3107
      %3109 = vrot.lane.b32.xlu0 %v3101, 121
      %v3110 = vpop.permute.xlu0 %3109
      %3114 = vst.msk [vmem:[#allocation2 + $0x30] sm:$0xf] %vm1509, %v3106
      %3115 = vst.msk [vmem:[#allocation2 + $0x34] sm:$0xf] %vm1509, %v3108
      %3116 = vst.msk [vmem:[#allocation2 + $0x38] sm:$0xf] %vm1509, %v3110
      %v3117 = vld [vmem:[#allocation6] sm:$0xf]
      %v3118 = vld [vmem:[#allocation6 + $0x4] sm:$0xf]
      %v3119 = vld [vmem:[#allocation6 + $0x8] sm:$0xf]
      %3123 = vrot.lane.b32.xlu0 %v3117, 120
      %v3124 = vpop.permute.xlu0 %3123
      %3125 = vrot.lane.b32.xlu0 %v3118, 120
      %v3126 = vpop.permute.xlu0 %3125
      %3127 = vrot.lane.b32.xlu0 %v3119, 120
      %v3128 = vpop.permute.xlu0 %3127
      %3132 = vst.msk [vmem:[#allocation2 + $0x3c] sm:$0xf] %vm1509, %v3124
      %3133 = vst.msk [vmem:[#allocation2 + $0x40] sm:$0xf] %vm1509, %v3126
      %3134 = vst.msk [vmem:[#allocation2 + $0x44] sm:$0xf] %vm1509, %v3128
      %v3135 = vld [vmem:[#allocation6] sm:$0xf]
      %v3136 = vld [vmem:[#allocation6 + $0x4] sm:$0xf]
      %v3137 = vld [vmem:[#allocation6 + $0x8] sm:$0xf]
      %3141 = vrot.lane.b32.xlu0 %v3135, 116
      %v3142 = vpop.permute.xlu0 %3141
      %3143 = vrot.lane.b32.xlu0 %v3136, 116
      %v3144 = vpop.permute.xlu0 %3143
      %3145 = vrot.lane.b32.xlu0 %v3137, 116
      %v3146 = vpop.permute.xlu0 %3145
      %3150 = vst.msk [vmem:[#allocation2 + $0x48] sm:$0xf] %vm1509, %v3142
      %3151 = vst.msk [vmem:[#allocation2 + $0x4c] sm:$0xf] %vm1509, %v3144
      %3152 = vst.msk [vmem:[#allocation2 + $0x50] sm:$0xf] %vm1509, %v3146
      %v3153 = vld [vmem:[#allocation6] sm:$0xf]
      %v3154 = vld [vmem:[#allocation6 + $0x4] sm:$0xf]
      %v3155 = vld [vmem:[#allocation6 + $0x8] sm:$0xf]
      %3159 = vrot.lane.b32.xlu0 %v3153, 115
      %v3160 = vpop.permute.xlu0 %3159
      %3161 = vrot.lane.b32.xlu0 %v3154, 115
      %v3162 = vpop.permute.xlu0 %3161
      %3163 = vrot.lane.b32.xlu0 %v3155, 115
      %v3164 = vpop.permute.xlu0 %3163
      %3168 = vst.msk [vmem:[#allocation2 + $0x54] sm:$0xf] %vm1509, %v3160
      %3169 = vst.msk [vmem:[#allocation2 + $0x58] sm:$0xf] %vm1509, %v3162
      %3170 = vst.msk [vmem:[#allocation2 + $0x5c] sm:$0xf] %vm1509, %v3164
      %v3171 = vld [vmem:[#allocation6] sm:$0xf]
      %v3172 = vld [vmem:[#allocation6 + $0x4] sm:$0xf]
      %v3173 = vld [vmem:[#allocation6 + $0x8] sm:$0xf]
      %3177 = vrot.lane.b32.xlu0 %v3171, 114
      %v3178 = vpop.permute.xlu0 %3177
      %3179 = vrot.lane.b32.xlu0 %v3172, 114
      %v3180 = vpop.permute.xlu0 %3179
      %3181 = vrot.lane.b32.xlu0 %v3173, 114
      %v3182 = vpop.permute.xlu0 %3181
      %3186 = vst.msk [vmem:[#allocation2 + $0x60] sm:$0xf] %vm1509, %v3178
      %3187 = vst.msk [vmem:[#allocation2 + $0x64] sm:$0xf] %vm1509, %v3180
      %3188 = vst.msk [vmem:[#allocation2 + $0x68] sm:$0xf] %vm1509, %v3182
      %v3189 = vld [vmem:[%s9] sm:$0xff]
      %v3190 = vld [vmem:[%s9 + $0x8] sm:$0xff]
      %v3191 = vld [vmem:[%s9 + $0x10] sm:$0xff]
      %v3192 = vld [vmem:[%s9 + $0x18] sm:$0xff]
      %v3193 = vld [vmem:[#allocation2] sm:$0xf]
      %v3194 = vld [vmem:[#allocation2 + $0x4] sm:$0xf]
      %v3195 = vld [vmem:[#allocation2 + $0x8] sm:$0xf]
      %v3196 = vld [vmem:[#allocation2 + $0xc] sm:$0xf]
      %v3197 = vld [vmem:[#allocation2 + $0x10] sm:$0xf]
      %v3198 = vld [vmem:[#allocation2 + $0x14] sm:$0xf]
      %v3199 = vld [vmem:[#allocation2 + $0x18] sm:$0xf]
      %v3200 = vld [vmem:[#allocation2 + $0x1c] sm:$0xf]
      %v3201 = vld [vmem:[#allocation2 + $0x20] sm:$0xf]
      %v3202 = vld [vmem:[#allocation2 + $0x24] sm:$0xf]
      %v3203 = vld [vmem:[#allocation2 + $0x28] sm:$0xf]
      %v3204 = vld [vmem:[#allocation2 + $0x2c] sm:$0xf]
      %v3205 = vld [vmem:[#allocation2 + $0x30] sm:$0xf]
      %v3206 = vld [vmem:[#allocation2 + $0x34] sm:$0xf]
      %v3207 = vld [vmem:[#allocation2 + $0x38] sm:$0xf]
      %v3208 = vld [vmem:[#allocation2 + $0x3c] sm:$0xf]
      %v3209 = vld [vmem:[#allocation2 + $0x40] sm:$0xf]
      %v3210 = vld [vmem:[#allocation2 + $0x44] sm:$0xf]
      %v3211 = vld [vmem:[#allocation2 + $0x48] sm:$0xf]
      %v3212 = vld [vmem:[#allocation2 + $0x4c] sm:$0xf]
      %v3213 = vld [vmem:[#allocation2 + $0x50] sm:$0xf]
      %v3214 = vld [vmem:[#allocation2 + $0x54] sm:$0xf]
      %v3215 = vld [vmem:[#allocation2 + $0x58] sm:$0xf]
      %v3216 = vld [vmem:[#allocation2 + $0x5c] sm:$0xf]
      %v3217 = vld [vmem:[#allocation2 + $0x60] sm:$0xf]
      %v3218 = vld [vmem:[#allocation2 + $0x64] sm:$0xf]
      %v3219 = vld [vmem:[#allocation2 + $0x68] sm:$0xf]
      %v3220 = vld [vmem:[%s10] sm:$0xff]
      %v3221 = vld [vmem:[%s10 + $0x8] sm:$0xff]
      %v3222 = vld [vmem:[%s10 + $0x10] sm:$0xff]
      %v3223 = vld [vmem:[%s10 + $0x18] sm:$0xff]
      %3225 = vset.pattern.permute.xlu0 0
      %3226 = vperm.xlu0 %3225, %v3220
      %v3227 = vpop.permute.xlu0 %3226
      %3230 = vset.pattern.permute.xlu0 0
      %3231 = vperm.xlu0 %3230, %v3221
      %v3232 = vpop.permute.xlu0 %3231
      %3235 = vset.pattern.permute.xlu0 0
      %3236 = vperm.xlu0 %3235, %v3222
      %v3237 = vpop.permute.xlu0 %3236
      %3240 = vset.pattern.permute.xlu0 0
      %3241 = vperm.xlu0 %3240, %v3223
      %v3242 = vpop.permute.xlu0 %3241
      %v3248 = vunpack.c.l.b16 %v3189
      %v3249 = vunpack.c.h.b16 %v3189
      %v3250 = vunpack.c.l.b16 %v3190
      %v3251 = vunpack.c.h.b16 %v3190
      %v3252 = vunpack.c.l.b16 %v3191
      %v3253 = vunpack.c.h.b16 %v3191
      %v3254 = vunpack.c.l.b16 %v3192
      %v3255 = vunpack.c.h.b16 %v3192
      %v3256 = vpack.c.b16 %v3250, %v3248
      %v3257 = vpack.c.b16 %v3251, %v3249
      %v3258 = vpack.c.b16 %v3254, %v3252
      %v3259 = vpack.c.b16 %v3255, %v3253
      %v3289 = vunpack.c.l.b16 %v3193
      %v3290 = vunpack.c.l.b16 %v3194
      %v3291 = vunpack.c.l.b16 %v3195
      %v3292 = vunpack.c.l.b16 %v3196
      %v3293 = vunpack.c.l.b16 %v3197
      %v3294 = vunpack.c.l.b16 %v3198
      %v3295 = vunpack.c.l.b16 %v3199
      %v3296 = vunpack.c.l.b16 %v3200
      %v3297 = vunpack.c.l.b16 %v3201
      %v3298 = vunpack.c.l.b16 %v3202
      %v3299 = vunpack.c.l.b16 %v3203
      %v3300 = vunpack.c.l.b16 %v3204
      %v3301 = vunpack.c.l.b16 %v3205
      %v3302 = vunpack.c.l.b16 %v3206
      %v3303 = vunpack.c.l.b16 %v3207
      %v3304 = vunpack.c.l.b16 %v3208
      %v3305 = vunpack.c.l.b16 %v3209
      %v3306 = vunpack.c.l.b16 %v3210
      %v3307 = vunpack.c.l.b16 %v3211
      %v3308 = vunpack.c.l.b16 %v3212
      %v3309 = vunpack.c.l.b16 %v3213
      %v3310 = vunpack.c.l.b16 %v3214
      %v3311 = vunpack.c.l.b16 %v3215
      %v3312 = vunpack.c.l.b16 %v3216
      %v3313 = vunpack.c.l.b16 %v3217
      %v3314 = vunpack.c.l.b16 %v3218
      %v3315 = vunpack.c.l.b16 %v3219
      %v3316 = vpack.c.b16 %v3290, %v3289
      %v3317 = vpack.c.b16 %v3292, %v3291
      %v3318 = vpack.c.b16 %v3294, %v3293
      %v3319 = vpack.c.b16 %v3296, %v3295
      %v3320 = vpack.c.b16 %v3298, %v3297
      %v3321 = vpack.c.b16 %v3300, %v3299
      %v3322 = vpack.c.b16 %v3302, %v3301
      %v3323 = vpack.c.b16 %v3304, %v3303
      %v3324 = vpack.c.b16 %v3306, %v3305
      %v3325 = vpack.c.b16 %v3308, %v3307
      %v3326 = vpack.c.b16 %v3310, %v3309
      %v3327 = vpack.c.b16 %v3312, %v3311
      %v3328 = vpack.c.b16 %v3314, %v3313
      %v3329 = vpack.c.b16 %v3315, %v3315
      %v3344 = vsel %vm1272, %v3257, 0
      %v3347 = vsel %vm1272, %v3259, 0
      %v3350 = vsel %vm810, %v3329, 0
      %3352 = vmatprep.subr.bf16.mxu0 0
      %3353 = vmatpush1.bf16.msra.mxu0 %v3323
      %3354 = vmatprep.subr.bf16.mxu0 0
      %3355 = vmatpush1.bf16.msra.mxu0 %v3322
      %3356 = vmatprep.subr.bf16.mxu0 0
      %3357 = vmatpush1.bf16.msra.mxu0 %v3321
      %3358 = vmatprep.subr.bf16.mxu0 0
      %3359 = vmatpush1.bf16.msra.mxu0 %v3320
      %3360 = vmatprep.subr.bf16.mxu0 0
      %3361 = vmatpush1.bf16.msra.mxu0 %v3319
      %3362 = vmatprep.subr.bf16.mxu0 0
      %3363 = vmatpush1.bf16.msra.mxu0 %v3318
      %3364 = vmatprep.subr.bf16.mxu0 0
      %3365 = vmatpush1.bf16.msra.mxu0 %v3317
      %3366 = vmatprep.subr.bf16.mxu0 0
      %3367 = vmatpush1.bf16.msra.mxu0 %v3316
      %3368 = vmatprep.subr.bf16.mxu0 0
      %3369 = vmatpush2.bf16.msra.mxu0 0
      %3370 = vmatprep.subr.bf16.mxu0 0
      %3371 = vmatpush2.bf16.msra.mxu0 0
      %3372 = vmatprep.subr.bf16.mxu0 0
      %3373 = vmatpush2.bf16.msra.mxu0 %v3350
      %3374 = vmatprep.subr.bf16.mxu0 0
      %3375 = vmatpush2.bf16.msra.mxu0 %v3328
      %3376 = vmatprep.subr.bf16.mxu0 0
      %3377 = vmatpush2.bf16.msra.mxu0 %v3327
      %3378 = vmatprep.subr.bf16.mxu0 0
      %3379 = vmatpush2.bf16.msra.mxu0 %v3326
      %3380 = vmatprep.subr.bf16.mxu0 0
      %3381 = vmatpush2.bf16.msra.mxu0 %v3325
      %3382 = vmatprep.subr.bf16.mxu0 0
      %3383 = vmatpush2.bf16.msra.mxu0 %v3324
      %3384 = vmatprep.mubr.bf16.mxu0 %v3344
      %3385 = vmatmul.mubr.bf16.gmra.mxu0 %v3256
      %v3386 = vpop.f32.mrf.mxu0
      %v3387 = vadd.f32 %v3227, %v3386
      %v3388 = vpop.f32.mrf.mxu0
      %v3389 = vpop.f32.mrf.mxu0
      %v3390 = vadd.f32 %v3232, %v3389
      %v3391 = vpop.f32.mrf.mxu0
      %3392 = vmatprep.mubr.bf16.mxu0 %v3347
      %3393 = vmatmul.mubr.bf16.gmra.mxu0 %v3258
      %v3394 = vpop.f32.mrf.mxu0
      %v3395 = vadd.f32 %v3237, %v3394
      %v3396 = vpop.f32.mrf.mxu0
      %v3397 = vpop.f32.mrf.mxu0
      %v3398 = vadd.f32 %v3242, %v3397
      %v3399 = vpop.f32.mrf.mxu0
      %3400 = vdwg.mxu0
      %v3401 = vtanh.pop %v3387
      %v3402 = vtanh.pop %v3390
      %v3403 = vtanh.pop %v3395
      %v3404 = vtanh.pop %v3398
      %3405 = vst.msk [vmem:[%s494] sm:$0xff] %vm2511, %v3401
      %3406 = vst.msk [vmem:[%s494 + $0x8] sm:$0xff] %vm2511, %v3402
      %3407 = vst.msk [vmem:[%s494 + $0x10] sm:$0xff] %vm2511, %v3403
      %3408 = vst.msk [vmem:[%s494 + $0x18] sm:$0xff] %vm2511, %v3404
      %p3409 = scmp.lt.s32.totalorder %s26, 1
      %s3410 = scalar_select %p3409, %s26, 1
      %s3411 = smul.addr %s3410, 4
      %s3412 = smul.addr %s3411, 8
      %s3413 = scalar_lea.vmem %s15, %s3412
      // Predicated region
      $region81: #{coarse_flow_forward.1} parent=79 // pred_check
        %p3414 = pneg %p364
      $region82: #{coarse_flow_forward.1} parent=79 // pred_check_branch
        %3416 = sbr.rel (%p3414) target = $region84
      $region83: #{coarse_flow_forward.1} parent=79 // pred_region
        _
      $region84: #{coarse_flow_forward.1} parent=79 // pred_fallthru
        _
    $region80: #{coarse_flow_forward.1} parent=5 // pred_fallthru
      _
    %p3417 = scmp.le.s32.totalorder 2, %s21
    // Predicated region
    $region85: #{coarse_flow_forward.1} parent=5 // pred_check
      %p3418 = pneg %p3417
    $region86: #{coarse_flow_forward.1} parent=5 // pred_check_branch
      %3420 = sbr.rel (%p3418) target = $region88
    $region87: #{coarse_flow_forward.1} parent=5 // pred_region
      %s3421 = ssub.s32 %s21, 2
      // Predicated region
      $region89: #{coarse_flow_forward.1} parent=87 // pred_check
        %p3422 = pneg %p370
      $region90: #{coarse_flow_forward.1} parent=87 // pred_check_branch
        %3424 = sbr.rel (%p3422) target = $region92
      $region91: #{coarse_flow_forward.1} parent=87 // pred_region
        %p3425 = scmp.lt.s32.totalorder %s27, 1
        %s3426 = scalar_select %p3425, %s27, 1
        %s3427 = smul.addr %s3426, 4
        %s3428 = smul.addr %s3427, 8
        %s3429 = scalar_lea.vmem %s15, %s3428
      $region92: #{coarse_flow_forward.1} parent=87 // pred_fallthru
        _
    $region88: #{coarse_flow_forward.1} parent=5 // pred_fallthru
      _
  $region6: #{coarse_flow_forward.1} parent=0 // loop_footer
    %s25 = sadd.s32 1, %s21
  $region7: #{coarse_flow_forward.1} parent=0 // loop_footer_branch
    %20 = sbr.rel target = $region3
  $region8: #{coarse_flow_forward.1} parent=0 // loop_exit
    _

</llo_original>
